<compile_context>
chip_gen: v7x
topology: tpu7x:2x2x1
jax: 0.10.0
libtpu: 0.0.40
codegen_flags: <defaults>
</compile_context>

<pallas_src>
import jax
import jax.numpy as jnp
from jax.experimental import pallas as pl

# ------------------------- small, self-consistent config -------------------------
B      = 2      # batch_size
IMG_H  = 16
IMG_W  = 16
C_IN   = 1      # grayscale input images
EMB    = 8      # embedding_size
HID    = 16     # hidden_size
T      = 4      # sequence_length
VOCAB  = 20     # vocab_size
OSZ    = 16     # o_layer_size
VLEN   = 32     # v_length == CNN output channels
BETA   = 32     # attention beta_size
KH = KW = 3
STRIDE = 2
HP = WP = 8     # (16 + 2*1 - 3)//2 + 1
L      = HP * WP

KPAD   = 16     # conv im2col contraction dim padded 9 -> 16
EPAD   = 16     # embedding dim padded 8 -> 16 (keeps weight-slab slices tile aligned)

NH     = 4 * HID             # 64  (LSTM gate width)
NHALL  = 4 * HID + BETA + OSZ  # 112 (fused h-projection width)

# ---- packed weight-slab layout (rows; all offsets multiples of 16 for bf16 tiles) ----
R_CONV = 0      # (KPAD, VLEN)          conv weight (rows 9..15 zero)
R_INIT = 16     # (VLEN, HID)           init_Wh
R_X    = 48     # (EPAD+OSZ, 4*HID)     stacked LSTM input weight [w_x_emb(pad); w_x_o]
R_HALL = 80     # (HID, 112)            fused [w_h | w_ha | w_oh]
R_V    = 96     # (VLEN, BETA)          attention V projection
R_OC   = 128    # (VLEN, OSZ)           O-layer, ctx part
R_OUT  = 160    # (OSZ, VOCAB)          W_out
W_ROWS = 176


# ================================ Pallas kernel ================================

def _encdec_kernel(p_ref, e_ref, w_ref, b_ref, out_ref):
    f32, bf16 = jnp.float32, jnp.bfloat16

    # ---------------- encoder: 3x3/stride-2 conv as one MXU matmul + ReLU ----------------
    w_conv = w_ref[R_CONV:R_CONV + KPAD, 0:VLEN]              # (16, 32) bf16 (rows 9..15 zero)
    b_conv = b_ref[0:1, 0:VLEN]                               # (1, 32)  f32
    v_flat = jnp.maximum(
        jnp.dot(p_ref[...], w_conv, preferred_element_type=f32) + b_conv, 0.0)   # (B*L, VLEN) f32

    # decoder-init mean from f32 V (precision), then bf16 residency for the loop (vregs)
    mean_v = jnp.mean(v_flat.reshape(B, L, VLEN), axis=1)     # (B, VLEN) f32
    v3_bf  = v_flat.astype(bf16).reshape(B, L, VLEN)          # (B, L, VLEN) bf16 resident

    # ------------- hoisted (time-invariant) attention projection of V --------------
    w_v = w_ref[R_V:R_V + VLEN, 0:BETA]
    proj_v = jnp.dot(v_flat.astype(bf16), w_v,
                     preferred_element_type=f32).astype(bf16).reshape(B, L, BETA)  # bf16 resident

    # -------- decoder init: H_0 = tanh(init_Wh(mean(V, 1))), C_0 = 0, O_0 = 0 --------
    w_init = w_ref[R_INIT:R_INIT + VLEN, 0:HID]
    b_init = b_ref[1:2, 0:HID]
    h = jnp.tanh(jnp.dot(mean_v.astype(bf16), w_init, preferred_element_type=f32) + b_init)
    c = jnp.zeros((B, HID), f32)
    o_prev = jnp.zeros((B, OSZ), bf16)

    # ------------------------ loop-invariant weight / bias loads --------------------------
    w_x    = w_ref[R_X:R_X + EPAD + OSZ, 0:NH]                # (32, 64) bf16 (rows EMB..15 zero)
    w_hall = w_ref[R_HALL:R_HALL + HID, 0:NHALL]              # (16,112) bf16 [w_h|w_ha|w_oh]
    w_oc   = w_ref[R_OC:R_OC + VLEN, 0:OSZ]                   # (32, 16) bf16
    w_out  = w_ref[R_OUT:R_OUT + OSZ, 0:VOCAB]                # (16, 20) bf16
    b_lstm = jnp.broadcast_to(b_ref[2:3, 0:NH], (B, NH))      # pre-broadcast (unrolled body)
    b_hall = jnp.broadcast_to(b_ref[3:4, 0:NHALL], (B, NHALL))  # only b_att cols nonzero
    w_sc   = b_ref[4:5, 0:BETA]                               # (1, BETA) f32 score vector

    # fused h-projection of H_0 (gate h-term for step 0 is carried from here)
    h_all = jnp.dot(h.astype(bf16), w_hall, preferred_element_type=f32) + b_hall   # (B, 112)

    o_list = []
    for t in range(T):                                        # T=4 static -> full unroll
        # LSTM gates: one x-matmul ([E(y); O_{t-1}] lane-concat) + carried h-term
        x_cat = jnp.concatenate([e_ref[t], o_prev], axis=1)              # (B, 32) bf16
        gates = (jnp.dot(x_cat, w_x, preferred_element_type=f32)
                 + h_all[:, 0:NH] + b_lstm)                              # (B, 64) f32
        i_g = jax.nn.sigmoid(gates[:, 0:HID])
        f_g = jax.nn.sigmoid(gates[:, HID:2 * HID])
        g_g = jnp.tanh(gates[:, 2 * HID:3 * HID])
        o_g = jax.nn.sigmoid(gates[:, 3 * HID:4 * HID])
        c = f_g * c + i_g * g_g
        h = o_g * jnp.tanh(c)                                            # (B, HID) f32

        # ONE fused h-matmul: this step's attention/output terms + next step's gate term
        h_all = jnp.dot(h.astype(bf16), w_hall, preferred_element_type=f32) + b_hall
        proj_h = h_all[:, NH:NH + BETA]                                  # (B, BETA) (+b_att)
        h_oh   = h_all[:, NH + BETA:NHALL]                               # (B, OSZ)

        # additive attention: bf16 tanh block, lane-dense (B, L) softmax, MXU context
        e_att = jnp.tanh(proj_v + proj_h.astype(bf16)[:, None, :])       # (B, L, BETA) bf16
        scores = jnp.sum(e_att.astype(f32) * w_sc, axis=-1)              # (B, L) f32, L on lanes
        m = jnp.max(scores, axis=-1, keepdims=True)
        ex = jnp.exp(scores - m)
        alpha = ex * pl.reciprocal(jnp.sum(ex, axis=-1, keepdims=True), approx=True)  # (B, L)
        ctx = jnp.einsum('bql,blv->bqv', alpha.astype(bf16)[:, None, :], v3_bf,
                         preferred_element_type=f32)[:, 0, :]            # (B, VLEN) f32

        # output head (h-part carried from the fused matmul; W_out deferred out of loop)
        o_t = jnp.tanh(h_oh + jnp.dot(ctx.astype(bf16), w_oc, preferred_element_type=f32))
        o_prev = o_t.astype(bf16)
        o_list.append(o_prev)

    # single deferred vocab projection (better MXU row occupancy) + single dense store
    o_all = jnp.concatenate(o_list, axis=0)                              # (T*B, OSZ) bf16
    out_ref[...] = jnp.dot(o_all, w_out, preferred_element_type=f32)     # (T*B, VOCAB) f32


# ================================ wrappers ================================

def _im2col(x_nchw):
    """3x3 / stride-2 / pad-1 im2col, contraction dim padded 9 -> KPAD."""
    x = jnp.transpose(x_nchw, (0, 2, 3, 1)).astype(jnp.float32)   # NHWC
    xp = jnp.pad(x, ((0, 0), (1, 1), (1, 1), (0, 0)))
    taps = []
    for di in range(KH):
        for dj in range(KW):
            taps.append(xp[:, di:di + STRIDE * HP - 1:STRIDE,
                           dj:dj + STRIDE * WP - 1:STRIDE, :])
    patches = jnp.concatenate(taps, axis=-1).reshape(B * HP * WP, KH * KW * C_IN)
    return jnp.pad(patches, ((0, 0), (0, KPAD - KH * KW * C_IN)))


def _pack_weight_slab(p):
    """All matmul weights packed into one bf16 (W_ROWS, 128) slab (one DMA)."""
    wm_conv = jnp.transpose(p["w_conv"], (2, 3, 1, 0)).reshape(KH * KW * C_IN, VLEN)
    w = jnp.zeros((W_ROWS, 128), jnp.float32)

    def put(w, row, col, mat):
        r, c = mat.shape
        return w.at[row:row + r, col:col + c].set(mat.astype(jnp.float32))

    w = put(w, R_CONV, 0, wm_conv)
    w = put(w, R_INIT, 0, p["w_init"])
    w = put(w, R_X, 0, p["w_x"][:EMB])              # embedding rows of LSTM input weight
    w = put(w, R_X + EPAD, 0, p["w_x"][EMB:])       # O_{t-1} rows of LSTM input weight
    w = put(w, R_HALL, 0, p["w_h"])                 # fused h block: [w_h | w_ha | w_oh]
    w = put(w, R_HALL, NH, p["w_ha"])
    w = put(w, R_HALL, NH + BETA, p["w_o"][:HID])
    w = put(w, R_V, 0, p["w_v"])
    w = put(w, R_OC, 0, p["w_o"][HID:])
    w = put(w, R_OUT, 0, p["w_out"])
    return w.astype(jnp.bfloat16)


def _pack_bias_slab(p):
    """All biases (+ the attention score vector) packed into one f32 (8, 128) slab."""
    b = jnp.zeros((8, 128), jnp.float32)
    b = b.at[0, 0:VLEN].set(p["b_conv"])
    b = b.at[1, 0:HID].set(p["b_init"].reshape(HID))
    b = b.at[2, 0:NH].set(p["b_lstm"].reshape(NH))
    b = b.at[3, NH:NH + BETA].set(p["b_att"].reshape(BETA))   # b_hall row (b_att cols only)
    b = b.at[4, 0:BETA].set(p["w_sc"].reshape(BETA))          # score vector as a lane row
    return b


def pack_params(params):
    """One-time packing; hoisted out of the per-call forward path (perf feedback)."""
    return {
        "w_slab": _pack_weight_slab(params),
        "b_slab": _pack_bias_slab(params),
        "emb": jnp.pad(params["emb"], ((0, 0), (0, EPAD - EMB))).astype(jnp.bfloat16),
    }


def encoder_decoder_forward(x_batch, labels_batch, packed):
    patches = _im2col(x_batch).astype(jnp.bfloat16)            # (B*L, KPAD)
    # teacher forcing: token fed at step t is Y_0=(vocab-3) for t=0 else labels[:, t-1]
    y_prev = jnp.concatenate(
        [jnp.full((B, 1), VOCAB - 3, dtype=jnp.int32), labels_batch[:, :-1]], axis=1)
    e_seq = jnp.transpose(packed["emb"][y_prev], (1, 0, 2))    # (T, B, EPAD) bf16

    out_tb = pl.pallas_call(
        _encdec_kernel,
        out_shape=jax.ShapeDtypeStruct((T * B, VOCAB), jnp.float32),
    )(patches, e_seq, packed["w_slab"], packed["b_slab"])
    return jnp.transpose(out_tb.reshape(T, B, VOCAB), (1, 0, 2))   # (B, T, VOCAB)


# ============================ pure-JAX f32 reference ============================

def reference_forward(x_batch, labels_batch, p):
    x = jnp.transpose(x_batch, (0, 2, 3, 1)).astype(jnp.float32)
    xp = jnp.pad(x, ((0, 0), (1, 1), (1, 1), (0, 0)))
    taps = []
    for di in range(KH):
        for dj in range(KW):
            taps.append(xp[:, di:di + STRIDE * HP - 1:STRIDE,
                           dj:dj + STRIDE * WP - 1:STRIDE, :])
    patches = jnp.concatenate(taps, axis=-1).reshape(B * HP * WP, KH * KW * C_IN)
    wm = jnp.transpose(p["w_conv"], (2, 3, 1, 0)).reshape(KH * KW * C_IN, VLEN)
    V = jnp.maximum(patches @ wm + p["b_conv"].reshape(1, VLEN), 0.0).reshape(B, L, VLEN)

    h = jnp.tanh(jnp.mean(V, axis=1) @ p["w_init"] + p["b_init"])
    c = jnp.zeros((B, HID), jnp.float32)
    o_state = jnp.zeros((B, OSZ), jnp.float32)
    y_prev = jnp.concatenate(
        [jnp.full((B, 1), VOCAB - 3, dtype=jnp.int32), labels_batch[:, :-1]], axis=1)
    outs = []
    for t in range(T):
        x_t = jnp.concatenate([p["emb"][y_prev[:, t]].astype(jnp.float32), o_state], axis=1)
        gates = x_t @ p["w_x"] + h @ p["w_h"] + p["b_lstm"]
        i_g = jax.nn.sigmoid(gates[:, 0:HID])
        f_g = jax.nn.sigmoid(gates[:, HID:2 * HID])
        g_g = jnp.tanh(gates[:, 2 * HID:3 * HID])
        o_g = jax.nn.sigmoid(gates[:, 3 * HID:4 * HID])
        c = f_g * c + i_g * g_g
        h = o_g * jnp.tanh(c)
        proj_v = (V.reshape(B * L, VLEN) @ p["w_v"]).reshape(B, L, BETA)
        proj_h = h @ p["w_ha"] + p["b_att"]
        e_att = jnp.tanh(proj_v + proj_h[:, None, :])
        scores = jnp.sum(e_att * p["w_sc"][None], axis=-1)
        alpha = jax.nn.softmax(scores, axis=1)
        ctx = jnp.sum(alpha[:, :, None] * V, axis=1)
        o_t = jnp.tanh(jnp.concatenate([h, ctx], axis=1) @ p["w_o"])
        outs.append(o_t @ p["w_out"])
        o_state = o_t
    return jnp.stack(outs, axis=1)


# ==================================== main ====================================

if __name__ == "__main__":
    key = jax.random.PRNGKey(0)
    keys = jax.random.split(key, 20)
    n = lambda k, shape, s=0.1: (s * jax.random.normal(k, shape)).astype(jnp.float32)

    params = {
        "w_conv": n(keys[0], (VLEN, C_IN, KH, KW)),
        "b_conv": n(keys[1], (VLEN,)),
        "emb":    n(keys[2], (VOCAB, EMB)),
        "w_init": n(keys[3], (VLEN, HID)),
        "b_init": n(keys[4], (1, HID)),
        "w_x":    n(keys[5], (EMB + OSZ, 4 * HID)),
        "w_h":    n(keys[6], (HID, 4 * HID)),
        "b_lstm": n(keys[7], (1, 4 * HID)),
        "w_v":    n(keys[8], (VLEN, BETA)),
        "w_ha":   n(keys[9], (HID, BETA)),
        "b_att":  n(keys[10], (1, BETA)),
        "w_sc":   n(keys[11], (1, BETA)),
        "w_o":    n(keys[12], (HID + VLEN, OSZ)),
        "w_out":  n(keys[13], (OSZ, VOCAB)),
    }

    x_batch = jax.random.normal(keys[14], (B, C_IN, IMG_H, IMG_W), dtype=jnp.float32)
    labels_batch = jax.random.randint(keys[15], (B, T), 0, VOCAB, dtype=jnp.int32)

    # one-time weight packing (hoisted out of the per-call path)
    packed = jax.tree_util.tree_map(jax.device_put, pack_params(params))

    fwd = jax.jit(encoder_decoder_forward)
    out = fwd(x_batch, labels_batch, packed)
    out = jax.block_until_ready(out)

    assert out.shape == (B, T, VOCAB), out.shape
    assert bool(jnp.all(jnp.isfinite(out)))

    ref = reference_forward(x_batch, labels_batch, params)
    # bf16 MXU operands / bf16-resident V, proj_v, e_att + approx reciprocal vs exact
    # f32 reference -> slightly loose tolerance
    assert bool(jnp.allclose(out, ref, atol=3e-2, rtol=3e-2)), "mismatch vs pure-JAX reference"

    print("KERNEL_OK")
</pallas_src>

<mosaic_0001>
module attributes {stable_mosaic.version = 11 : i64} {
  func.func @_encdec_kernel(%arg0: memref<128x16xbf16, #tpu.memory_space<vmem>>, %arg1: memref<4x2x16xbf16, #tpu.memory_space<vmem>>, %arg2: memref<176x128xbf16, #tpu.memory_space<vmem>>, %arg3: memref<8x128xf32, #tpu.memory_space<vmem>>, %arg4: memref<8x20xf32, #tpu.memory_space<vmem>>) attributes {dimension_semantics = [], scalar_prefetch = 0 : i64, scratch_operands = 0 : i64, tpu.core_type = #tpu.core_type<tc>} {
    %c0 = arith.constant 0 : index
    %c0_0 = arith.constant 0 : index
    %0 = vector.load %arg2[%c0, %c0_0] : memref<176x128xbf16, #tpu.memory_space<vmem>>, vector<16x32xbf16>
    %c0_1 = arith.constant 0 : index
    %c0_2 = arith.constant 0 : index
    %1 = vector.load %arg3[%c0_1, %c0_2] : memref<8x128xf32, #tpu.memory_space<vmem>>, vector<1x32xf32>
    %c0_3 = arith.constant 0 : index
    %c0_4 = arith.constant 0 : index
    %2 = vector.load %arg0[%c0_3, %c0_4] : memref<128x16xbf16, #tpu.memory_space<vmem>>, vector<128x16xbf16>
    %cst = arith.constant dense<0.000000e+00> : vector<128x32xf32>
    %3 = tpu.matmul %2, %0, %cst {dimension_numbers = #tpu.dot_dimension_numbers<[1], [0], [0], [1], [0, 0, 1, 1], [], []>} : vector<128x16xbf16>, vector<16x32xbf16>, vector<128x32xf32> -> vector<128x32xf32>
    %4 = vector.broadcast %1 : vector<1x32xf32> to vector<128x32xf32>
    %5 = arith.addf %3, %4 : vector<128x32xf32>
    %cst_5 = arith.constant 0.000000e+00 : f32
    %6 = vector.broadcast %cst_5 : f32 to vector<128x32xf32>
    %7 = arith.maximumf %5, %6 : vector<128x32xf32>
    %8 = vector.shape_cast %7 : vector<128x32xf32> to vector<2x64x32xf32>
    %cst_6 = arith.constant dense<0.000000e+00> : vector<2x32xf32>
    %9 = vector.multi_reduction <add>, %8, %cst_6 [1] : vector<2x64x32xf32> to vector<2x32xf32>
    %cst_7 = arith.constant 6.400000e+01 : f32
    %10 = vector.broadcast %cst_7 : f32 to vector<2x32xf32>
    %11 = arith.divf %9, %10 : vector<2x32xf32>
    %12 = arith.truncf %7 : vector<128x32xf32> to vector<128x32xbf16>
    %13 = vector.shape_cast %12 : vector<128x32xbf16> to vector<2x64x32xbf16>
    %c96 = arith.constant 96 : index
    %c0_8 = arith.constant 0 : index
    %14 = vector.load %arg2[%c96, %c0_8] : memref<176x128xbf16, #tpu.memory_space<vmem>>, vector<32x32xbf16>
    %15 = arith.truncf %7 : vector<128x32xf32> to vector<128x32xbf16>
    %cst_9 = arith.constant dense<0.000000e+00> : vector<128x32xf32>
    %16 = tpu.matmul %15, %14, %cst_9 {dimension_numbers = #tpu.dot_dimension_numbers<[1], [0], [0], [1], [0, 0, 1, 1], [], []>} : vector<128x32xbf16>, vector<32x32xbf16>, vector<128x32xf32> -> vector<128x32xf32>
    %17 = arith.truncf %16 : vector<128x32xf32> to vector<128x32xbf16>
    %18 = vector.shape_cast %17 : vector<128x32xbf16> to vector<2x64x32xbf16>
    %c16 = arith.constant 16 : index
    %c0_10 = arith.constant 0 : index
    %19 = vector.load %arg2[%c16, %c0_10] : memref<176x128xbf16, #tpu.memory_space<vmem>>, vector<32x16xbf16>
    %c1 = arith.constant 1 : index
    %c0_11 = arith.constant 0 : index
    %20 = vector.load %arg3[%c1, %c0_11] : memref<8x128xf32, #tpu.memory_space<vmem>>, vector<1x16xf32>
    %21 = arith.truncf %11 : vector<2x32xf32> to vector<2x32xbf16>
    %cst_12 = arith.constant dense<0.000000e+00> : vector<2x16xf32>
    %22 = tpu.matmul %21, %19, %cst_12 {dimension_numbers = #tpu.dot_dimension_numbers<[1], [0], [0], [1], [0, 0, 1, 1], [], []>} : vector<2x32xbf16>, vector<32x16xbf16>, vector<2x16xf32> -> vector<2x16xf32>
    %23 = vector.broadcast %20 : vector<1x16xf32> to vector<2x16xf32>
    %24 = arith.addf %22, %23 : vector<2x16xf32>
    %25 = math.tanh %24 : vector<2x16xf32>
    %cst_13 = arith.constant 0.000000e+00 : f32
    %26 = vector.broadcast %cst_13 : f32 to vector<2x16xf32>
    %cst_14 = arith.constant 0.000000e+00 : bf16
    %27 = vector.broadcast %cst_14 : bf16 to vector<2x16xbf16>
    %c48 = arith.constant 48 : index
    %c0_15 = arith.constant 0 : index
    %28 = vector.load %arg2[%c48, %c0_15] : memref<176x128xbf16, #tpu.memory_space<vmem>>, vector<32x64xbf16>
    %c80 = arith.constant 80 : index
    %c0_16 = arith.constant 0 : index
    %29 = vector.load %arg2[%c80, %c0_16] : memref<176x128xbf16, #tpu.memory_space<vmem>>, vector<16x112xbf16>
    %c128 = arith.constant 128 : index
    %c0_17 = arith.constant 0 : index
    %30 = vector.load %arg2[%c128, %c0_17] : memref<176x128xbf16, #tpu.memory_space<vmem>>, vector<32x16xbf16>
    %c160 = arith.constant 160 : index
    %c0_18 = arith.constant 0 : index
    %31 = vector.load %arg2[%c160, %c0_18] : memref<176x128xbf16, #tpu.memory_space<vmem>>, vector<16x20xbf16>
    %c2 = arith.constant 2 : index
    %c0_19 = arith.constant 0 : index
    %32 = vector.load %arg3[%c2, %c0_19] : memref<8x128xf32, #tpu.memory_space<vmem>>, vector<1x64xf32>
    %33 = vector.shape_cast %32 : vector<1x64xf32> to vector<1x64xf32>
    %34 = vector.broadcast %33 : vector<1x64xf32> to vector<2x64xf32>
    %c3 = arith.constant 3 : index
    %c0_20 = arith.constant 0 : index
    %35 = vector.load %arg3[%c3, %c0_20] : memref<8x128xf32, #tpu.memory_space<vmem>>, vector<1x112xf32>
    %36 = vector.shape_cast %35 : vector<1x112xf32> to vector<1x112xf32>
    %37 = vector.broadcast %36 : vector<1x112xf32> to vector<2x112xf32>
    %c4 = arith.constant 4 : index
    %c0_21 = arith.constant 0 : index
    %38 = vector.load %arg3[%c4, %c0_21] : memref<8x128xf32, #tpu.memory_space<vmem>>, vector<1x32xf32>
    %39 = arith.truncf %25 : vector<2x16xf32> to vector<2x16xbf16>
    %cst_22 = arith.constant dense<0.000000e+00> : vector<2x112xf32>
    %40 = tpu.matmul %39, %29, %cst_22 {dimension_numbers = #tpu.dot_dimension_numbers<[1], [0], [0], [1], [0, 0, 1, 1], [], []>} : vector<2x16xbf16>, vector<16x112xbf16>, vector<2x112xf32> -> vector<2x112xf32>
    %41 = arith.addf %40, %37 : vector<2x112xf32>
    %c0_23 = arith.constant 0 : index
    %c0_24 = arith.constant 0 : index
    %c0_25 = arith.constant 0 : index
    %42 = vector.load %arg1[%c0_23, %c0_24, %c0_25] : memref<4x2x16xbf16, #tpu.memory_space<vmem>>, vector<1x2x16xbf16>
    %43 = vector.shape_cast %42 : vector<1x2x16xbf16> to vector<2x16xbf16>
    %44 = tpu.concatenate %43, %27 in 1 : vector<2x16xbf16>, vector<2x16xbf16> -> vector<2x32xbf16>
    %cst_26 = arith.constant dense<0.000000e+00> : vector<2x64xf32>
    %45 = tpu.matmul %44, %28, %cst_26 {dimension_numbers = #tpu.dot_dimension_numbers<[1], [0], [0], [1], [0, 0, 1, 1], [], []>} : vector<2x32xbf16>, vector<32x64xbf16>, vector<2x64xf32> -> vector<2x64xf32>
    %46 = vector.extract_strided_slice %41 {offsets = [0, 0], sizes = [2, 64], strides = [1, 1]} : vector<2x112xf32> to vector<2x64xf32>
    %47 = arith.addf %45, %46 : vector<2x64xf32>
    %48 = arith.addf %47, %34 : vector<2x64xf32>
    %49 = vector.extract_strided_slice %48 {offsets = [0, 0], sizes = [2, 16], strides = [1, 1]} : vector<2x64xf32> to vector<2x16xf32>
    %50 = arith.negf %49 : vector<2x16xf32>
    %51 = math.exp %50 : vector<2x16xf32>
    %cst_27 = arith.constant 1.000000e+00 : f32
    %52 = vector.broadcast %cst_27 : f32 to vector<2x16xf32>
    %53 = arith.addf %52, %51 : vector<2x16xf32>
    %54 = arith.divf %52, %53 : vector<2x16xf32>
    %55 = vector.extract_strided_slice %48 {offsets = [0, 16], sizes = [2, 16], strides = [1, 1]} : vector<2x64xf32> to vector<2x16xf32>
    %56 = arith.negf %55 : vector<2x16xf32>
    %57 = math.exp %56 : vector<2x16xf32>
    %cst_28 = arith.constant 1.000000e+00 : f32
    %58 = vector.broadcast %cst_28 : f32 to vector<2x16xf32>
    %59 = arith.addf %58, %57 : vector<2x16xf32>
    %60 = arith.divf %58, %59 : vector<2x16xf32>
    %61 = vector.extract_strided_slice %48 {offsets = [0, 32], sizes = [2, 16], strides = [1, 1]} : vector<2x64xf32> to vector<2x16xf32>
    %62 = math.tanh %61 : vector<2x16xf32>
    %63 = vector.extract_strided_slice %48 {offsets = [0, 48], sizes = [2, 16], strides = [1, 1]} : vector<2x64xf32> to vector<2x16xf32>
    %64 = arith.negf %63 : vector<2x16xf32>
    %65 = math.exp %64 : vector<2x16xf32>
    %cst_29 = arith.constant 1.000000e+00 : f32
    %66 = vector.broadcast %cst_29 : f32 to vector<2x16xf32>
    %67 = arith.addf %66, %65 : vector<2x16xf32>
    %68 = arith.divf %66, %67 : vector<2x16xf32>
    %69 = arith.mulf %60, %26 : vector<2x16xf32>
    %70 = arith.mulf %54, %62 : vector<2x16xf32>
    %71 = arith.addf %69, %70 : vector<2x16xf32>
    %72 = math.tanh %71 : vector<2x16xf32>
    %73 = arith.mulf %68, %72 : vector<2x16xf32>
    %74 = arith.truncf %73 : vector<2x16xf32> to vector<2x16xbf16>
    %cst_30 = arith.constant dense<0.000000e+00> : vector<2x112xf32>
    %75 = tpu.matmul %74, %29, %cst_30 {dimension_numbers = #tpu.dot_dimension_numbers<[1], [0], [0], [1], [0, 0, 1, 1], [], []>} : vector<2x16xbf16>, vector<16x112xbf16>, vector<2x112xf32> -> vector<2x112xf32>
    %76 = arith.addf %75, %37 : vector<2x112xf32>
    %77 = vector.extract_strided_slice %76 {offsets = [0, 64], sizes = [2, 32], strides = [1, 1]} : vector<2x112xf32> to vector<2x32xf32>
    %78 = vector.extract_strided_slice %76 {offsets = [0, 96], sizes = [2, 16], strides = [1, 1]} : vector<2x112xf32> to vector<2x16xf32>
    %79 = arith.truncf %77 : vector<2x32xf32> to vector<2x32xbf16>
    %80 = vector.shape_cast %79 : vector<2x32xbf16> to vector<2x1x32xbf16>
    %81 = vector.broadcast %80 : vector<2x1x32xbf16> to vector<2x64x32xbf16>
    %82 = arith.addf %18, %81 : vector<2x64x32xbf16>
    %83 = math.tanh %82 : vector<2x64x32xbf16>
    %84 = arith.extf %83 : vector<2x64x32xbf16> to vector<2x64x32xf32>
    %85 = vector.shape_cast %38 : vector<1x32xf32> to vector<1x1x32xf32>
    %86 = vector.broadcast %85 : vector<1x1x32xf32> to vector<2x64x32xf32>
    %87 = arith.mulf %84, %86 : vector<2x64x32xf32>
    %cst_31 = arith.constant dense<0.000000e+00> : vector<2x64xf32>
    %88 = vector.multi_reduction <add>, %87, %cst_31 [2] : vector<2x64x32xf32> to vector<2x64xf32>
    %cst_32 = arith.constant dense<0xFF800000> : vector<2xf32>
    %89 = vector.multi_reduction <maximumf>, %88, %cst_32 [1] : vector<2x64xf32> to vector<2xf32>
    %90 = vector.shape_cast %89 : vector<2xf32> to vector<2x1xf32>
    %91 = vector.broadcast %90 : vector<2x1xf32> to vector<2x64xf32>
    %92 = arith.subf %88, %91 : vector<2x64xf32>
    %93 = math.exp %92 : vector<2x64xf32>
    %cst_33 = arith.constant dense<0.000000e+00> : vector<2xf32>
    %94 = vector.multi_reduction <add>, %93, %cst_33 [1] : vector<2x64xf32> to vector<2xf32>
    %95 = vector.shape_cast %94 : vector<2xf32> to vector<2x1xf32>
    %96 = tpu.reciprocal %95 {approx = true} : vector<2x1xf32> -> vector<2x1xf32>
    %97 = vector.broadcast %96 : vector<2x1xf32> to vector<2x64xf32>
    %98 = arith.mulf %93, %97 : vector<2x64xf32>
    %99 = arith.truncf %98 : vector<2x64xf32> to vector<2x64xbf16>
    %100 = vector.shape_cast %99 : vector<2x64xbf16> to vector<2x1x64xbf16>
    "tpu.trace_start"() <{level = 10 : i32, message = "bql,blv->bqv"}> : () -> ()
    %cst_34 = arith.constant dense<0.000000e+00> : vector<2x1x32xf32>
    %101 = tpu.matmul %100, %13, %cst_34 {dimension_numbers = #tpu.dot_dimension_numbers<[2], [1], [1], [2], [0, 0, 0, 1, 1, 2], [0], [0]>} : vector<2x1x64xbf16>, vector<2x64x32xbf16>, vector<2x1x32xf32> -> vector<2x1x32xf32>
    "tpu.trace_stop"() : () -> ()
    %102 = vector.shape_cast %101 : vector<2x1x32xf32> to vector<2x32xf32>
    %103 = arith.truncf %102 : vector<2x32xf32> to vector<2x32xbf16>
    %cst_35 = arith.constant dense<0.000000e+00> : vector<2x16xf32>
    %104 = tpu.matmul %103, %30, %cst_35 {dimension_numbers = #tpu.dot_dimension_numbers<[1], [0], [0], [1], [0, 0, 1, 1], [], []>} : vector<2x32xbf16>, vector<32x16xbf16>, vector<2x16xf32> -> vector<2x16xf32>
    %105 = arith.addf %78, %104 : vector<2x16xf32>
    %106 = math.tanh %105 : vector<2x16xf32>
    %107 = arith.truncf %106 : vector<2x16xf32> to vector<2x16xbf16>
    %c1_36 = arith.constant 1 : index
    %c0_37 = arith.constant 0 : index
    %c0_38 = arith.constant 0 : index
    %108 = vector.load %arg1[%c1_36, %c0_37, %c0_38] : memref<4x2x16xbf16, #tpu.memory_space<vmem>>, vector<1x2x16xbf16>
    %109 = vector.shape_cast %108 : vector<1x2x16xbf16> to vector<2x16xbf16>
    %110 = tpu.concatenate %109, %107 in 1 : vector<2x16xbf16>, vector<2x16xbf16> -> vector<2x32xbf16>
    %cst_39 = arith.constant dense<0.000000e+00> : vector<2x64xf32>
    %111 = tpu.matmul %110, %28, %cst_39 {dimension_numbers = #tpu.dot_dimension_numbers<[1], [0], [0], [1], [0, 0, 1, 1], [], []>} : vector<2x32xbf16>, vector<32x64xbf16>, vector<2x64xf32> -> vector<2x64xf32>
    %112 = vector.extract_strided_slice %76 {offsets = [0, 0], sizes = [2, 64], strides = [1, 1]} : vector<2x112xf32> to vector<2x64xf32>
    %113 = arith.addf %111, %112 : vector<2x64xf32>
    %114 = arith.addf %113, %34 : vector<2x64xf32>
    %115 = vector.extract_strided_slice %114 {offsets = [0, 0], sizes = [2, 16], strides = [1, 1]} : vector<2x64xf32> to vector<2x16xf32>
    %116 = arith.negf %115 : vector<2x16xf32>
    %117 = math.exp %116 : vector<2x16xf32>
    %cst_40 = arith.constant 1.000000e+00 : f32
    %118 = vector.broadcast %cst_40 : f32 to vector<2x16xf32>
    %119 = arith.addf %118, %117 : vector<2x16xf32>
    %120 = arith.divf %118, %119 : vector<2x16xf32>
    %121 = vector.extract_strided_slice %114 {offsets = [0, 16], sizes = [2, 16], strides = [1, 1]} : vector<2x64xf32> to vector<2x16xf32>
    %122 = arith.negf %121 : vector<2x16xf32>
    %123 = math.exp %122 : vector<2x16xf32>
    %cst_41 = arith.constant 1.000000e+00 : f32
    %124 = vector.broadcast %cst_41 : f32 to vector<2x16xf32>
    %125 = arith.addf %124, %123 : vector<2x16xf32>
    %126 = arith.divf %124, %125 : vector<2x16xf32>
    %127 = vector.extract_strided_slice %114 {offsets = [0, 32], sizes = [2, 16], strides = [1, 1]} : vector<2x64xf32> to vector<2x16xf32>
    %128 = math.tanh %127 : vector<2x16xf32>
    %129 = vector.extract_strided_slice %114 {offsets = [0, 48], sizes = [2, 16], strides = [1, 1]} : vector<2x64xf32> to vector<2x16xf32>
    %130 = arith.negf %129 : vector<2x16xf32>
    %131 = math.exp %130 : vector<2x16xf32>
    %cst_42 = arith.constant 1.000000e+00 : f32
    %132 = vector.broadcast %cst_42 : f32 to vector<2x16xf32>
    %133 = arith.addf %132, %131 : vector<2x16xf32>
    %134 = arith.divf %132, %133 : vector<2x16xf32>
    %135 = arith.mulf %126, %71 : vector<2x16xf32>
    %136 = arith.mulf %120, %128 : vector<2x16xf32>
    %137 = arith.addf %135, %136 : vector<2x16xf32>
    %138 = math.tanh %137 : vector<2x16xf32>
    %139 = arith.mulf %134, %138 : vector<2x16xf32>
    %140 = arith.truncf %139 : vector<2x16xf32> to vector<2x16xbf16>
    %cst_43 = arith.constant dense<0.000000e+00> : vector<2x112xf32>
    %141 = tpu.matmul %140, %29, %cst_43 {dimension_numbers = #tpu.dot_dimension_numbers<[1], [0], [0], [1], [0, 0, 1, 1], [], []>} : vector<2x16xbf16>, vector<16x112xbf16>, vector<2x112xf32> -> vector<2x112xf32>
    %142 = arith.addf %141, %37 : vector<2x112xf32>
    %143 = vector.extract_strided_slice %142 {offsets = [0, 64], sizes = [2, 32], strides = [1, 1]} : vector<2x112xf32> to vector<2x32xf32>
    %144 = vector.extract_strided_slice %142 {offsets = [0, 96], sizes = [2, 16], strides = [1, 1]} : vector<2x112xf32> to vector<2x16xf32>
    %145 = arith.truncf %143 : vector<2x32xf32> to vector<2x32xbf16>
    %146 = vector.shape_cast %145 : vector<2x32xbf16> to vector<2x1x32xbf16>
    %147 = vector.broadcast %146 : vector<2x1x32xbf16> to vector<2x64x32xbf16>
    %148 = arith.addf %18, %147 : vector<2x64x32xbf16>
    %149 = math.tanh %148 : vector<2x64x32xbf16>
    %150 = arith.extf %149 : vector<2x64x32xbf16> to vector<2x64x32xf32>
    %151 = vector.shape_cast %38 : vector<1x32xf32> to vector<1x1x32xf32>
    %152 = vector.broadcast %151 : vector<1x1x32xf32> to vector<2x64x32xf32>
    %153 = arith.mulf %150, %152 : vector<2x64x32xf32>
    %cst_44 = arith.constant dense<0.000000e+00> : vector<2x64xf32>
    %154 = vector.multi_reduction <add>, %153, %cst_44 [2] : vector<2x64x32xf32> to vector<2x64xf32>
    %cst_45 = arith.constant dense<0xFF800000> : vector<2xf32>
    %155 = vector.multi_reduction <maximumf>, %154, %cst_45 [1] : vector<2x64xf32> to vector<2xf32>
    %156 = vector.shape_cast %155 : vector<2xf32> to vector<2x1xf32>
    %157 = vector.broadcast %156 : vector<2x1xf32> to vector<2x64xf32>
    %158 = arith.subf %154, %157 : vector<2x64xf32>
    %159 = math.exp %158 : vector<2x64xf32>
    %cst_46 = arith.constant dense<0.000000e+00> : vector<2xf32>
    %160 = vector.multi_reduction <add>, %159, %cst_46 [1] : vector<2x64xf32> to vector<2xf32>
    %161 = vector.shape_cast %160 : vector<2xf32> to vector<2x1xf32>
    %162 = tpu.reciprocal %161 {approx = true} : vector<2x1xf32> -> vector<2x1xf32>
    %163 = vector.broadcast %162 : vector<2x1xf32> to vector<2x64xf32>
    %164 = arith.mulf %159, %163 : vector<2x64xf32>
    %165 = arith.truncf %164 : vector<2x64xf32> to vector<2x64xbf16>
    %166 = vector.shape_cast %165 : vector<2x64xbf16> to vector<2x1x64xbf16>
    "tpu.trace_start"() <{level = 10 : i32, message = "bql,blv->bqv"}> : () -> ()
    %cst_47 = arith.constant dense<0.000000e+00> : vector<2x1x32xf32>
    %167 = tpu.matmul %166, %13, %cst_47 {dimension_numbers = #tpu.dot_dimension_numbers<[2], [1], [1], [2], [0, 0, 0, 1, 1, 2], [0], [0]>} : vector<2x1x64xbf16>, vector<2x64x32xbf16>, vector<2x1x32xf32> -> vector<2x1x32xf32>
    "tpu.trace_stop"() : () -> ()
    %168 = vector.shape_cast %167 : vector<2x1x32xf32> to vector<2x32xf32>
    %169 = arith.truncf %168 : vector<2x32xf32> to vector<2x32xbf16>
    %cst_48 = arith.constant dense<0.000000e+00> : vector<2x16xf32>
    %170 = tpu.matmul %169, %30, %cst_48 {dimension_numbers = #tpu.dot_dimension_numbers<[1], [0], [0], [1], [0, 0, 1, 1], [], []>} : vector<2x32xbf16>, vector<32x16xbf16>, vector<2x16xf32> -> vector<2x16xf32>
    %171 = arith.addf %144, %170 : vector<2x16xf32>
    %172 = math.tanh %171 : vector<2x16xf32>
    %173 = arith.truncf %172 : vector<2x16xf32> to vector<2x16xbf16>
    %c2_49 = arith.constant 2 : index
    %c0_50 = arith.constant 0 : index
    %c0_51 = arith.constant 0 : index
    %174 = vector.load %arg1[%c2_49, %c0_50, %c0_51] : memref<4x2x16xbf16, #tpu.memory_space<vmem>>, vector<1x2x16xbf16>
    %175 = vector.shape_cast %174 : vector<1x2x16xbf16> to vector<2x16xbf16>
    %176 = tpu.concatenate %175, %173 in 1 : vector<2x16xbf16>, vector<2x16xbf16> -> vector<2x32xbf16>
    %cst_52 = arith.constant dense<0.000000e+00> : vector<2x64xf32>
    %177 = tpu.matmul %176, %28, %cst_52 {dimension_numbers = #tpu.dot_dimension_numbers<[1], [0], [0], [1], [0, 0, 1, 1], [], []>} : vector<2x32xbf16>, vector<32x64xbf16>, vector<2x64xf32> -> vector<2x64xf32>
    %178 = vector.extract_strided_slice %142 {offsets = [0, 0], sizes = [2, 64], strides = [1, 1]} : vector<2x112xf32> to vector<2x64xf32>
    %179 = arith.addf %177, %178 : vector<2x64xf32>
    %180 = arith.addf %179, %34 : vector<2x64xf32>
    %181 = vector.extract_strided_slice %180 {offsets = [0, 0], sizes = [2, 16], strides = [1, 1]} : vector<2x64xf32> to vector<2x16xf32>
    %182 = arith.negf %181 : vector<2x16xf32>
    %183 = math.exp %182 : vector<2x16xf32>
    %cst_53 = arith.constant 1.000000e+00 : f32
    %184 = vector.broadcast %cst_53 : f32 to vector<2x16xf32>
    %185 = arith.addf %184, %183 : vector<2x16xf32>
    %186 = arith.divf %184, %185 : vector<2x16xf32>
    %187 = vector.extract_strided_slice %180 {offsets = [0, 16], sizes = [2, 16], strides = [1, 1]} : vector<2x64xf32> to vector<2x16xf32>
    %188 = arith.negf %187 : vector<2x16xf32>
    %189 = math.exp %188 : vector<2x16xf32>
    %cst_54 = arith.constant 1.000000e+00 : f32
    %190 = vector.broadcast %cst_54 : f32 to vector<2x16xf32>
    %191 = arith.addf %190, %189 : vector<2x16xf32>
    %192 = arith.divf %190, %191 : vector<2x16xf32>
    %193 = vector.extract_strided_slice %180 {offsets = [0, 32], sizes = [2, 16], strides = [1, 1]} : vector<2x64xf32> to vector<2x16xf32>
    %194 = math.tanh %193 : vector<2x16xf32>
    %195 = vector.extract_strided_slice %180 {offsets = [0, 48], sizes = [2, 16], strides = [1, 1]} : vector<2x64xf32> to vector<2x16xf32>
    %196 = arith.negf %195 : vector<2x16xf32>
    %197 = math.exp %196 : vector<2x16xf32>
    %cst_55 = arith.constant 1.000000e+00 : f32
    %198 = vector.broadcast %cst_55 : f32 to vector<2x16xf32>
    %199 = arith.addf %198, %197 : vector<2x16xf32>
    %200 = arith.divf %198, %199 : vector<2x16xf32>
    %201 = arith.mulf %192, %137 : vector<2x16xf32>
    %202 = arith.mulf %186, %194 : vector<2x16xf32>
    %203 = arith.addf %201, %202 : vector<2x16xf32>
    %204 = math.tanh %203 : vector<2x16xf32>
    %205 = arith.mulf %200, %204 : vector<2x16xf32>
    %206 = arith.truncf %205 : vector<2x16xf32> to vector<2x16xbf16>
    %cst_56 = arith.constant dense<0.000000e+00> : vector<2x112xf32>
    %207 = tpu.matmul %206, %29, %cst_56 {dimension_numbers = #tpu.dot_dimension_numbers<[1], [0], [0], [1], [0, 0, 1, 1], [], []>} : vector<2x16xbf16>, vector<16x112xbf16>, vector<2x112xf32> -> vector<2x112xf32>
    %208 = arith.addf %207, %37 : vector<2x112xf32>
    %209 = vector.extract_strided_slice %208 {offsets = [0, 64], sizes = [2, 32], strides = [1, 1]} : vector<2x112xf32> to vector<2x32xf32>
    %210 = vector.extract_strided_slice %208 {offsets = [0, 96], sizes = [2, 16], strides = [1, 1]} : vector<2x112xf32> to vector<2x16xf32>
    %211 = arith.truncf %209 : vector<2x32xf32> to vector<2x32xbf16>
    %212 = vector.shape_cast %211 : vector<2x32xbf16> to vector<2x1x32xbf16>
    %213 = vector.broadcast %212 : vector<2x1x32xbf16> to vector<2x64x32xbf16>
    %214 = arith.addf %18, %213 : vector<2x64x32xbf16>
    %215 = math.tanh %214 : vector<2x64x32xbf16>
    %216 = arith.extf %215 : vector<2x64x32xbf16> to vector<2x64x32xf32>
    %217 = vector.shape_cast %38 : vector<1x32xf32> to vector<1x1x32xf32>
    %218 = vector.broadcast %217 : vector<1x1x32xf32> to vector<2x64x32xf32>
    %219 = arith.mulf %216, %218 : vector<2x64x32xf32>
    %cst_57 = arith.constant dense<0.000000e+00> : vector<2x64xf32>
    %220 = vector.multi_reduction <add>, %219, %cst_57 [2] : vector<2x64x32xf32> to vector<2x64xf32>
    %cst_58 = arith.constant dense<0xFF800000> : vector<2xf32>
    %221 = vector.multi_reduction <maximumf>, %220, %cst_58 [1] : vector<2x64xf32> to vector<2xf32>
    %222 = vector.shape_cast %221 : vector<2xf32> to vector<2x1xf32>
    %223 = vector.broadcast %222 : vector<2x1xf32> to vector<2x64xf32>
    %224 = arith.subf %220, %223 : vector<2x64xf32>
    %225 = math.exp %224 : vector<2x64xf32>
    %cst_59 = arith.constant dense<0.000000e+00> : vector<2xf32>
    %226 = vector.multi_reduction <add>, %225, %cst_59 [1] : vector<2x64xf32> to vector<2xf32>
    %227 = vector.shape_cast %226 : vector<2xf32> to vector<2x1xf32>
    %228 = tpu.reciprocal %227 {approx = true} : vector<2x1xf32> -> vector<2x1xf32>
    %229 = vector.broadcast %228 : vector<2x1xf32> to vector<2x64xf32>
    %230 = arith.mulf %225, %229 : vector<2x64xf32>
    %231 = arith.truncf %230 : vector<2x64xf32> to vector<2x64xbf16>
    %232 = vector.shape_cast %231 : vector<2x64xbf16> to vector<2x1x64xbf16>
    "tpu.trace_start"() <{level = 10 : i32, message = "bql,blv->bqv"}> : () -> ()
    %cst_60 = arith.constant dense<0.000000e+00> : vector<2x1x32xf32>
    %233 = tpu.matmul %232, %13, %cst_60 {dimension_numbers = #tpu.dot_dimension_numbers<[2], [1], [1], [2], [0, 0, 0, 1, 1, 2], [0], [0]>} : vector<2x1x64xbf16>, vector<2x64x32xbf16>, vector<2x1x32xf32> -> vector<2x1x32xf32>
    "tpu.trace_stop"() : () -> ()
    %234 = vector.shape_cast %233 : vector<2x1x32xf32> to vector<2x32xf32>
    %235 = arith.truncf %234 : vector<2x32xf32> to vector<2x32xbf16>
    %cst_61 = arith.constant dense<0.000000e+00> : vector<2x16xf32>
    %236 = tpu.matmul %235, %30, %cst_61 {dimension_numbers = #tpu.dot_dimension_numbers<[1], [0], [0], [1], [0, 0, 1, 1], [], []>} : vector<2x32xbf16>, vector<32x16xbf16>, vector<2x16xf32> -> vector<2x16xf32>
    %237 = arith.addf %210, %236 : vector<2x16xf32>
    %238 = math.tanh %237 : vector<2x16xf32>
    %239 = arith.truncf %238 : vector<2x16xf32> to vector<2x16xbf16>
    %c3_62 = arith.constant 3 : index
    %c0_63 = arith.constant 0 : index
    %c0_64 = arith.constant 0 : index
    %240 = vector.load %arg1[%c3_62, %c0_63, %c0_64] : memref<4x2x16xbf16, #tpu.memory_space<vmem>>, vector<1x2x16xbf16>
    %241 = vector.shape_cast %240 : vector<1x2x16xbf16> to vector<2x16xbf16>
    %242 = tpu.concatenate %241, %239 in 1 : vector<2x16xbf16>, vector<2x16xbf16> -> vector<2x32xbf16>
    %cst_65 = arith.constant dense<0.000000e+00> : vector<2x64xf32>
    %243 = tpu.matmul %242, %28, %cst_65 {dimension_numbers = #tpu.dot_dimension_numbers<[1], [0], [0], [1], [0, 0, 1, 1], [], []>} : vector<2x32xbf16>, vector<32x64xbf16>, vector<2x64xf32> -> vector<2x64xf32>
    %244 = vector.extract_strided_slice %208 {offsets = [0, 0], sizes = [2, 64], strides = [1, 1]} : vector<2x112xf32> to vector<2x64xf32>
    %245 = arith.addf %243, %244 : vector<2x64xf32>
    %246 = arith.addf %245, %34 : vector<2x64xf32>
    %247 = vector.extract_strided_slice %246 {offsets = [0, 0], sizes = [2, 16], strides = [1, 1]} : vector<2x64xf32> to vector<2x16xf32>
    %248 = arith.negf %247 : vector<2x16xf32>
    %249 = math.exp %248 : vector<2x16xf32>
    %cst_66 = arith.constant 1.000000e+00 : f32
    %250 = vector.broadcast %cst_66 : f32 to vector<2x16xf32>
    %251 = arith.addf %250, %249 : vector<2x16xf32>
    %252 = arith.divf %250, %251 : vector<2x16xf32>
    %253 = vector.extract_strided_slice %246 {offsets = [0, 16], sizes = [2, 16], strides = [1, 1]} : vector<2x64xf32> to vector<2x16xf32>
    %254 = arith.negf %253 : vector<2x16xf32>
    %255 = math.exp %254 : vector<2x16xf32>
    %cst_67 = arith.constant 1.000000e+00 : f32
    %256 = vector.broadcast %cst_67 : f32 to vector<2x16xf32>
    %257 = arith.addf %256, %255 : vector<2x16xf32>
    %258 = arith.divf %256, %257 : vector<2x16xf32>
    %259 = vector.extract_strided_slice %246 {offsets = [0, 32], sizes = [2, 16], strides = [1, 1]} : vector<2x64xf32> to vector<2x16xf32>
    %260 = math.tanh %259 : vector<2x16xf32>
    %261 = vector.extract_strided_slice %246 {offsets = [0, 48], sizes = [2, 16], strides = [1, 1]} : vector<2x64xf32> to vector<2x16xf32>
    %262 = arith.negf %261 : vector<2x16xf32>
    %263 = math.exp %262 : vector<2x16xf32>
    %cst_68 = arith.constant 1.000000e+00 : f32
    %264 = vector.broadcast %cst_68 : f32 to vector<2x16xf32>
    %265 = arith.addf %264, %263 : vector<2x16xf32>
    %266 = arith.divf %264, %265 : vector<2x16xf32>
    %267 = arith.mulf %258, %203 : vector<2x16xf32>
    %268 = arith.mulf %252, %260 : vector<2x16xf32>
    %269 = arith.addf %267, %268 : vector<2x16xf32>
    %270 = math.tanh %269 : vector<2x16xf32>
    %271 = arith.mulf %266, %270 : vector<2x16xf32>
    %272 = arith.truncf %271 : vector<2x16xf32> to vector<2x16xbf16>
    %cst_69 = arith.constant dense<0.000000e+00> : vector<2x112xf32>
    %273 = tpu.matmul %272, %29, %cst_69 {dimension_numbers = #tpu.dot_dimension_numbers<[1], [0], [0], [1], [0, 0, 1, 1], [], []>} : vector<2x16xbf16>, vector<16x112xbf16>, vector<2x112xf32> -> vector<2x112xf32>
    %274 = arith.addf %273, %37 : vector<2x112xf32>
    %275 = vector.extract_strided_slice %274 {offsets = [0, 64], sizes = [2, 32], strides = [1, 1]} : vector<2x112xf32> to vector<2x32xf32>
    %276 = vector.extract_strided_slice %274 {offsets = [0, 96], sizes = [2, 16], strides = [1, 1]} : vector<2x112xf32> to vector<2x16xf32>
    %277 = arith.truncf %275 : vector<2x32xf32> to vector<2x32xbf16>
    %278 = vector.shape_cast %277 : vector<2x32xbf16> to vector<2x1x32xbf16>
    %279 = vector.broadcast %278 : vector<2x1x32xbf16> to vector<2x64x32xbf16>
    %280 = arith.addf %18, %279 : vector<2x64x32xbf16>
    %281 = math.tanh %280 : vector<2x64x32xbf16>
    %282 = arith.extf %281 : vector<2x64x32xbf16> to vector<2x64x32xf32>
    %283 = vector.shape_cast %38 : vector<1x32xf32> to vector<1x1x32xf32>
    %284 = vector.broadcast %283 : vector<1x1x32xf32> to vector<2x64x32xf32>
    %285 = arith.mulf %282, %284 : vector<2x64x32xf32>
    %cst_70 = arith.constant dense<0.000000e+00> : vector<2x64xf32>
    %286 = vector.multi_reduction <add>, %285, %cst_70 [2] : vector<2x64x32xf32> to vector<2x64xf32>
    %cst_71 = arith.constant dense<0xFF800000> : vector<2xf32>
    %287 = vector.multi_reduction <maximumf>, %286, %cst_71 [1] : vector<2x64xf32> to vector<2xf32>
    %288 = vector.shape_cast %287 : vector<2xf32> to vector<2x1xf32>
    %289 = vector.broadcast %288 : vector<2x1xf32> to vector<2x64xf32>
    %290 = arith.subf %286, %289 : vector<2x64xf32>
    %291 = math.exp %290 : vector<2x64xf32>
    %cst_72 = arith.constant dense<0.000000e+00> : vector<2xf32>
    %292 = vector.multi_reduction <add>, %291, %cst_72 [1] : vector<2x64xf32> to vector<2xf32>
    %293 = vector.shape_cast %292 : vector<2xf32> to vector<2x1xf32>
    %294 = tpu.reciprocal %293 {approx = true} : vector<2x1xf32> -> vector<2x1xf32>
    %295 = vector.broadcast %294 : vector<2x1xf32> to vector<2x64xf32>
    %296 = arith.mulf %291, %295 : vector<2x64xf32>
    %297 = arith.truncf %296 : vector<2x64xf32> to vector<2x64xbf16>
    %298 = vector.shape_cast %297 : vector<2x64xbf16> to vector<2x1x64xbf16>
    "tpu.trace_start"() <{level = 10 : i32, message = "bql,blv->bqv"}> : () -> ()
    %cst_73 = arith.constant dense<0.000000e+00> : vector<2x1x32xf32>
    %299 = tpu.matmul %298, %13, %cst_73 {dimension_numbers = #tpu.dot_dimension_numbers<[2], [1], [1], [2], [0, 0, 0, 1, 1, 2], [0], [0]>} : vector<2x1x64xbf16>, vector<2x64x32xbf16>, vector<2x1x32xf32> -> vector<2x1x32xf32>
    "tpu.trace_stop"() : () -> ()
    %300 = vector.shape_cast %299 : vector<2x1x32xf32> to vector<2x32xf32>
    %301 = arith.truncf %300 : vector<2x32xf32> to vector<2x32xbf16>
    %cst_74 = arith.constant dense<0.000000e+00> : vector<2x16xf32>
    %302 = tpu.matmul %301, %30, %cst_74 {dimension_numbers = #tpu.dot_dimension_numbers<[1], [0], [0], [1], [0, 0, 1, 1], [], []>} : vector<2x32xbf16>, vector<32x16xbf16>, vector<2x16xf32> -> vector<2x16xf32>
    %303 = arith.addf %276, %302 : vector<2x16xf32>
    %304 = math.tanh %303 : vector<2x16xf32>
    %305 = arith.truncf %304 : vector<2x16xf32> to vector<2x16xbf16>
    %306 = tpu.concatenate %107, %173, %239, %305 in 0 : vector<2x16xbf16>, vector<2x16xbf16>, vector<2x16xbf16>, vector<2x16xbf16> -> vector<8x16xbf16>
    %cst_75 = arith.constant dense<0.000000e+00> : vector<8x20xf32>
    %307 = tpu.matmul %306, %31, %cst_75 {dimension_numbers = #tpu.dot_dimension_numbers<[1], [0], [0], [1], [0, 0, 1, 1], [], []>} : vector<8x16xbf16>, vector<16x20xbf16>, vector<8x20xf32> -> vector<8x20xf32>
    %c0_76 = arith.constant 0 : index
    %c0_77 = arith.constant 0 : index
    %308 = vector.load %arg4[%c0_76, %c0_77] : memref<8x20xf32, #tpu.memory_space<vmem>>, vector<8x20xf32>
    tpu.vector_store %arg4[%c0_76, %c0_77], %307 {strides = array<i32>} : memref<8x20xf32, #tpu.memory_space<vmem>>, vector<8x20xf32>,
    return
  }
}

</mosaic_0001>

<llo_original>
// kernel: encoder_decoder_forward.1
$region0: #{encoder_decoder_forward.1}
  #allocation0 [shape = 'u32[]', space=smem, size = 0x4, offset = 0x4, fixed_abs, tag = 'smem constant byte address 0x4 - core index']
  #allocation1 [shape = 'u32[144,128]{1,0:T(1,128)}', space=vmem, size = 0x12000, scoped, tag = 'internal scratch']
  %s0 = inlined_call_operand.vmem [shape: bf16[128,16], index: 0, kind: input, shape index: {}]
  %s1 = inlined_call_operand.vmem [shape: bf16[4,2,16], index: 1, kind: input, shape index: {}]
  %s2 = inlined_call_operand.vmem [shape: bf16[176,128], index: 2, kind: input, shape index: {}]
  %s3 = inlined_call_operand.vmem [shape: f32[8,128], index: 3, kind: input, shape index: {}]
  %s4 = inlined_call_operand.vmem [shape: f32[8,20], index: 4, kind: output, shape index: {}]
  %s5 = sld [smem:[#allocation0]]
  $region26: #{encoder_decoder_forward.1} parent=0
    _
  %s7 = ssub.s32 1, %s5
  %s8 = scalar_select 0, %s7, %s5
  // Predicated region
  $region2: #{encoder_decoder_forward.1} parent=0 // pred_check
    _
  $region3: #{encoder_decoder_forward.1} parent=0 // pred_check_branch
    %10 = sbr.rel (0) target = $region5
  $region4: #{encoder_decoder_forward.1} parent=0 // pred_region
    _
  $region5: #{encoder_decoder_forward.1} parent=0 // pred_fallthru
    _
  // Predicated region
  $region6: #{encoder_decoder_forward.1} parent=0 // pred_check
    _
  $region7: #{encoder_decoder_forward.1} parent=0 // pred_check_branch
    %12 = sbr.rel (0) target = $region9
  $region8: #{encoder_decoder_forward.1} parent=0 // pred_region
    _
  $region9: #{encoder_decoder_forward.1} parent=0 // pred_fallthru
    _
  // Predicated region
  $region10: #{encoder_decoder_forward.1} parent=0 // pred_check
    _
  $region11: #{encoder_decoder_forward.1} parent=0 // pred_check_branch
    %14 = sbr.rel (0) target = $region13
  $region12: #{encoder_decoder_forward.1} parent=0 // pred_region
    _
  $region13: #{encoder_decoder_forward.1} parent=0 // pred_fallthru
    _
  // Predicated region
  $region14: #{encoder_decoder_forward.1} parent=0 // pred_check
    _
  $region15: #{encoder_decoder_forward.1} parent=0 // pred_check_branch
    %16 = sbr.rel (0) target = $region17
  $region16: #{encoder_decoder_forward.1} parent=0 // pred_region
    _
  $region17: #{encoder_decoder_forward.1} parent=0 // pred_fallthru
    _
  %v18 = vld [vmem:[%s2] sm:$0xf]
  %v19 = vld [vmem:[%s2 + $0x4] sm:$0xf]
  %v20 = vld [vmem:[%s3] sm:$0x1]
  %v21 = vld [vmem:[%s0] sm:$0xf]
  %v22 = vld [vmem:[%s0 + $0x4] sm:$0xf]
  %v23 = vld [vmem:[%s0 + $0x8] sm:$0xf]
  %v24 = vld [vmem:[%s0 + $0xc] sm:$0xf]
  %v25 = vld [vmem:[%s0 + $0x10] sm:$0xf]
  %v26 = vld [vmem:[%s0 + $0x14] sm:$0xf]
  %v27 = vld [vmem:[%s0 + $0x18] sm:$0xf]
  %v28 = vld [vmem:[%s0 + $0x1c] sm:$0xf]
  %v29 = vld [vmem:[%s0 + $0x20] sm:$0xf]
  %v30 = vld [vmem:[%s0 + $0x24] sm:$0xf]
  %v31 = vld [vmem:[%s0 + $0x28] sm:$0xf]
  %v32 = vld [vmem:[%s0 + $0x2c] sm:$0xf]
  %v33 = vld [vmem:[%s0 + $0x30] sm:$0xf]
  %v34 = vld [vmem:[%s0 + $0x34] sm:$0xf]
  %v35 = vld [vmem:[%s0 + $0x38] sm:$0xf]
  %v36 = vld [vmem:[%s0 + $0x3c] sm:$0xf]
  %v37 = vlaneseq
  %v38 = vshrl.u32 %v37, 7
  %v39 = vsub.s32 0, %v38
  %v40 = vrot.slane %v20, %v39
  %v57 = vunpack.c.l.b16 %v21
  %v58 = vunpack.c.l.b16 %v22
  %v59 = vunpack.c.l.b16 %v23
  %v60 = vunpack.c.l.b16 %v24
  %v61 = vunpack.c.l.b16 %v25
  %v62 = vunpack.c.l.b16 %v26
  %v63 = vunpack.c.l.b16 %v27
  %v64 = vunpack.c.l.b16 %v28
  %v65 = vunpack.c.l.b16 %v29
  %v66 = vunpack.c.l.b16 %v30
  %v67 = vunpack.c.l.b16 %v31
  %v68 = vunpack.c.l.b16 %v32
  %v69 = vunpack.c.l.b16 %v33
  %v70 = vunpack.c.l.b16 %v34
  %v71 = vunpack.c.l.b16 %v35
  %v72 = vunpack.c.l.b16 %v36
  %v73 = vpack.c.b16 %v58, %v57
  %v74 = vpack.c.b16 %v60, %v59
  %v75 = vpack.c.b16 %v62, %v61
  %v76 = vpack.c.b16 %v64, %v63
  %v77 = vpack.c.b16 %v66, %v65
  %v78 = vpack.c.b16 %v68, %v67
  %v79 = vpack.c.b16 %v70, %v69
  %v80 = vpack.c.b16 %v72, %v71
  %v83 = vunpack.c.l.b16 %v18
  %v84 = vunpack.c.l.b16 %v19
  %v85 = vpack.c.b16 %v84, %v83
  %vm87 = vcmask 130048
  %v89 = vsel %vm87, %v73, 0
  %v92 = vsel %vm87, %v74, 0
  %v95 = vsel %vm87, %v75, 0
  %v98 = vsel %vm87, %v76, 0
  %v101 = vsel %vm87, %v77, 0
  %v104 = vsel %vm87, %v78, 0
  %v107 = vsel %vm87, %v79, 0
  %v110 = vsel %vm87, %v80, 0
  %112 = vmatprep.subr.bf16.mxu0 0
  %113 = vmatpush1.bf16.msra.mxu0 %v85
  %114 = vmatprep.subr.bf16.mxu0 0
  %115 = vmatpush1.bf16.msra.mxu0 0
  %116 = vmatprep.subr.bf16.mxu0 0
  %117 = vmatpush1.bf16.msra.mxu0 0
  %118 = vmatprep.subr.bf16.mxu0 0
  %119 = vmatpush1.bf16.msra.mxu0 0
  %120 = vmatprep.subr.bf16.mxu0 0
  %121 = vmatpush1.bf16.msra.mxu0 0
  %122 = vmatprep.subr.bf16.mxu0 0
  %123 = vmatpush1.bf16.msra.mxu0 0
  %124 = vmatprep.subr.bf16.mxu0 0
  %125 = vmatpush1.bf16.msra.mxu0 0
  %126 = vmatprep.subr.bf16.mxu0 0
  %127 = vmatpush1.bf16.msra.mxu0 0
  %128 = vmatprep.subr.bf16.mxu0 0
  %129 = vmatpush1.bf16.msra.mxu0 0
  %130 = vmatprep.subr.bf16.mxu0 0
  %131 = vmatpush1.bf16.msra.mxu0 0
  %132 = vmatprep.subr.bf16.mxu0 0
  %133 = vmatpush1.bf16.msra.mxu0 0
  %134 = vmatprep.subr.bf16.mxu0 0
  %135 = vmatpush1.bf16.msra.mxu0 0
  %136 = vmatprep.subr.bf16.mxu0 0
  %137 = vmatpush1.bf16.msra.mxu0 0
  %138 = vmatprep.subr.bf16.mxu0 0
  %139 = vmatpush1.bf16.msra.mxu0 0
  %140 = vmatprep.subr.bf16.mxu0 0
  %141 = vmatpush1.bf16.msra.mxu0 0
  %142 = vmatprep.subr.bf16.mxu0 0
  %143 = vmatpush1.bf16.msra.mxu0 0
  %144 = vmatprep.mubr.bf16.mxu0 0
  %145 = vmatmul.mubr.bf16.gmra.mrb[0].mxu0 %v89
  %v146 = vpop.f32.mrb[0].mxu0
  %v147 = vadd.f32 %v40, %v146
  %v148 = vpop.f32.mrb[0].mxu0
  %v149 = vpop.f32.mrb[0].mxu0
  %v150 = vadd.f32 %v40, %v149
  %v151 = vpop.f32.mrb[0].mxu0
  %152 = vmatprep.mubr.bf16.mxu0 0
  %153 = vmatmul.mubr.bf16.gmra.mrb[0].mxu0 %v92
  %v154 = vpop.f32.mrb[0].mxu0
  %v155 = vadd.f32 %v40, %v154
  %v156 = vpop.f32.mrb[0].mxu0
  %v157 = vpop.f32.mrb[0].mxu0
  %v158 = vadd.f32 %v40, %v157
  %v159 = vpop.f32.mrb[0].mxu0
  %160 = vmatprep.mubr.bf16.mxu0 0
  %161 = vmatmul.mubr.bf16.gmra.mrb[0].mxu0 %v95
  %v162 = vpop.f32.mrb[0].mxu0
  %v163 = vadd.f32 %v40, %v162
  %v164 = vpop.f32.mrb[0].mxu0
  %v165 = vpop.f32.mrb[0].mxu0
  %v166 = vadd.f32 %v40, %v165
  %v167 = vpop.f32.mrb[0].mxu0
  %168 = vmatprep.mubr.bf16.mxu0 0
  %169 = vmatmul.mubr.bf16.gmra.mrb[0].mxu0 %v98
  %v170 = vpop.f32.mrb[0].mxu0
  %v171 = vadd.f32 %v40, %v170
  %v172 = vpop.f32.mrb[0].mxu0
  %v173 = vpop.f32.mrb[0].mxu0
  %v174 = vadd.f32 %v40, %v173
  %v175 = vpop.f32.mrb[0].mxu0
  %176 = vmatprep.mubr.bf16.mxu0 0
  %177 = vmatmul.mubr.bf16.gmra.mrb[0].mxu0 %v101
  %v178 = vpop.f32.mrb[0].mxu0
  %v179 = vadd.f32 %v40, %v178
  %v180 = vpop.f32.mrb[0].mxu0
  %v181 = vpop.f32.mrb[0].mxu0
  %v182 = vadd.f32 %v40, %v181
  %v183 = vpop.f32.mrb[0].mxu0
  %184 = vmatprep.mubr.bf16.mxu0 0
  %185 = vmatmul.mubr.bf16.gmra.mrb[0].mxu0 %v104
  %v186 = vpop.f32.mrb[0].mxu0
  %v187 = vadd.f32 %v40, %v186
  %v188 = vpop.f32.mrb[0].mxu0
  %v189 = vpop.f32.mrb[0].mxu0
  %v190 = vadd.f32 %v40, %v189
  %v191 = vpop.f32.mrb[0].mxu0
  %192 = vmatprep.mubr.bf16.mxu0 0
  %193 = vmatmul.mubr.bf16.gmra.mrb[0].mxu0 %v107
  %v194 = vpop.f32.mrb[0].mxu0
  %v195 = vadd.f32 %v40, %v194
  %v196 = vpop.f32.mrb[0].mxu0
  %v197 = vpop.f32.mrb[0].mxu0
  %v198 = vadd.f32 %v40, %v197
  %v199 = vpop.f32.mrb[0].mxu0
  %200 = vmatprep.mubr.bf16.mxu0 0
  %201 = vmatmul.mubr.bf16.gmra.mrb[0].mxu0 %v110
  %v202 = vpop.f32.mrb[0].mxu0
  %v203 = vadd.f32 %v40, %v202
  %v204 = vpop.f32.mrb[0].mxu0
  %v205 = vpop.f32.mrb[0].mxu0
  %v206 = vadd.f32 %v40, %v205
  %v207 = vpop.f32.mrb[0].mxu0
  %208 = vdwg.mxu0
  %v209 = vmax.f32 %v147, 0.0
  %v210 = vmax.f32 %v150, 0.0
  %v211 = vmax.f32 %v155, 0.0
  %v212 = vmax.f32 %v158, 0.0
  %v213 = vmax.f32 %v163, 0.0
  %v214 = vmax.f32 %v166, 0.0
  %v215 = vmax.f32 %v171, 0.0
  %v216 = vmax.f32 %v174, 0.0
  %v217 = vmax.f32 %v179, 0.0
  %v218 = vmax.f32 %v182, 0.0
  %v219 = vmax.f32 %v187, 0.0
  %v220 = vmax.f32 %v190, 0.0
  %v221 = vmax.f32 %v195, 0.0
  %v222 = vmax.f32 %v198, 0.0
  %v223 = vmax.f32 %v203, 0.0
  %v224 = vmax.f32 %v206, 0.0
  %vm225 = vcmask 261120
  %v226 = vsel %vm225, %v209, 0.0
  %v227 = vsel %vm225, %v210, 0.0
  %v228 = vadd.f32 %v226, %v227
  %v229 = vsel %vm225, %v211, 0.0
  %v230 = vadd.f32 %v228, %v229
  %v231 = vsel %vm225, %v212, 0.0
  %v232 = vadd.f32 %v230, %v231
  %v233 = vsel %vm225, %v213, 0.0
  %v234 = vadd.f32 %v232, %v233
  %v235 = vsel %vm225, %v214, 0.0
  %v236 = vadd.f32 %v234, %v235
  %v237 = vsel %vm225, %v215, 0.0
  %v238 = vadd.f32 %v236, %v237
  %v239 = vsel %vm225, %v216, 0.0
  %v240 = vadd.f32 %v238, %v239
  %v241 = vrot.slane %v240, 4
  %v242 = vadd.f32 %v240, %v241
  %v243 = vrot.slane %v242, 2
  %v244 = vadd.f32 %v242, %v243
  %v245 = vrot.slane %v244, 1
  %v246 = vadd.f32 %v244, %v245
  %v247 = vsel %vm225, %v217, 0.0
  %v248 = vsel %vm225, %v218, 0.0
  %v249 = vadd.f32 %v247, %v248
  %v250 = vsel %vm225, %v219, 0.0
  %v251 = vadd.f32 %v249, %v250
  %v252 = vsel %vm225, %v220, 0.0
  %v253 = vadd.f32 %v251, %v252
  %v254 = vsel %vm225, %v221, 0.0
  %v255 = vadd.f32 %v253, %v254
  %v256 = vsel %vm225, %v222, 0.0
  %v257 = vadd.f32 %v255, %v256
  %v258 = vsel %vm225, %v223, 0.0
  %v259 = vadd.f32 %v257, %v258
  %v260 = vsel %vm225, %v224, 0.0
  %v261 = vadd.f32 %v259, %v260
  %v262 = vrot.slane %v261, 4
  %v263 = vadd.f32 %v261, %v262
  %v264 = vrot.slane %v263, 2
  %v265 = vadd.f32 %v263, %v264
  %v266 = vrot.slane %v265, 1
  %v267 = vadd.f32 %v265, %v266
  %v268 = vrcp.pop 64.0
  %v269 = vmul.f32 %v246, %v268
  %v270 = vmul.f32 %v267, %v268
  %v271 = vpack.c.bf16 %v210, %v209
  %v272 = vpack.c.bf16 %v212, %v211
  %v273 = vpack.c.bf16 %v214, %v213
  %v274 = vpack.c.bf16 %v216, %v215
  %v275 = vpack.c.bf16 %v218, %v217
  %v276 = vpack.c.bf16 %v220, %v219
  %v277 = vpack.c.bf16 %v222, %v221
  %v278 = vpack.c.bf16 %v224, %v223
  %v279 = vld [vmem:[%s2 + $0x30] sm:$0xf]
  %v280 = vld [vmem:[%s2 + $0x34] sm:$0xf]
  %v281 = vld [vmem:[%s2 + $0x38] sm:$0xf]
  %v282 = vld [vmem:[%s2 + $0x3c] sm:$0xf]
  %v287 = vunpack.c.l.b16 %v279
  %v288 = vunpack.c.l.b16 %v280
  %v289 = vunpack.c.l.b16 %v281
  %v290 = vunpack.c.l.b16 %v282
  %v291 = vpack.c.b16 %v288, %v287
  %v292 = vpack.c.b16 %v290, %v289
  %v296 = vsel %vm225, %v271, 0
  %v299 = vsel %vm225, %v272, 0
  %v302 = vsel %vm225, %v273, 0
  %v305 = vsel %vm225, %v274, 0
  %v308 = vsel %vm225, %v275, 0
  %v311 = vsel %vm225, %v276, 0
  %v314 = vsel %vm225, %v277, 0
  %v317 = vsel %vm225, %v278, 0
  %319 = vmatprep.subr.bf16.mxu0 0
  %320 = vmatpush1.bf16.msra.mxu0 %v291
  %321 = vmatprep.subr.bf16.mxu0 0
  %322 = vmatpush1.bf16.msra.mxu0 %v292
  %323 = vmatprep.subr.bf16.mxu0 0
  %324 = vmatpush1.bf16.msra.mxu0 0
  %325 = vmatprep.subr.bf16.mxu0 0
  %326 = vmatpush1.bf16.msra.mxu0 0
  %327 = vmatprep.subr.bf16.mxu0 0
  %328 = vmatpush1.bf16.msra.mxu0 0
  %329 = vmatprep.subr.bf16.mxu0 0
  %330 = vmatpush1.bf16.msra.mxu0 0
  %331 = vmatprep.subr.bf16.mxu0 0
  %332 = vmatpush1.bf16.msra.mxu0 0
  %333 = vmatprep.subr.bf16.mxu0 0
  %334 = vmatpush1.bf16.msra.mxu0 0
  %335 = vmatprep.subr.bf16.mxu0 0
  %336 = vmatpush1.bf16.msra.mxu0 0
  %337 = vmatprep.subr.bf16.mxu0 0
  %338 = vmatpush1.bf16.msra.mxu0 0
  %339 = vmatprep.subr.bf16.mxu0 0
  %340 = vmatpush1.bf16.msra.mxu0 0
  %341 = vmatprep.subr.bf16.mxu0 0
  %342 = vmatpush1.bf16.msra.mxu0 0
  %343 = vmatprep.subr.bf16.mxu0 0
  %344 = vmatpush1.bf16.msra.mxu0 0
  %345 = vmatprep.subr.bf16.mxu0 0
  %346 = vmatpush1.bf16.msra.mxu0 0
  %347 = vmatprep.subr.bf16.mxu0 0
  %348 = vmatpush1.bf16.msra.mxu0 0
  %349 = vmatprep.subr.bf16.mxu0 0
  %350 = vmatpush1.bf16.msra.mxu0 0
  %351 = vmatprep.mubr.bf16.mxu0 0
  %352 = vmatmul.mubr.bf16.gmra.mrb[0].mxu0 %v296
  %v353 = vpop.f32.mrb[0].mxu0
  %v354 = vadd.f32 0.0, %v353
  %v355 = vpop.f32.mrb[0].mxu0
  %v356 = vpop.f32.mrb[0].mxu0
  %v357 = vadd.f32 0.0, %v356
  %v358 = vpop.f32.mrb[0].mxu0
  %359 = vmatprep.mubr.bf16.mxu0 0
  %360 = vmatmul.mubr.bf16.gmra.mrb[0].mxu0 %v299
  %v361 = vpop.f32.mrb[0].mxu0
  %v362 = vadd.f32 0.0, %v361
  %v363 = vpop.f32.mrb[0].mxu0
  %v364 = vpop.f32.mrb[0].mxu0
  %v365 = vadd.f32 0.0, %v364
  %v366 = vpop.f32.mrb[0].mxu0
  %367 = vmatprep.mubr.bf16.mxu0 0
  %368 = vmatmul.mubr.bf16.gmra.mrb[0].mxu0 %v302
  %v369 = vpop.f32.mrb[0].mxu0
  %v370 = vadd.f32 0.0, %v369
  %v371 = vpop.f32.mrb[0].mxu0
  %v372 = vpop.f32.mrb[0].mxu0
  %v373 = vadd.f32 0.0, %v372
  %v374 = vpop.f32.mrb[0].mxu0
  %375 = vmatprep.mubr.bf16.mxu0 0
  %376 = vmatmul.mubr.bf16.gmra.mrb[0].mxu0 %v305
  %v377 = vpop.f32.mrb[0].mxu0
  %v378 = vadd.f32 0.0, %v377
  %v379 = vpop.f32.mrb[0].mxu0
  %v380 = vpop.f32.mrb[0].mxu0
  %v381 = vadd.f32 0.0, %v380
  %v382 = vpop.f32.mrb[0].mxu0
  %383 = vmatprep.mubr.bf16.mxu0 0
  %384 = vmatmul.mubr.bf16.gmra.mrb[0].mxu0 %v308
  %v385 = vpop.f32.mrb[0].mxu0
  %v386 = vadd.f32 0.0, %v385
  %v387 = vpop.f32.mrb[0].mxu0
  %v388 = vpop.f32.mrb[0].mxu0
  %v389 = vadd.f32 0.0, %v388
  %v390 = vpop.f32.mrb[0].mxu0
  %391 = vmatprep.mubr.bf16.mxu0 0
  %392 = vmatmul.mubr.bf16.gmra.mrb[0].mxu0 %v311
  %v393 = vpop.f32.mrb[0].mxu0
  %v394 = vadd.f32 0.0, %v393
  %v395 = vpop.f32.mrb[0].mxu0
  %v396 = vpop.f32.mrb[0].mxu0
  %v397 = vadd.f32 0.0, %v396
  %v398 = vpop.f32.mrb[0].mxu0
  %399 = vmatprep.mubr.bf16.mxu0 0
  %400 = vmatmul.mubr.bf16.gmra.mrb[0].mxu0 %v314
  %v401 = vpop.f32.mrb[0].mxu0
  %v402 = vadd.f32 0.0, %v401
  %v403 = vpop.f32.mrb[0].mxu0
  %v404 = vpop.f32.mrb[0].mxu0
  %v405 = vadd.f32 0.0, %v404
  %v406 = vpop.f32.mrb[0].mxu0
  %407 = vmatprep.mubr.bf16.mxu0 0
  %408 = vmatmul.mubr.bf16.gmra.mrb[0].mxu0 %v317
  %v409 = vpop.f32.mrb[0].mxu0
  %v410 = vadd.f32 0.0, %v409
  %v411 = vpop.f32.mrb[0].mxu0
  %v412 = vpop.f32.mrb[0].mxu0
  %v413 = vadd.f32 0.0, %v412
  %v414 = vpop.f32.mrb[0].mxu0
  %415 = vdwg.mxu0
  %v416 = vpack.c.bf16 %v357, %v354
  %v417 = vpack.c.bf16 %v365, %v362
  %v418 = vpack.c.bf16 %v373, %v370
  %v419 = vpack.c.bf16 %v381, %v378
  %v420 = vpack.c.bf16 %v389, %v386
  %v421 = vpack.c.bf16 %v397, %v394
  %v422 = vpack.c.bf16 %v405, %v402
  %v423 = vpack.c.bf16 %v413, %v410
  %v424 = vld [vmem:[%s2 + $0x8] sm:$0xf]
  %v425 = vld [vmem:[%s2 + $0xc] sm:$0xf]
  %v426 = vld [vmem:[%s2 + $0x10] sm:$0xf]
  %v427 = vld [vmem:[%s2 + $0x14] sm:$0xf]
  %v428 = vld [vmem:[%s3 + $0x1] sm:$0x1]
  %v429 = vpack.c.bf16 %v269, %v269
  %v430 = vpack.c.bf16 %v270, %v270
  %v431 = vlaneseq
  %v432 = vshrl.u32 %v431, 7
  %v433 = vsub.s32 0, %v432
  %v434 = vrot.slane %v428, %v433
  %v437 = vunpack.c.l.b16 %v429
  %v438 = vunpack.c.l.b16 %v430
  %vm439 = vcmask 1041409
  %v440 = vsel %vm439, %v438, %v437
  %v441 = vpack.c.b16 %v440, %v440
  %v446 = vunpack.c.l.b16 %v424
  %v447 = vunpack.c.l.b16 %v425
  %v448 = vunpack.c.l.b16 %v426
  %v449 = vunpack.c.l.b16 %v427
  %v450 = vpack.c.b16 %v447, %v446
  %v451 = vpack.c.b16 %v449, %v448
  %v455 = vsel %vm225, %v441, 0
  %457 = vmatprep.subr.bf16.mxu0 0
  %458 = vmatpush1.bf16.msra.mxu0 %v450
  %459 = vmatprep.subr.bf16.mxu0 0
  %460 = vmatpush1.bf16.msra.mxu0 %v451
  %461 = vmatprep.subr.bf16.mxu0 0
  %462 = vmatpush1.bf16.msra.mxu0 0
  %463 = vmatprep.subr.bf16.mxu0 0
  %464 = vmatpush1.bf16.msra.mxu0 0
  %465 = vmatprep.subr.bf16.mxu0 0
  %466 = vmatpush1.bf16.msra.mxu0 0
  %467 = vmatprep.subr.bf16.mxu0 0
  %468 = vmatpush1.bf16.msra.mxu0 0
  %469 = vmatprep.subr.bf16.mxu0 0
  %470 = vmatpush1.bf16.msra.mxu0 0
  %471 = vmatprep.subr.bf16.mxu0 0
  %472 = vmatpush1.bf16.msra.mxu0 0
  %473 = vmatprep.subr.bf16.mxu0 0
  %474 = vmatpush1.bf16.msra.mxu0 0
  %475 = vmatprep.subr.bf16.mxu0 0
  %476 = vmatpush1.bf16.msra.mxu0 0
  %477 = vmatprep.subr.bf16.mxu0 0
  %478 = vmatpush1.bf16.msra.mxu0 0
  %479 = vmatprep.subr.bf16.mxu0 0
  %480 = vmatpush1.bf16.msra.mxu0 0
  %481 = vmatprep.subr.bf16.mxu0 0
  %482 = vmatpush1.bf16.msra.mxu0 0
  %483 = vmatprep.subr.bf16.mxu0 0
  %484 = vmatpush1.bf16.msra.mxu0 0
  %485 = vmatprep.subr.bf16.mxu0 0
  %486 = vmatpush1.bf16.msra.mxu0 0
  %487 = vmatprep.subr.bf16.mxu0 0
  %488 = vmatpush1.bf16.msra.mxu0 0
  %489 = vmatprep.mubr.bf16.mxu0 0
  %490 = vmatmul.mubr.bf16.gmra.mrb[0].mxu0 %v455
  %v491 = vpop.f32.mrb[0].mxu0
  %v492 = vadd.f32 %v434, %v491
  %v493 = vpop.f32.mrb[0].mxu0
  %v494 = vpop.f32.mrb[0].mxu0
  %v495 = vpop.f32.mrb[0].mxu0
  %496 = vdwg.mxu0
  %v497 = vtanh.pop %v492
  %v498 = vld [vmem:[%s2 + $0x18] sm:$0xf]
  %v499 = vld [vmem:[%s2 + $0x1c] sm:$0xf]
  %v500 = vld [vmem:[%s2 + $0x20] sm:$0xf]
  %v501 = vld [vmem:[%s2 + $0x24] sm:$0xf]
  %v502 = vld [vmem:[%s2 + $0x28] sm:$0xf]
  %v503 = vld [vmem:[%s2 + $0x2c] sm:$0xf]
  %v504 = vld [vmem:[%s2 + $0x40] sm:$0xf]
  %v505 = vld [vmem:[%s2 + $0x44] sm:$0xf]
  %v506 = vld [vmem:[%s2 + $0x48] sm:$0xf]
  %v507 = vld [vmem:[%s2 + $0x4c] sm:$0xf]
  %v508 = vld [vmem:[%s2 + $0x50] sm:$0xf]
  %v509 = vld [vmem:[%s2 + $0x54] sm:$0xf]
  %v510 = vld [vmem:[%s3 + $0x2] sm:$0x1]
  %v511 = vlaneseq
  %v512 = vshrl.u32 %v511, 7
  %v513 = vsub.s32 0, %v512
  %v514 = vrot.slane %v510, %v513
  %v515 = vld [vmem:[%s3 + $0x3] sm:$0x1]
  %v516 = vlaneseq
  %v517 = vshrl.u32 %v516, 7
  %v518 = vsub.s32 0, %v517
  %v519 = vrot.slane %v515, %v518
  %v520 = vld [vmem:[%s3 + $0x4] sm:$0x1]
  %v521 = vpack.c.bf16 %v497, %v497
  %v524 = vunpack.c.l.b16 %v502
  %v525 = vunpack.c.l.b16 %v503
  %v526 = vpack.c.b16 %v525, %v524
  %v529 = vsel %vm87, %v521, 0
  %531 = vmatprep.subr.bf16.mxu0 0
  %532 = vmatpush1.bf16.msra.mxu0 %v526
  %533 = vmatprep.subr.bf16.mxu0 0
  %534 = vmatpush1.bf16.msra.mxu0 0
  %535 = vmatprep.subr.bf16.mxu0 0
  %536 = vmatpush1.bf16.msra.mxu0 0
  %537 = vmatprep.subr.bf16.mxu0 0
  %538 = vmatpush1.bf16.msra.mxu0 0
  %539 = vmatprep.subr.bf16.mxu0 0
  %540 = vmatpush1.bf16.msra.mxu0 0
  %541 = vmatprep.subr.bf16.mxu0 0
  %542 = vmatpush1.bf16.msra.mxu0 0
  %543 = vmatprep.subr.bf16.mxu0 0
  %544 = vmatpush1.bf16.msra.mxu0 0
  %545 = vmatprep.subr.bf16.mxu0 0
  %546 = vmatpush1.bf16.msra.mxu0 0
  %547 = vmatprep.subr.bf16.mxu0 0
  %548 = vmatpush1.bf16.msra.mxu0 0
  %549 = vmatprep.subr.bf16.mxu0 0
  %550 = vmatpush1.bf16.msra.mxu0 0
  %551 = vmatprep.subr.bf16.mxu0 0
  %552 = vmatpush1.bf16.msra.mxu0 0
  %553 = vmatprep.subr.bf16.mxu0 0
  %554 = vmatpush1.bf16.msra.mxu0 0
  %555 = vmatprep.subr.bf16.mxu0 0
  %556 = vmatpush1.bf16.msra.mxu0 0
  %557 = vmatprep.subr.bf16.mxu0 0
  %558 = vmatpush1.bf16.msra.mxu0 0
  %559 = vmatprep.subr.bf16.mxu0 0
  %560 = vmatpush1.bf16.msra.mxu0 0
  %561 = vmatprep.subr.bf16.mxu0 0
  %562 = vmatpush1.bf16.msra.mxu0 0
  %563 = vmatprep.mubr.bf16.mxu0 0
  %564 = vmatmul.mubr.bf16.gmra.mrb[0].mxu0 %v529
  %v565 = vpop.f32.mrb[0].mxu0
  %v566 = vadd.f32 %v519, %v565
  %v567 = vpop.f32.mrb[0].mxu0
  %v568 = vpop.f32.mrb[0].mxu0
  %v569 = vpop.f32.mrb[0].mxu0
  %570 = vdwg.mxu0
  %v571 = vld [vmem:[%s1] sm:$0x1]
  %v574 = vsel %vm87, %v571, 0
  %v579 = vunpack.c.l.b16 %v498
  %v580 = vunpack.c.l.b16 %v499
  %v581 = vunpack.c.l.b16 %v500
  %v582 = vunpack.c.l.b16 %v501
  %v583 = vpack.c.b16 %v580, %v579
  %v584 = vpack.c.b16 %v582, %v581
  %v587 = vsel %vm225, %v574, 0
  %589 = vmatprep.subr.bf16.mxu0 0
  %590 = vmatpush1.bf16.msra.mxu0 %v583
  %591 = vmatprep.subr.bf16.mxu0 0
  %592 = vmatpush1.bf16.msra.mxu0 %v584
  %593 = vmatprep.subr.bf16.mxu0 0
  %594 = vmatpush1.bf16.msra.mxu0 0
  %595 = vmatprep.subr.bf16.mxu0 0
  %596 = vmatpush1.bf16.msra.mxu0 0
  %597 = vmatprep.subr.bf16.mxu0 0
  %598 = vmatpush1.bf16.msra.mxu0 0
  %599 = vmatprep.subr.bf16.mxu0 0
  %600 = vmatpush1.bf16.msra.mxu0 0
  %601 = vmatprep.subr.bf16.mxu0 0
  %602 = vmatpush1.bf16.msra.mxu0 0
  %603 = vmatprep.subr.bf16.mxu0 0
  %604 = vmatpush1.bf16.msra.mxu0 0
  %605 = vmatprep.subr.bf16.mxu0 0
  %606 = vmatpush1.bf16.msra.mxu0 0
  %607 = vmatprep.subr.bf16.mxu0 0
  %608 = vmatpush1.bf16.msra.mxu0 0
  %609 = vmatprep.subr.bf16.mxu0 0
  %610 = vmatpush1.bf16.msra.mxu0 0
  %611 = vmatprep.subr.bf16.mxu0 0
  %612 = vmatpush1.bf16.msra.mxu0 0
  %613 = vmatprep.subr.bf16.mxu0 0
  %614 = vmatpush1.bf16.msra.mxu0 0
  %615 = vmatprep.subr.bf16.mxu0 0
  %616 = vmatpush1.bf16.msra.mxu0 0
  %617 = vmatprep.subr.bf16.mxu0 0
  %618 = vmatpush1.bf16.msra.mxu0 0
  %619 = vmatprep.subr.bf16.mxu0 0
  %620 = vmatpush1.bf16.msra.mxu0 0
  %621 = vmatprep.mubr.bf16.mxu0 0
  %622 = vmatmul.mubr.bf16.gmra.mrb[0].mxu0 %v587
  %v623 = vpop.f32.mrb[0].mxu0
  %v624 = vadd.f32 %v566, %v623
  %v625 = vpop.f32.mrb[0].mxu0
  %v626 = vpop.f32.mrb[0].mxu0
  %v627 = vpop.f32.mrb[0].mxu0
  %628 = vdwg.mxu0
  %v629 = vadd.f32 %v624, %v514
  %v630 = vxor.u32 %v629, 2147483648
  %v631 = vmul.f32 %v630, 1.442695
  %v632 = vpow.pop %v631
  %v633 = vadd.f32 %v632, 1.0
  %v634 = vrcp.pop %v633
  %v635 = vmul.f32 1.0, %v634
  %v636 = vtanh.pop %v629
  %v637 = vmul.f32 %v635, 0.0
  %639 = vrot.lane.b32.xlu0 %v636, 96
  %v640 = vpop.permute.xlu0 %639
  %v642 = vmul.f32 %v635, %v640
  %644 = vrot.lane.b32.xlu0 %v642, 16
  %v645 = vpop.permute.xlu0 %644
  %v647 = vadd.f32 %v637, %v645
  %v648 = vtanh.pop %v647
  %650 = vrot.lane.b32.xlu0 %v648, 32
  %v651 = vpop.permute.xlu0 %650
  %v653 = vmul.f32 %v635, %v651
  %v654 = vpack.c.bf16 %v653, %v653
  %656 = vrot.lane.b32.xlu0 %v654, 80
  %v657 = vpop.permute.xlu0 %656
  %v659 = vsel %vm87, %v657, 0
  %661 = vmatprep.subr.bf16.mxu0 0
  %662 = vmatpush1.bf16.msra.mxu0 %v526
  %663 = vmatprep.subr.bf16.mxu0 0
  %664 = vmatpush1.bf16.msra.mxu0 0
  %665 = vmatprep.subr.bf16.mxu0 0
  %666 = vmatpush1.bf16.msra.mxu0 0
  %667 = vmatprep.subr.bf16.mxu0 0
  %668 = vmatpush1.bf16.msra.mxu0 0
  %669 = vmatprep.subr.bf16.mxu0 0
  %670 = vmatpush1.bf16.msra.mxu0 0
  %671 = vmatprep.subr.bf16.mxu0 0
  %672 = vmatpush1.bf16.msra.mxu0 0
  %673 = vmatprep.subr.bf16.mxu0 0
  %674 = vmatpush1.bf16.msra.mxu0 0
  %675 = vmatprep.subr.bf16.mxu0 0
  %676 = vmatpush1.bf16.msra.mxu0 0
  %677 = vmatprep.subr.bf16.mxu0 0
  %678 = vmatpush1.bf16.msra.mxu0 0
  %679 = vmatprep.subr.bf16.mxu0 0
  %680 = vmatpush1.bf16.msra.mxu0 0
  %681 = vmatprep.subr.bf16.mxu0 0
  %682 = vmatpush1.bf16.msra.mxu0 0
  %683 = vmatprep.subr.bf16.mxu0 0
  %684 = vmatpush1.bf16.msra.mxu0 0
  %685 = vmatprep.subr.bf16.mxu0 0
  %686 = vmatpush1.bf16.msra.mxu0 0
  %687 = vmatprep.subr.bf16.mxu0 0
  %688 = vmatpush1.bf16.msra.mxu0 0
  %689 = vmatprep.subr.bf16.mxu0 0
  %690 = vmatpush1.bf16.msra.mxu0 0
  %691 = vmatprep.subr.bf16.mxu0 0
  %692 = vmatpush1.bf16.msra.mxu0 0
  %693 = vmatprep.mubr.bf16.mxu0 0
  %694 = vmatmul.mubr.bf16.gmra.mrb[0].mxu0 %v659
  %v695 = vpop.f32.mrb[0].mxu0
  %v696 = vadd.f32 %v519, %v695
  %v697 = vpop.f32.mrb[0].mxu0
  %v698 = vpop.f32.mrb[0].mxu0
  %v699 = vpop.f32.mrb[0].mxu0
  %700 = vdwg.mxu0
  %v701 = vpack.c.bf16 %v696, %v696
  %v704 = vunpack.c.l.s4 1966171168
  %v705 = vunpack.c.0.s8 %v704
  %v706 = vlaneseq
  %v707 = vshrl.u32 %v706, 7
  %v708 = vsub.s32 %v705, %v707
  %v709 = vrot.slane %v701, %v708
  %v711 = vunpack.c.l.s4 1966171168
  %v712 = vunpack.c.0.s8 %v711
  %v713 = vlaneseq
  %v714 = vshrl.u32 %v713, 7
  %v715 = vsub.s32 %v712, %v714
  %v716 = vrot.slane %v709, %v715
  %v717 = vunpack.i.l.s16 %v716
  %v718 = vunpack.i.h.s16 %v716
  %v719 = vpack.i.b16 %v717, %v717
  %v720 = vpack.i.b16 %v718, %v718
  %v721 = vlaneseq
  %v722 = vshrl.u32 %v721, 7
  %v723 = vsub.s32 0, %v722
  %v724 = vrot.slane %v719, %v723
  %v725 = vlaneseq
  %v726 = vshrl.u32 %v725, 7
  %v727 = vsub.s32 0, %v726
  %v728 = vrot.slane %v720, %v727
  %v730 = vpack.i.b16 %v724, %v724
  %v732 = vlaneseq
  %v733 = vshrl.u32 %v732, 7
  %v734 = vsub.s32 0, %v733
  %v735 = vrot.slane %v730, %v734
  %v737 = vpack.i.b16 %v728, %v728
  %v739 = vlaneseq
  %v740 = vshrl.u32 %v739, 7
  %v741 = vsub.s32 0, %v740
  %v742 = vrot.slane %v737, %v741
  %745 = vrot.lane.b32.xlu0 %v735, 64
  %v746 = vpop.permute.xlu0 %745
  %747 = vrot.lane.b32.xlu0 %v742, 64
  %v748 = vpop.permute.xlu0 %747
  %v751 = vadd.bf16 %v416, %v746
  %v752 = vadd.bf16 %v417, %v746
  %v753 = vadd.bf16 %v418, %v746
  %v754 = vadd.bf16 %v419, %v746
  %v755 = vadd.bf16 %v420, %v748
  %v756 = vadd.bf16 %v421, %v748
  %v757 = vadd.bf16 %v422, %v748
  %v758 = vadd.bf16 %v423, %v748
  %v759 = vtanh.bf16.pop %v751
  %v760 = vtanh.bf16.pop %v752
  %v761 = vtanh.bf16.pop %v753
  %v762 = vtanh.bf16.pop %v754
  %v763 = vtanh.bf16.pop %v755
  %v764 = vtanh.bf16.pop %v756
  %v765 = vtanh.bf16.pop %v757
  %v766 = vtanh.bf16.pop %v758
  %v767 = vunpack.c.l.bf16 %v759
  %v768 = vunpack.c.h.bf16 %v759
  %v769 = vunpack.c.l.bf16 %v760
  %v770 = vunpack.c.h.bf16 %v760
  %v771 = vunpack.c.l.bf16 %v761
  %v772 = vunpack.c.h.bf16 %v761
  %v773 = vunpack.c.l.bf16 %v762
  %v774 = vunpack.c.h.bf16 %v762
  %v775 = vunpack.c.l.bf16 %v763
  %v776 = vunpack.c.h.bf16 %v763
  %v777 = vunpack.c.l.bf16 %v764
  %v778 = vunpack.c.h.bf16 %v764
  %v779 = vunpack.c.l.bf16 %v765
  %v780 = vunpack.c.h.bf16 %v765
  %v781 = vunpack.c.l.bf16 %v766
  %v782 = vunpack.c.h.bf16 %v766
  %v783 = vlaneseq
  %v784 = vshrl.u32 %v783, 7
  %v785 = vsub.s32 0, %v784
  %v786 = vrot.slane %v520, %v785
  %v787 = vmul.f32 %v767, %v786
  %v788 = vmul.f32 %v768, %v786
  %v789 = vmul.f32 %v769, %v786
  %v790 = vmul.f32 %v770, %v786
  %v791 = vmul.f32 %v771, %v786
  %v792 = vmul.f32 %v772, %v786
  %v793 = vmul.f32 %v773, %v786
  %v794 = vmul.f32 %v774, %v786
  %v795 = vmul.f32 %v775, %v786
  %v796 = vmul.f32 %v776, %v786
  %v797 = vmul.f32 %v777, %v786
  %v798 = vmul.f32 %v778, %v786
  %v799 = vmul.f32 %v779, %v786
  %v800 = vmul.f32 %v780, %v786
  %v801 = vmul.f32 %v781, %v786
  %v802 = vmul.f32 %v782, %v786
  %v803 = vsel %vm225, %v787, 0.0
  %804 = vadd.xlane.f32.xlu0 %v803
  %v805 = vpop.xlane.xlu0 %804
  %v806 = vsel %vm225, %v788, 0.0
  %807 = vadd.xlane.f32.xlu0 %v806
  %v808 = vpop.xlane.xlu0 %807
  %v809 = vsel %vm225, %v789, 0.0
  %810 = vadd.xlane.f32.xlu0 %v809
  %v811 = vpop.xlane.xlu0 %810
  %v812 = vsel %vm225, %v790, 0.0
  %813 = vadd.xlane.f32.xlu0 %v812
  %v814 = vpop.xlane.xlu0 %813
  %v815 = vsel %vm225, %v791, 0.0
  %816 = vadd.xlane.f32.xlu0 %v815
  %v817 = vpop.xlane.xlu0 %816
  %v818 = vsel %vm225, %v792, 0.0
  %819 = vadd.xlane.f32.xlu0 %v818
  %v820 = vpop.xlane.xlu0 %819
  %v821 = vsel %vm225, %v793, 0.0
  %822 = vadd.xlane.f32.xlu0 %v821
  %v823 = vpop.xlane.xlu0 %822
  %v824 = vsel %vm225, %v794, 0.0
  %825 = vadd.xlane.f32.xlu0 %v824
  %v826 = vpop.xlane.xlu0 %825
  %v827 = vsel %vm225, %v795, 0.0
  %828 = vadd.xlane.f32.xlu0 %v827
  %v829 = vpop.xlane.xlu0 %828
  %v830 = vsel %vm225, %v796, 0.0
  %831 = vadd.xlane.f32.xlu0 %v830
  %v832 = vpop.xlane.xlu0 %831
  %v833 = vsel %vm225, %v797, 0.0
  %834 = vadd.xlane.f32.xlu0 %v833
  %v835 = vpop.xlane.xlu0 %834
  %v836 = vsel %vm225, %v798, 0.0
  %837 = vadd.xlane.f32.xlu0 %v836
  %v838 = vpop.xlane.xlu0 %837
  %v839 = vsel %vm225, %v799, 0.0
  %840 = vadd.xlane.f32.xlu0 %v839
  %v841 = vpop.xlane.xlu0 %840
  %v842 = vsel %vm225, %v800, 0.0
  %843 = vadd.xlane.f32.xlu0 %v842
  %v844 = vpop.xlane.xlu0 %843
  %v845 = vsel %vm225, %v801, 0.0
  %846 = vadd.xlane.f32.xlu0 %v845
  %v847 = vpop.xlane.xlu0 %846
  %v848 = vsel %vm225, %v802, 0.0
  %849 = vadd.xlane.f32.xlu0 %v848
  %v850 = vpop.xlane.xlu0 %849
  %v867 = vlaneseq
  %v868 = vand.u32 %v867, 127
  %v869 = vlaneseq
  %v870 = vshrl.u32 %v869, 7
  %v871 = vsub.s32 %v868, %v870
  %v872 = vrot.slane %v805, %v871
  %v873 = vadd.s32 %v868, 4294967288
  %v874 = vlaneseq
  %v875 = vshrl.u32 %v874, 7
  %v876 = vsub.s32 %v873, %v875
  %v877 = vrot.slane %v808, %v876
  %vm878 = vcmask 130112
  %v879 = vsel %vm878, %v877, %v872
  %v880 = vadd.s32 %v868, 4294967280
  %v881 = vlaneseq
  %v882 = vshrl.u32 %v881, 7
  %v883 = vsub.s32 %v880, %v882
  %v884 = vrot.slane %v811, %v883
  %vm885 = vcmask 195712
  %v886 = vsel %vm885, %v884, %v879
  %v887 = vadd.s32 %v868, 4294967272
  %v888 = vlaneseq
  %v889 = vshrl.u32 %v888, 7
  %v890 = vsub.s32 %v887, %v889
  %v891 = vrot.slane %v814, %v890
  %vm892 = vcmask 261312
  %v893 = vsel %vm892, %v891, %v886
  %v894 = vadd.s32 %v868, 4294967264
  %v895 = vlaneseq
  %v896 = vshrl.u32 %v895, 7
  %v897 = vsub.s32 %v894, %v896
  %v898 = vrot.slane %v817, %v897
  %vm899 = vcmask 326912
  %v900 = vsel %vm899, %v898, %v893
  %v901 = vadd.s32 %v868, 4294967256
  %v902 = vlaneseq
  %v903 = vshrl.u32 %v902, 7
  %v904 = vsub.s32 %v901, %v903
  %v905 = vrot.slane %v820, %v904
  %vm906 = vcmask 392512
  %v907 = vsel %vm906, %v905, %v900
  %v908 = vadd.s32 %v868, 4294967248
  %v909 = vlaneseq
  %v910 = vshrl.u32 %v909, 7
  %v911 = vsub.s32 %v908, %v910
  %v912 = vrot.slane %v823, %v911
  %vm913 = vcmask 458112
  %v914 = vsel %vm913, %v912, %v907
  %v915 = vadd.s32 %v868, 4294967240
  %v916 = vlaneseq
  %v917 = vshrl.u32 %v916, 7
  %v918 = vsub.s32 %v915, %v917
  %v919 = vrot.slane %v826, %v918
  %vm920 = vcmask 523712
  %v921 = vsel %vm920, %v919, %v914
  %v922 = vlaneseq
  %v923 = vshrl.u32 %v922, 7
  %v924 = vsub.s32 %v868, %v923
  %v925 = vrot.slane %v829, %v924
  %v926 = vlaneseq
  %v927 = vshrl.u32 %v926, 7
  %v928 = vsub.s32 %v873, %v927
  %v929 = vrot.slane %v832, %v928
  %v930 = vsel %vm878, %v929, %v925
  %v931 = vlaneseq
  %v932 = vshrl.u32 %v931, 7
  %v933 = vsub.s32 %v880, %v932
  %v934 = vrot.slane %v835, %v933
  %v935 = vsel %vm885, %v934, %v930
  %v936 = vlaneseq
  %v937 = vshrl.u32 %v936, 7
  %v938 = vsub.s32 %v887, %v937
  %v939 = vrot.slane %v838, %v938
  %v940 = vsel %vm892, %v939, %v935
  %v941 = vlaneseq
  %v942 = vshrl.u32 %v941, 7
  %v943 = vsub.s32 %v894, %v942
  %v944 = vrot.slane %v841, %v943
  %v945 = vsel %vm899, %v944, %v940
  %v946 = vlaneseq
  %v947 = vshrl.u32 %v946, 7
  %v948 = vsub.s32 %v901, %v947
  %v949 = vrot.slane %v844, %v948
  %v950 = vsel %vm906, %v949, %v945
  %v951 = vlaneseq
  %v952 = vshrl.u32 %v951, 7
  %v953 = vsub.s32 %v908, %v952
  %v954 = vrot.slane %v847, %v953
  %v955 = vsel %vm913, %v954, %v950
  %v956 = vlaneseq
  %v957 = vshrl.u32 %v956, 7
  %v958 = vsub.s32 %v915, %v957
  %v959 = vrot.slane %v850, %v958
  %v960 = vsel %vm920, %v959, %v955
  %v961 = vsel %vm439, %v960, %v921
  %vm963 = vcmask 517120
  %v964 = vsel %vm963, %v961, -inf
  %965 = vmax.xlane.f32.xlu0 %v964
  %v966 = vpop.xlane.xlu0 %965
  %v968 = vlaneseq
  %v969 = vshrl.u32 %v968, 7
  %v970 = vsub.s32 0, %v969
  %v971 = vrot.slane %v966, %v970
  %v972 = vlaneseq
  %v973 = vshrl.u32 %v972, 7
  %v974 = vsub.s32 1, %v973
  %v975 = vrot.slane %v966, %v974
  %v978 = vsub.f32 %v805, %v971
  %v979 = vsub.f32 %v808, %v971
  %v980 = vsub.f32 %v811, %v971
  %v981 = vsub.f32 %v814, %v971
  %v982 = vsub.f32 %v817, %v971
  %v983 = vsub.f32 %v820, %v971
  %v984 = vsub.f32 %v823, %v971
  %v985 = vsub.f32 %v826, %v971
  %v986 = vsub.f32 %v829, %v975
  %v987 = vsub.f32 %v832, %v975
  %v988 = vsub.f32 %v835, %v975
  %v989 = vsub.f32 %v838, %v975
  %v990 = vsub.f32 %v841, %v975
  %v991 = vsub.f32 %v844, %v975
  %v992 = vsub.f32 %v847, %v975
  %v993 = vsub.f32 %v850, %v975
  %v994 = vmul.f32 %v978, 1.442695
  %v995 = vpow.pop %v994
  %v996 = vmul.f32 %v979, 1.442695
  %v997 = vpow.pop %v996
  %v998 = vmul.f32 %v980, 1.442695
  %v999 = vpow.pop %v998
  %v1000 = vmul.f32 %v981, 1.442695
  %v1001 = vpow.pop %v1000
  %v1002 = vmul.f32 %v982, 1.442695
  %v1003 = vpow.pop %v1002
  %v1004 = vmul.f32 %v983, 1.442695
  %v1005 = vpow.pop %v1004
  %v1006 = vmul.f32 %v984, 1.442695
  %v1007 = vpow.pop %v1006
  %v1008 = vmul.f32 %v985, 1.442695
  %v1009 = vpow.pop %v1008
  %v1010 = vmul.f32 %v986, 1.442695
  %v1011 = vpow.pop %v1010
  %v1012 = vmul.f32 %v987, 1.442695
  %v1013 = vpow.pop %v1012
  %v1014 = vmul.f32 %v988, 1.442695
  %v1015 = vpow.pop %v1014
  %v1016 = vmul.f32 %v989, 1.442695
  %v1017 = vpow.pop %v1016
  %v1018 = vmul.f32 %v990, 1.442695
  %v1019 = vpow.pop %v1018
  %v1020 = vmul.f32 %v991, 1.442695
  %v1021 = vpow.pop %v1020
  %v1022 = vmul.f32 %v992, 1.442695
  %v1023 = vpow.pop %v1022
  %v1024 = vmul.f32 %v993, 1.442695
  %v1025 = vpow.pop %v1024
  %1042 = vset.pattern.permute.xlu0 0
  %1043 = vperm.xlu0 %1042, %v995
  %v1044 = vpop.permute.xlu0 %1043
  %1045 = vset.pattern.permute.xlu0 0
  %1046 = vperm.xlu0 %1045, %v997
  %v1047 = vpop.permute.xlu0 %1046
  %1048 = vset.pattern.permute.xlu0 0
  %1049 = vperm.xlu0 %1048, %v999
  %v1050 = vpop.permute.xlu0 %1049
  %1051 = vset.pattern.permute.xlu0 0
  %1052 = vperm.xlu0 %1051, %v1001
  %v1053 = vpop.permute.xlu0 %1052
  %1054 = vset.pattern.permute.xlu0 0
  %1055 = vperm.xlu0 %1054, %v1003
  %v1056 = vpop.permute.xlu0 %1055
  %1057 = vset.pattern.permute.xlu0 0
  %1058 = vperm.xlu0 %1057, %v1005
  %v1059 = vpop.permute.xlu0 %1058
  %1060 = vset.pattern.permute.xlu0 0
  %1061 = vperm.xlu0 %1060, %v1007
  %v1062 = vpop.permute.xlu0 %1061
  %1063 = vset.pattern.permute.xlu0 0
  %1064 = vperm.xlu0 %1063, %v1009
  %v1065 = vpop.permute.xlu0 %1064
  %1066 = vset.pattern.permute.xlu0 0
  %1067 = vperm.xlu0 %1066, %v1011
  %v1068 = vpop.permute.xlu0 %1067
  %1069 = vset.pattern.permute.xlu0 0
  %1070 = vperm.xlu0 %1069, %v1013
  %v1071 = vpop.permute.xlu0 %1070
  %1072 = vset.pattern.permute.xlu0 0
  %1073 = vperm.xlu0 %1072, %v1015
  %v1074 = vpop.permute.xlu0 %1073
  %1075 = vset.pattern.permute.xlu0 0
  %1076 = vperm.xlu0 %1075, %v1017
  %v1077 = vpop.permute.xlu0 %1076
  %1078 = vset.pattern.permute.xlu0 0
  %1079 = vperm.xlu0 %1078, %v1019
  %v1080 = vpop.permute.xlu0 %1079
  %1081 = vset.pattern.permute.xlu0 0
  %1082 = vperm.xlu0 %1081, %v1021
  %v1083 = vpop.permute.xlu0 %1082
  %1084 = vset.pattern.permute.xlu0 0
  %1085 = vperm.xlu0 %1084, %v1023
  %v1086 = vpop.permute.xlu0 %1085
  %1087 = vset.pattern.permute.xlu0 0
  %1088 = vperm.xlu0 %1087, %v1025
  %v1089 = vpop.permute.xlu0 %1088
  %v1090 = vlaneseq
  %v1091 = vshrl.u32 %v1090, 7
  %v1092 = vsub.s32 %v868, %v1091
  %v1093 = vrot.slane %v1044, %v1092
  %v1094 = vlaneseq
  %v1095 = vshrl.u32 %v1094, 7
  %v1096 = vsub.s32 %v873, %v1095
  %v1097 = vrot.slane %v1047, %v1096
  %v1098 = vsel %vm878, %v1097, %v1093
  %v1099 = vlaneseq
  %v1100 = vshrl.u32 %v1099, 7
  %v1101 = vsub.s32 %v880, %v1100
  %v1102 = vrot.slane %v1050, %v1101
  %v1103 = vsel %vm885, %v1102, %v1098
  %v1104 = vlaneseq
  %v1105 = vshrl.u32 %v1104, 7
  %v1106 = vsub.s32 %v887, %v1105
  %v1107 = vrot.slane %v1053, %v1106
  %v1108 = vsel %vm892, %v1107, %v1103
  %v1109 = vlaneseq
  %v1110 = vshrl.u32 %v1109, 7
  %v1111 = vsub.s32 %v894, %v1110
  %v1112 = vrot.slane %v1056, %v1111
  %v1113 = vsel %vm899, %v1112, %v1108
  %v1114 = vlaneseq
  %v1115 = vshrl.u32 %v1114, 7
  %v1116 = vsub.s32 %v901, %v1115
  %v1117 = vrot.slane %v1059, %v1116
  %v1118 = vsel %vm906, %v1117, %v1113
  %v1119 = vlaneseq
  %v1120 = vshrl.u32 %v1119, 7
  %v1121 = vsub.s32 %v908, %v1120
  %v1122 = vrot.slane %v1062, %v1121
  %v1123 = vsel %vm913, %v1122, %v1118
  %v1124 = vlaneseq
  %v1125 = vshrl.u32 %v1124, 7
  %v1126 = vsub.s32 %v915, %v1125
  %v1127 = vrot.slane %v1065, %v1126
  %v1128 = vsel %vm920, %v1127, %v1123
  %v1129 = vlaneseq
  %v1130 = vshrl.u32 %v1129, 7
  %v1131 = vsub.s32 %v868, %v1130
  %v1132 = vrot.slane %v1068, %v1131
  %v1133 = vlaneseq
  %v1134 = vshrl.u32 %v1133, 7
  %v1135 = vsub.s32 %v873, %v1134
  %v1136 = vrot.slane %v1071, %v1135
  %v1137 = vsel %vm878, %v1136, %v1132
  %v1138 = vlaneseq
  %v1139 = vshrl.u32 %v1138, 7
  %v1140 = vsub.s32 %v880, %v1139
  %v1141 = vrot.slane %v1074, %v1140
  %v1142 = vsel %vm885, %v1141, %v1137
  %v1143 = vlaneseq
  %v1144 = vshrl.u32 %v1143, 7
  %v1145 = vsub.s32 %v887, %v1144
  %v1146 = vrot.slane %v1077, %v1145
  %v1147 = vsel %vm892, %v1146, %v1142
  %v1148 = vlaneseq
  %v1149 = vshrl.u32 %v1148, 7
  %v1150 = vsub.s32 %v894, %v1149
  %v1151 = vrot.slane %v1080, %v1150
  %v1152 = vsel %vm899, %v1151, %v1147
  %v1153 = vlaneseq
  %v1154 = vshrl.u32 %v1153, 7
  %v1155 = vsub.s32 %v901, %v1154
  %v1156 = vrot.slane %v1083, %v1155
  %v1157 = vsel %vm906, %v1156, %v1152
  %v1158 = vlaneseq
  %v1159 = vshrl.u32 %v1158, 7
  %v1160 = vsub.s32 %v908, %v1159
  %v1161 = vrot.slane %v1086, %v1160
  %v1162 = vsel %vm913, %v1161, %v1157
  %v1163 = vlaneseq
  %v1164 = vshrl.u32 %v1163, 7
  %v1165 = vsub.s32 %v915, %v1164
  %v1166 = vrot.slane %v1089, %v1165
  %v1167 = vsel %vm920, %v1166, %v1162
  %v1168 = vsel %vm439, %v1167, %v1128
  %v1170 = vsel %vm963, %v1168, 0.0
  %1171 = vadd.xlane.f32.xlu0 %v1170
  %v1172 = vpop.xlane.xlu0 %1171
  %v1173 = vrcp.pop %v1172
  %v1175 = vlaneseq
  %v1176 = vshrl.u32 %v1175, 7
  %v1177 = vsub.s32 0, %v1176
  %v1178 = vrot.slane %v1173, %v1177
  %v1179 = vlaneseq
  %v1180 = vshrl.u32 %v1179, 7
  %v1181 = vsub.s32 1, %v1180
  %v1182 = vrot.slane %v1173, %v1181
  %v1185 = vmul.f32 %v995, %v1178
  %v1186 = vmul.f32 %v997, %v1178
  %v1187 = vmul.f32 %v999, %v1178
  %v1188 = vmul.f32 %v1001, %v1178
  %v1189 = vmul.f32 %v1003, %v1178
  %v1190 = vmul.f32 %v1005, %v1178
  %v1191 = vmul.f32 %v1007, %v1178
  %v1192 = vmul.f32 %v1009, %v1178
  %v1193 = vmul.f32 %v1011, %v1182
  %v1194 = vmul.f32 %v1013, %v1182
  %v1195 = vmul.f32 %v1015, %v1182
  %v1196 = vmul.f32 %v1017, %v1182
  %v1197 = vmul.f32 %v1019, %v1182
  %v1198 = vmul.f32 %v1021, %v1182
  %v1199 = vmul.f32 %v1023, %v1182
  %v1200 = vmul.f32 %v1025, %v1182
  %v1201 = vpack.c.bf16 %v1186, %v1185
  %v1202 = vpack.c.bf16 %v1188, %v1187
  %v1203 = vpack.c.bf16 %v1190, %v1189
  %v1204 = vpack.c.bf16 %v1192, %v1191
  %v1205 = vpack.c.bf16 %v1194, %v1193
  %v1206 = vpack.c.bf16 %v1196, %v1195
  %v1207 = vpack.c.bf16 %v1198, %v1197
  %v1208 = vpack.c.bf16 %v1200, %v1199
  %v1213 = vunpack.c.l.b16 %v1201
  %v1214 = vunpack.c.h.b16 %v1201
  %v1215 = vunpack.c.l.b16 %v1202
  %v1216 = vunpack.c.h.b16 %v1202
  %v1217 = vunpack.c.l.b16 %v1203
  %v1218 = vunpack.c.h.b16 %v1203
  %v1219 = vunpack.c.l.b16 %v1204
  %v1220 = vunpack.c.h.b16 %v1204
  %1221 = vset.pattern.permute.xlu0 0
  %1222 = vperm.xlu0 %1221, %v1213
  %v1223 = vpop.permute.xlu0 %1222
  %1224 = vset.pattern.permute.xlu0 0
  %1225 = vperm.xlu0 %1224, %v1214
  %v1226 = vpop.permute.xlu0 %1225
  %1227 = vset.pattern.permute.xlu0 0
  %1228 = vperm.xlu0 %1227, %v1215
  %v1229 = vpop.permute.xlu0 %1228
  %1230 = vset.pattern.permute.xlu0 0
  %1231 = vperm.xlu0 %1230, %v1216
  %v1232 = vpop.permute.xlu0 %1231
  %1233 = vset.pattern.permute.xlu0 0
  %1234 = vperm.xlu0 %1233, %v1217
  %v1235 = vpop.permute.xlu0 %1234
  %1236 = vset.pattern.permute.xlu0 0
  %1237 = vperm.xlu0 %1236, %v1218
  %v1238 = vpop.permute.xlu0 %1237
  %1239 = vset.pattern.permute.xlu0 0
  %1240 = vperm.xlu0 %1239, %v1219
  %v1241 = vpop.permute.xlu0 %1240
  %1242 = vset.pattern.permute.xlu0 0
  %1243 = vperm.xlu0 %1242, %v1220
  %v1244 = vpop.permute.xlu0 %1243
  %v1245 = vlaneseq
  %v1246 = vshrl.u32 %v1245, 7
  %v1247 = vsub.s32 %v868, %v1246
  %v1248 = vrot.slane %v1223, %v1247
  %v1249 = vlaneseq
  %v1250 = vshrl.u32 %v1249, 7
  %v1251 = vsub.s32 %v873, %v1250
  %v1252 = vrot.slane %v1226, %v1251
  %v1253 = vsel %vm878, %v1252, %v1248
  %v1254 = vlaneseq
  %v1255 = vshrl.u32 %v1254, 7
  %v1256 = vsub.s32 %v880, %v1255
  %v1257 = vrot.slane %v1229, %v1256
  %v1258 = vsel %vm885, %v1257, %v1253
  %v1259 = vlaneseq
  %v1260 = vshrl.u32 %v1259, 7
  %v1261 = vsub.s32 %v887, %v1260
  %v1262 = vrot.slane %v1232, %v1261
  %v1263 = vsel %vm892, %v1262, %v1258
  %v1264 = vlaneseq
  %v1265 = vshrl.u32 %v1264, 7
  %v1266 = vsub.s32 %v894, %v1265
  %v1267 = vrot.slane %v1235, %v1266
  %v1268 = vsel %vm899, %v1267, %v1263
  %v1269 = vlaneseq
  %v1270 = vshrl.u32 %v1269, 7
  %v1271 = vsub.s32 %v901, %v1270
  %v1272 = vrot.slane %v1238, %v1271
  %v1273 = vsel %vm906, %v1272, %v1268
  %v1274 = vlaneseq
  %v1275 = vshrl.u32 %v1274, 7
  %v1276 = vsub.s32 %v908, %v1275
  %v1277 = vrot.slane %v1241, %v1276
  %v1278 = vsel %vm913, %v1277, %v1273
  %v1279 = vlaneseq
  %v1280 = vshrl.u32 %v1279, 7
  %v1281 = vsub.s32 %v915, %v1280
  %v1282 = vrot.slane %v1244, %v1281
  %v1283 = vsel %vm920, %v1282, %v1278
  %v1284 = vpack.c.b16 %v1283, %v1283
  %vm1285 = vcmask 523264
  %v1287 = vsel %vm1285, %v1284, 0
  %1289 = vmatprep.subr.bf16.mxu0 0
  %1290 = vmatpush1.bf16.msra.mxu0 %v271
  %1291 = vmatprep.subr.bf16.mxu0 0
  %1292 = vmatpush1.bf16.msra.mxu0 %v272
  %1293 = vmatprep.subr.bf16.mxu0 0
  %1294 = vmatpush1.bf16.msra.mxu0 %v273
  %1295 = vmatprep.subr.bf16.mxu0 0
  %1296 = vmatpush1.bf16.msra.mxu0 %v274
  %1297 = vmatprep.subr.bf16.mxu0 0
  %1298 = vmatpush1.bf16.msra.mxu0 0
  %1299 = vmatprep.subr.bf16.mxu0 0
  %1300 = vmatpush1.bf16.msra.mxu0 0
  %1301 = vmatprep.subr.bf16.mxu0 0
  %1302 = vmatpush1.bf16.msra.mxu0 0
  %1303 = vmatprep.subr.bf16.mxu0 0
  %1304 = vmatpush1.bf16.msra.mxu0 0
  %1305 = vmatprep.subr.bf16.mxu0 0
  %1306 = vmatpush1.bf16.msra.mxu0 0
  %1307 = vmatprep.subr.bf16.mxu0 0
  %1308 = vmatpush1.bf16.msra.mxu0 0
  %1309 = vmatprep.subr.bf16.mxu0 0
  %1310 = vmatpush1.bf16.msra.mxu0 0
  %1311 = vmatprep.subr.bf16.mxu0 0
  %1312 = vmatpush1.bf16.msra.mxu0 0
  %1313 = vmatprep.subr.bf16.mxu0 0
  %1314 = vmatpush1.bf16.msra.mxu0 0
  %1315 = vmatprep.subr.bf16.mxu0 0
  %1316 = vmatpush1.bf16.msra.mxu0 0
  %1317 = vmatprep.subr.bf16.mxu0 0
  %1318 = vmatpush1.bf16.msra.mxu0 0
  %1319 = vmatprep.subr.bf16.mxu0 0
  %1320 = vmatpush1.bf16.msra.mxu0 0
  %1321 = vmatprep.mubr.bf16.mxu0 0
  %1322 = vmatmul.mubr.bf16.gmra.mrb[0].mxu0 %v1287
  %v1323 = vpop.f32.mrb[0].mxu0
  %v1324 = vadd.f32 0.0, %v1323
  %v1325 = vpop.f32.mrb[0].mxu0
  %v1326 = vpop.f32.mrb[0].mxu0
  %v1327 = vpop.f32.mrb[0].mxu0
  %1328 = vdwg.mxu0
  %v1333 = vunpack.c.l.b16 %v1205
  %v1334 = vunpack.c.h.b16 %v1205
  %v1335 = vunpack.c.l.b16 %v1206
  %v1336 = vunpack.c.h.b16 %v1206
  %v1337 = vunpack.c.l.b16 %v1207
  %v1338 = vunpack.c.h.b16 %v1207
  %v1339 = vunpack.c.l.b16 %v1208
  %v1340 = vunpack.c.h.b16 %v1208
  %1341 = vset.pattern.permute.xlu0 0
  %1342 = vperm.xlu0 %1341, %v1333
  %v1343 = vpop.permute.xlu0 %1342
  %1344 = vset.pattern.permute.xlu0 0
  %1345 = vperm.xlu0 %1344, %v1334
  %v1346 = vpop.permute.xlu0 %1345
  %1347 = vset.pattern.permute.xlu0 0
  %1348 = vperm.xlu0 %1347, %v1335
  %v1349 = vpop.permute.xlu0 %1348
  %1350 = vset.pattern.permute.xlu0 0
  %1351 = vperm.xlu0 %1350, %v1336
  %v1352 = vpop.permute.xlu0 %1351
  %1353 = vset.pattern.permute.xlu0 0
  %1354 = vperm.xlu0 %1353, %v1337
  %v1355 = vpop.permute.xlu0 %1354
  %1356 = vset.pattern.permute.xlu0 0
  %1357 = vperm.xlu0 %1356, %v1338
  %v1358 = vpop.permute.xlu0 %1357
  %1359 = vset.pattern.permute.xlu0 0
  %1360 = vperm.xlu0 %1359, %v1339
  %v1361 = vpop.permute.xlu0 %1360
  %1362 = vset.pattern.permute.xlu0 0
  %1363 = vperm.xlu0 %1362, %v1340
  %v1364 = vpop.permute.xlu0 %1363
  %v1365 = vlaneseq
  %v1366 = vshrl.u32 %v1365, 7
  %v1367 = vsub.s32 %v868, %v1366
  %v1368 = vrot.slane %v1343, %v1367
  %v1369 = vlaneseq
  %v1370 = vshrl.u32 %v1369, 7
  %v1371 = vsub.s32 %v873, %v1370
  %v1372 = vrot.slane %v1346, %v1371
  %v1373 = vsel %vm878, %v1372, %v1368
  %v1374 = vlaneseq
  %v1375 = vshrl.u32 %v1374, 7
  %v1376 = vsub.s32 %v880, %v1375
  %v1377 = vrot.slane %v1349, %v1376
  %v1378 = vsel %vm885, %v1377, %v1373
  %v1379 = vlaneseq
  %v1380 = vshrl.u32 %v1379, 7
  %v1381 = vsub.s32 %v887, %v1380
  %v1382 = vrot.slane %v1352, %v1381
  %v1383 = vsel %vm892, %v1382, %v1378
  %v1384 = vlaneseq
  %v1385 = vshrl.u32 %v1384, 7
  %v1386 = vsub.s32 %v894, %v1385
  %v1387 = vrot.slane %v1355, %v1386
  %v1388 = vsel %vm899, %v1387, %v1383
  %v1389 = vlaneseq
  %v1390 = vshrl.u32 %v1389, 7
  %v1391 = vsub.s32 %v901, %v1390
  %v1392 = vrot.slane %v1358, %v1391
  %v1393 = vsel %vm906, %v1392, %v1388
  %v1394 = vlaneseq
  %v1395 = vshrl.u32 %v1394, 7
  %v1396 = vsub.s32 %v908, %v1395
  %v1397 = vrot.slane %v1361, %v1396
  %v1398 = vsel %vm913, %v1397, %v1393
  %v1399 = vlaneseq
  %v1400 = vshrl.u32 %v1399, 7
  %v1401 = vsub.s32 %v915, %v1400
  %v1402 = vrot.slane %v1364, %v1401
  %v1403 = vsel %vm920, %v1402, %v1398
  %v1404 = vpack.c.b16 %v1403, %v1403
  %v1406 = vsel %vm1285, %v1404, 0
  %1408 = vmatprep.subr.bf16.mxu0 0
  %1409 = vmatpush1.bf16.msra.mxu0 %v275
  %1410 = vmatprep.subr.bf16.mxu0 0
  %1411 = vmatpush1.bf16.msra.mxu0 %v276
  %1412 = vmatprep.subr.bf16.mxu0 0
  %1413 = vmatpush1.bf16.msra.mxu0 %v277
  %1414 = vmatprep.subr.bf16.mxu0 0
  %1415 = vmatpush1.bf16.msra.mxu0 %v278
  %1416 = vmatprep.subr.bf16.mxu0 0
  %1417 = vmatpush1.bf16.msra.mxu0 0
  %1418 = vmatprep.subr.bf16.mxu0 0
  %1419 = vmatpush1.bf16.msra.mxu0 0
  %1420 = vmatprep.subr.bf16.mxu0 0
  %1421 = vmatpush1.bf16.msra.mxu0 0
  %1422 = vmatprep.subr.bf16.mxu0 0
  %1423 = vmatpush1.bf16.msra.mxu0 0
  %1424 = vmatprep.subr.bf16.mxu0 0
  %1425 = vmatpush1.bf16.msra.mxu0 0
  %1426 = vmatprep.subr.bf16.mxu0 0
  %1427 = vmatpush1.bf16.msra.mxu0 0
  %1428 = vmatprep.subr.bf16.mxu0 0
  %1429 = vmatpush1.bf16.msra.mxu0 0
  %1430 = vmatprep.subr.bf16.mxu0 0
  %1431 = vmatpush1.bf16.msra.mxu0 0
  %1432 = vmatprep.subr.bf16.mxu0 0
  %1433 = vmatpush1.bf16.msra.mxu0 0
  %1434 = vmatprep.subr.bf16.mxu0 0
  %1435 = vmatpush1.bf16.msra.mxu0 0
  %1436 = vmatprep.subr.bf16.mxu0 0
  %1437 = vmatpush1.bf16.msra.mxu0 0
  %1438 = vmatprep.subr.bf16.mxu0 0
  %1439 = vmatpush1.bf16.msra.mxu0 0
  %1440 = vmatprep.mubr.bf16.mxu0 0
  %1441 = vmatmul.mubr.bf16.gmra.mrb[0].mxu0 %v1406
  %v1442 = vpop.f32.mrb[0].mxu0
  %v1443 = vadd.f32 0.0, %v1442
  %v1444 = vpop.f32.mrb[0].mxu0
  %v1445 = vpop.f32.mrb[0].mxu0
  %v1446 = vpop.f32.mrb[0].mxu0
  %1447 = vdwg.mxu0
  %v1448 = vpack.c.bf16 %v1324, %v1324
  %v1449 = vpack.c.bf16 %v1443, %v1443
  %v1452 = vunpack.c.l.b16 %v1448
  %v1453 = vunpack.c.l.b16 %v1449
  %v1454 = vrot.slane %v1453, 7
  %v1455 = vsel %vm439, %v1454, %v1452
  %v1456 = vpack.c.b16 %v1455, %v1455
  %v1461 = vunpack.c.l.b16 %v504
  %v1462 = vunpack.c.l.b16 %v505
  %v1463 = vunpack.c.l.b16 %v506
  %v1464 = vunpack.c.l.b16 %v507
  %v1465 = vpack.c.b16 %v1462, %v1461
  %v1466 = vpack.c.b16 %v1464, %v1463
  %v1470 = vsel %vm225, %v1456, 0
  %1472 = vmatprep.subr.bf16.mxu0 0
  %1473 = vmatpush1.bf16.msra.mxu0 %v1465
  %1474 = vmatprep.subr.bf16.mxu0 0
  %1475 = vmatpush1.bf16.msra.mxu0 %v1466
  %1476 = vmatprep.subr.bf16.mxu0 0
  %1477 = vmatpush1.bf16.msra.mxu0 0
  %1478 = vmatprep.subr.bf16.mxu0 0
  %1479 = vmatpush1.bf16.msra.mxu0 0
  %1480 = vmatprep.subr.bf16.mxu0 0
  %1481 = vmatpush1.bf16.msra.mxu0 0
  %1482 = vmatprep.subr.bf16.mxu0 0
  %1483 = vmatpush1.bf16.msra.mxu0 0
  %1484 = vmatprep.subr.bf16.mxu0 0
  %1485 = vmatpush1.bf16.msra.mxu0 0
  %1486 = vmatprep.subr.bf16.mxu0 0
  %1487 = vmatpush1.bf16.msra.mxu0 0
  %1488 = vmatprep.subr.bf16.mxu0 0
  %1489 = vmatpush1.bf16.msra.mxu0 0
  %1490 = vmatprep.subr.bf16.mxu0 0
  %1491 = vmatpush1.bf16.msra.mxu0 0
  %1492 = vmatprep.subr.bf16.mxu0 0
  %1493 = vmatpush1.bf16.msra.mxu0 0
  %1494 = vmatprep.subr.bf16.mxu0 0
  %1495 = vmatpush1.bf16.msra.mxu0 0
  %1496 = vmatprep.subr.bf16.mxu0 0
  %1497 = vmatpush1.bf16.msra.mxu0 0
  %1498 = vmatprep.subr.bf16.mxu0 0
  %1499 = vmatpush1.bf16.msra.mxu0 0
  %1500 = vmatprep.subr.bf16.mxu0 0
  %1501 = vmatpush1.bf16.msra.mxu0 0
  %1502 = vmatprep.subr.bf16.mxu0 0
  %1503 = vmatpush1.bf16.msra.mxu0 0
  %1504 = vmatprep.mubr.bf16.mxu0 0
  %1505 = vmatmul.mubr.bf16.gmra.mrb[0].mxu0 %v1470
  %v1506 = vpop.f32.mrb[0].mxu0
  %v1507 = vadd.f32 0.0, %v1506
  %v1508 = vpop.f32.mrb[0].mxu0
  %v1509 = vpop.f32.mrb[0].mxu0
  %v1510 = vpop.f32.mrb[0].mxu0
  %1511 = vdwg.mxu0
  %1513 = vrot.lane.b32.xlu0 %v1507, 96
  %v1514 = vpop.permute.xlu0 %1513
  %v1516 = vadd.f32 %v696, %v1514
  %v1517 = vtanh.pop %v1516
  %v1518 = vpack.c.bf16 %v1517, %v1517
  %s1519 = scalar_lea.vmem %s1, 1
  %v1520 = vld [vmem:[%s1519] sm:$0x1]
  %1522 = vrot.lane.b32.xlu0 %v1518, 48
  %v1523 = vpop.permute.xlu0 %1522
  %v1526 = vsel %vm87, %v1520, %v1523
  %v1527 = vsel %vm225, %v1526, 0
  %1529 = vmatprep.subr.bf16.mxu0 0
  %1530 = vmatpush1.bf16.msra.mxu0 %v583
  %1531 = vmatprep.subr.bf16.mxu0 0
  %1532 = vmatpush1.bf16.msra.mxu0 %v584
  %1533 = vmatprep.subr.bf16.mxu0 0
  %1534 = vmatpush1.bf16.msra.mxu0 0
  %1535 = vmatprep.subr.bf16.mxu0 0
  %1536 = vmatpush1.bf16.msra.mxu0 0
  %1537 = vmatprep.subr.bf16.mxu0 0
  %1538 = vmatpush1.bf16.msra.mxu0 0
  %1539 = vmatprep.subr.bf16.mxu0 0
  %1540 = vmatpush1.bf16.msra.mxu0 0
  %1541 = vmatprep.subr.bf16.mxu0 0
  %1542 = vmatpush1.bf16.msra.mxu0 0
  %1543 = vmatprep.subr.bf16.mxu0 0
  %1544 = vmatpush1.bf16.msra.mxu0 0
  %1545 = vmatprep.subr.bf16.mxu0 0
  %1546 = vmatpush1.bf16.msra.mxu0 0
  %1547 = vmatprep.subr.bf16.mxu0 0
  %1548 = vmatpush1.bf16.msra.mxu0 0
  %1549 = vmatprep.subr.bf16.mxu0 0
  %1550 = vmatpush1.bf16.msra.mxu0 0
  %1551 = vmatprep.subr.bf16.mxu0 0
  %1552 = vmatpush1.bf16.msra.mxu0 0
  %1553 = vmatprep.subr.bf16.mxu0 0
  %1554 = vmatpush1.bf16.msra.mxu0 0
  %1555 = vmatprep.subr.bf16.mxu0 0
  %1556 = vmatpush1.bf16.msra.mxu0 0
  %1557 = vmatprep.subr.bf16.mxu0 0
  %1558 = vmatpush1.bf16.msra.mxu0 0
  %1559 = vmatprep.subr.bf16.mxu0 0
  %1560 = vmatpush1.bf16.msra.mxu0 0
  %1561 = vmatprep.mubr.bf16.mxu0 0
  %1562 = vmatmul.mubr.bf16.gmra.mrb[0].mxu0 %v1527
  %v1563 = vpop.f32.mrb[0].mxu0
  %v1564 = vadd.f32 %v696, %v1563
  %v1565 = vpop.f32.mrb[0].mxu0
  %v1566 = vpop.f32.mrb[0].mxu0
  %v1567 = vpop.f32.mrb[0].mxu0
  %1568 = vdwg.mxu0
  %v1569 = vadd.f32 %v1564, %v514
  %v1570 = vxor.u32 %v1569, 2147483648
  %v1571 = vmul.f32 %v1570, 1.442695
  %v1572 = vpow.pop %v1571
  %v1573 = vadd.f32 %v1572, 1.0
  %v1574 = vrcp.pop %v1573
  %v1575 = vmul.f32 1.0, %v1574
  %v1576 = vtanh.pop %v1569
  %v1577 = vmul.f32 %v1575, %v647
  %1579 = vrot.lane.b32.xlu0 %v1576, 96
  %v1580 = vpop.permute.xlu0 %1579
  %v1582 = vmul.f32 %v1575, %v1580
  %1584 = vrot.lane.b32.xlu0 %v1582, 16
  %v1585 = vpop.permute.xlu0 %1584
  %v1587 = vadd.f32 %v1577, %v1585
  %v1588 = vtanh.pop %v1587
  %1590 = vrot.lane.b32.xlu0 %v1588, 32
  %v1591 = vpop.permute.xlu0 %1590
  %v1593 = vmul.f32 %v1575, %v1591
  %v1594 = vpack.c.bf16 %v1593, %v1593
  %1596 = vrot.lane.b32.xlu0 %v1594, 80
  %v1597 = vpop.permute.xlu0 %1596
  %v1599 = vsel %vm87, %v1597, 0
  %1601 = vmatprep.subr.bf16.mxu0 0
  %1602 = vmatpush1.bf16.msra.mxu0 %v526
  %1603 = vmatprep.subr.bf16.mxu0 0
  %1604 = vmatpush1.bf16.msra.mxu0 0
  %1605 = vmatprep.subr.bf16.mxu0 0
  %1606 = vmatpush1.bf16.msra.mxu0 0
  %1607 = vmatprep.subr.bf16.mxu0 0
  %1608 = vmatpush1.bf16.msra.mxu0 0
  %1609 = vmatprep.subr.bf16.mxu0 0
  %1610 = vmatpush1.bf16.msra.mxu0 0
  %1611 = vmatprep.subr.bf16.mxu0 0
  %1612 = vmatpush1.bf16.msra.mxu0 0
  %1613 = vmatprep.subr.bf16.mxu0 0
  %1614 = vmatpush1.bf16.msra.mxu0 0
  %1615 = vmatprep.subr.bf16.mxu0 0
  %1616 = vmatpush1.bf16.msra.mxu0 0
  %1617 = vmatprep.subr.bf16.mxu0 0
  %1618 = vmatpush1.bf16.msra.mxu0 0
  %1619 = vmatprep.subr.bf16.mxu0 0
  %1620 = vmatpush1.bf16.msra.mxu0 0
  %1621 = vmatprep.subr.bf16.mxu0 0
  %1622 = vmatpush1.bf16.msra.mxu0 0
  %1623 = vmatprep.subr.bf16.mxu0 0
  %1624 = vmatpush1.bf16.msra.mxu0 0
  %1625 = vmatprep.subr.bf16.mxu0 0
  %1626 = vmatpush1.bf16.msra.mxu0 0
  %1627 = vmatprep.subr.bf16.mxu0 0
  %1628 = vmatpush1.bf16.msra.mxu0 0
  %1629 = vmatprep.subr.bf16.mxu0 0
  %1630 = vmatpush1.bf16.msra.mxu0 0
  %1631 = vmatprep.subr.bf16.mxu0 0
  %1632 = vmatpush1.bf16.msra.mxu0 0
  %1633 = vmatprep.mubr.bf16.mxu0 0
  %1634 = vmatmul.mubr.bf16.gmra.mrb[0].mxu0 %v1599
  %v1635 = vpop.f32.mrb[0].mxu0
  %v1636 = vadd.f32 %v519, %v1635
  %v1637 = vpop.f32.mrb[0].mxu0
  %v1638 = vpop.f32.mrb[0].mxu0
  %v1639 = vpop.f32.mrb[0].mxu0
  %1640 = vdwg.mxu0
  %v1641 = vpack.c.bf16 %v1636, %v1636
  %v1644 = vunpack.c.l.s4 1966171168
  %v1645 = vunpack.c.0.s8 %v1644
  %v1646 = vlaneseq
  %v1647 = vshrl.u32 %v1646, 7
  %v1648 = vsub.s32 %v1645, %v1647
  %v1649 = vrot.slane %v1641, %v1648
  %v1651 = vunpack.c.l.s4 1966171168
  %v1652 = vunpack.c.0.s8 %v1651
  %v1653 = vlaneseq
  %v1654 = vshrl.u32 %v1653, 7
  %v1655 = vsub.s32 %v1652, %v1654
  %v1656 = vrot.slane %v1649, %v1655
  %v1657 = vunpack.i.l.s16 %v1656
  %v1658 = vunpack.i.h.s16 %v1656
  %v1659 = vpack.i.b16 %v1657, %v1657
  %v1660 = vpack.i.b16 %v1658, %v1658
  %v1661 = vlaneseq
  %v1662 = vshrl.u32 %v1661, 7
  %v1663 = vsub.s32 0, %v1662
  %v1664 = vrot.slane %v1659, %v1663
  %v1665 = vlaneseq
  %v1666 = vshrl.u32 %v1665, 7
  %v1667 = vsub.s32 0, %v1666
  %v1668 = vrot.slane %v1660, %v1667
  %v1670 = vpack.i.b16 %v1664, %v1664
  %v1672 = vlaneseq
  %v1673 = vshrl.u32 %v1672, 7
  %v1674 = vsub.s32 0, %v1673
  %v1675 = vrot.slane %v1670, %v1674
  %v1677 = vpack.i.b16 %v1668, %v1668
  %v1679 = vlaneseq
  %v1680 = vshrl.u32 %v1679, 7
  %v1681 = vsub.s32 0, %v1680
  %v1682 = vrot.slane %v1677, %v1681
  %1685 = vrot.lane.b32.xlu0 %v1675, 64
  %v1686 = vpop.permute.xlu0 %1685
  %1687 = vrot.lane.b32.xlu0 %v1682, 64
  %v1688 = vpop.permute.xlu0 %1687
  %v1691 = vadd.bf16 %v416, %v1686
  %v1692 = vadd.bf16 %v417, %v1686
  %v1693 = vadd.bf16 %v418, %v1686
  %v1694 = vadd.bf16 %v419, %v1686
  %v1695 = vadd.bf16 %v420, %v1688
  %v1696 = vadd.bf16 %v421, %v1688
  %v1697 = vadd.bf16 %v422, %v1688
  %v1698 = vadd.bf16 %v423, %v1688
  %v1699 = vtanh.bf16.pop %v1691
  %v1700 = vtanh.bf16.pop %v1692
  %v1701 = vtanh.bf16.pop %v1693
  %v1702 = vtanh.bf16.pop %v1694
  %v1703 = vtanh.bf16.pop %v1695
  %v1704 = vtanh.bf16.pop %v1696
  %v1705 = vtanh.bf16.pop %v1697
  %v1706 = vtanh.bf16.pop %v1698
  %v1707 = vunpack.c.l.bf16 %v1699
  %v1708 = vunpack.c.h.bf16 %v1699
  %v1709 = vunpack.c.l.bf16 %v1700
  %v1710 = vunpack.c.h.bf16 %v1700
  %v1711 = vunpack.c.l.bf16 %v1701
  %v1712 = vunpack.c.h.bf16 %v1701
  %v1713 = vunpack.c.l.bf16 %v1702
  %v1714 = vunpack.c.h.bf16 %v1702
  %v1715 = vunpack.c.l.bf16 %v1703
  %v1716 = vunpack.c.h.bf16 %v1703
  %v1717 = vunpack.c.l.bf16 %v1704
  %v1718 = vunpack.c.h.bf16 %v1704
  %v1719 = vunpack.c.l.bf16 %v1705
  %v1720 = vunpack.c.h.bf16 %v1705
  %v1721 = vunpack.c.l.bf16 %v1706
  %v1722 = vunpack.c.h.bf16 %v1706
  %v1723 = vmul.f32 %v1707, %v786
  %v1724 = vmul.f32 %v1708, %v786
  %v1725 = vmul.f32 %v1709, %v786
  %v1726 = vmul.f32 %v1710, %v786
  %v1727 = vmul.f32 %v1711, %v786
  %v1728 = vmul.f32 %v1712, %v786
  %v1729 = vmul.f32 %v1713, %v786
  %v1730 = vmul.f32 %v1714, %v786
  %v1731 = vmul.f32 %v1715, %v786
  %v1732 = vmul.f32 %v1716, %v786
  %v1733 = vmul.f32 %v1717, %v786
  %v1734 = vmul.f32 %v1718, %v786
  %v1735 = vmul.f32 %v1719, %v786
  %v1736 = vmul.f32 %v1720, %v786
  %v1737 = vmul.f32 %v1721, %v786
  %v1738 = vmul.f32 %v1722, %v786
  %v1739 = vsel %vm225, %v1723, 0.0
  %1740 = vadd.xlane.f32.xlu0 %v1739
  %v1741 = vpop.xlane.xlu0 %1740
  %v1742 = vsel %vm225, %v1724, 0.0
  %1743 = vadd.xlane.f32.xlu0 %v1742
  %v1744 = vpop.xlane.xlu0 %1743
  %v1745 = vsel %vm225, %v1725, 0.0
  %1746 = vadd.xlane.f32.xlu0 %v1745
  %v1747 = vpop.xlane.xlu0 %1746
  %v1748 = vsel %vm225, %v1726, 0.0
  %1749 = vadd.xlane.f32.xlu0 %v1748
  %v1750 = vpop.xlane.xlu0 %1749
  %v1751 = vsel %vm225, %v1727, 0.0
  %1752 = vadd.xlane.f32.xlu0 %v1751
  %v1753 = vpop.xlane.xlu0 %1752
  %v1754 = vsel %vm225, %v1728, 0.0
  %1755 = vadd.xlane.f32.xlu0 %v1754
  %v1756 = vpop.xlane.xlu0 %1755
  %v1757 = vsel %vm225, %v1729, 0.0
  %1758 = vadd.xlane.f32.xlu0 %v1757
  %v1759 = vpop.xlane.xlu0 %1758
  %v1760 = vsel %vm225, %v1730, 0.0
  %1761 = vadd.xlane.f32.xlu0 %v1760
  %v1762 = vpop.xlane.xlu0 %1761
  %v1763 = vsel %vm225, %v1731, 0.0
  %1764 = vadd.xlane.f32.xlu0 %v1763
  %v1765 = vpop.xlane.xlu0 %1764
  %v1766 = vsel %vm225, %v1732, 0.0
  %1767 = vadd.xlane.f32.xlu0 %v1766
  %v1768 = vpop.xlane.xlu0 %1767
  %v1769 = vsel %vm225, %v1733, 0.0
  %1770 = vadd.xlane.f32.xlu0 %v1769
  %v1771 = vpop.xlane.xlu0 %1770
  %v1772 = vsel %vm225, %v1734, 0.0
  %1773 = vadd.xlane.f32.xlu0 %v1772
  %v1774 = vpop.xlane.xlu0 %1773
  %v1775 = vsel %vm225, %v1735, 0.0
  %1776 = vadd.xlane.f32.xlu0 %v1775
  %v1777 = vpop.xlane.xlu0 %1776
  %v1778 = vsel %vm225, %v1736, 0.0
  %1779 = vadd.xlane.f32.xlu0 %v1778
  %v1780 = vpop.xlane.xlu0 %1779
  %v1781 = vsel %vm225, %v1737, 0.0
  %1782 = vadd.xlane.f32.xlu0 %v1781
  %v1783 = vpop.xlane.xlu0 %1782
  %v1784 = vsel %vm225, %v1738, 0.0
  %1785 = vadd.xlane.f32.xlu0 %v1784
  %v1786 = vpop.xlane.xlu0 %1785
  %v1803 = vlaneseq
  %v1804 = vshrl.u32 %v1803, 7
  %v1805 = vsub.s32 %v868, %v1804
  %v1806 = vrot.slane %v1741, %v1805
  %v1807 = vlaneseq
  %v1808 = vshrl.u32 %v1807, 7
  %v1809 = vsub.s32 %v873, %v1808
  %v1810 = vrot.slane %v1744, %v1809
  %v1811 = vsel %vm878, %v1810, %v1806
  %v1812 = vlaneseq
  %v1813 = vshrl.u32 %v1812, 7
  %v1814 = vsub.s32 %v880, %v1813
  %v1815 = vrot.slane %v1747, %v1814
  %v1816 = vsel %vm885, %v1815, %v1811
  %v1817 = vlaneseq
  %v1818 = vshrl.u32 %v1817, 7
  %v1819 = vsub.s32 %v887, %v1818
  %v1820 = vrot.slane %v1750, %v1819
  %v1821 = vsel %vm892, %v1820, %v1816
  %v1822 = vlaneseq
  %v1823 = vshrl.u32 %v1822, 7
  %v1824 = vsub.s32 %v894, %v1823
  %v1825 = vrot.slane %v1753, %v1824
  %v1826 = vsel %vm899, %v1825, %v1821
  %v1827 = vlaneseq
  %v1828 = vshrl.u32 %v1827, 7
  %v1829 = vsub.s32 %v901, %v1828
  %v1830 = vrot.slane %v1756, %v1829
  %v1831 = vsel %vm906, %v1830, %v1826
  %v1832 = vlaneseq
  %v1833 = vshrl.u32 %v1832, 7
  %v1834 = vsub.s32 %v908, %v1833
  %v1835 = vrot.slane %v1759, %v1834
  %v1836 = vsel %vm913, %v1835, %v1831
  %v1837 = vlaneseq
  %v1838 = vshrl.u32 %v1837, 7
  %v1839 = vsub.s32 %v915, %v1838
  %v1840 = vrot.slane %v1762, %v1839
  %v1841 = vsel %vm920, %v1840, %v1836
  %v1842 = vlaneseq
  %v1843 = vshrl.u32 %v1842, 7
  %v1844 = vsub.s32 %v868, %v1843
  %v1845 = vrot.slane %v1765, %v1844
  %v1846 = vlaneseq
  %v1847 = vshrl.u32 %v1846, 7
  %v1848 = vsub.s32 %v873, %v1847
  %v1849 = vrot.slane %v1768, %v1848
  %v1850 = vsel %vm878, %v1849, %v1845
  %v1851 = vlaneseq
  %v1852 = vshrl.u32 %v1851, 7
  %v1853 = vsub.s32 %v880, %v1852
  %v1854 = vrot.slane %v1771, %v1853
  %v1855 = vsel %vm885, %v1854, %v1850
  %v1856 = vlaneseq
  %v1857 = vshrl.u32 %v1856, 7
  %v1858 = vsub.s32 %v887, %v1857
  %v1859 = vrot.slane %v1774, %v1858
  %v1860 = vsel %vm892, %v1859, %v1855
  %v1861 = vlaneseq
  %v1862 = vshrl.u32 %v1861, 7
  %v1863 = vsub.s32 %v894, %v1862
  %v1864 = vrot.slane %v1777, %v1863
  %v1865 = vsel %vm899, %v1864, %v1860
  %v1866 = vlaneseq
  %v1867 = vshrl.u32 %v1866, 7
  %v1868 = vsub.s32 %v901, %v1867
  %v1869 = vrot.slane %v1780, %v1868
  %v1870 = vsel %vm906, %v1869, %v1865
  %v1871 = vlaneseq
  %v1872 = vshrl.u32 %v1871, 7
  %v1873 = vsub.s32 %v908, %v1872
  %v1874 = vrot.slane %v1783, %v1873
  %v1875 = vsel %vm913, %v1874, %v1870
  %v1876 = vlaneseq
  %v1877 = vshrl.u32 %v1876, 7
  %v1878 = vsub.s32 %v915, %v1877
  %v1879 = vrot.slane %v1786, %v1878
  %v1880 = vsel %vm920, %v1879, %v1875
  %v1881 = vsel %vm439, %v1880, %v1841
  %v1883 = vsel %vm963, %v1881, -inf
  %1884 = vmax.xlane.f32.xlu0 %v1883
  %v1885 = vpop.xlane.xlu0 %1884
  %v1887 = vlaneseq
  %v1888 = vshrl.u32 %v1887, 7
  %v1889 = vsub.s32 0, %v1888
  %v1890 = vrot.slane %v1885, %v1889
  %v1891 = vlaneseq
  %v1892 = vshrl.u32 %v1891, 7
  %v1893 = vsub.s32 1, %v1892
  %v1894 = vrot.slane %v1885, %v1893
  %v1897 = vsub.f32 %v1741, %v1890
  %v1898 = vsub.f32 %v1744, %v1890
  %v1899 = vsub.f32 %v1747, %v1890
  %v1900 = vsub.f32 %v1750, %v1890
  %v1901 = vsub.f32 %v1753, %v1890
  %v1902 = vsub.f32 %v1756, %v1890
  %v1903 = vsub.f32 %v1759, %v1890
  %v1904 = vsub.f32 %v1762, %v1890
  %v1905 = vsub.f32 %v1765, %v1894
  %v1906 = vsub.f32 %v1768, %v1894
  %v1907 = vsub.f32 %v1771, %v1894
  %v1908 = vsub.f32 %v1774, %v1894
  %v1909 = vsub.f32 %v1777, %v1894
  %v1910 = vsub.f32 %v1780, %v1894
  %v1911 = vsub.f32 %v1783, %v1894
  %v1912 = vsub.f32 %v1786, %v1894
  %v1913 = vmul.f32 %v1897, 1.442695
  %v1914 = vpow.pop %v1913
  %v1915 = vmul.f32 %v1898, 1.442695
  %v1916 = vpow.pop %v1915
  %v1917 = vmul.f32 %v1899, 1.442695
  %v1918 = vpow.pop %v1917
  %v1919 = vmul.f32 %v1900, 1.442695
  %v1920 = vpow.pop %v1919
  %v1921 = vmul.f32 %v1901, 1.442695
  %v1922 = vpow.pop %v1921
  %v1923 = vmul.f32 %v1902, 1.442695
  %v1924 = vpow.pop %v1923
  %v1925 = vmul.f32 %v1903, 1.442695
  %v1926 = vpow.pop %v1925
  %v1927 = vmul.f32 %v1904, 1.442695
  %v1928 = vpow.pop %v1927
  %v1929 = vmul.f32 %v1905, 1.442695
  %v1930 = vpow.pop %v1929
  %v1931 = vmul.f32 %v1906, 1.442695
  %v1932 = vpow.pop %v1931
  %v1933 = vmul.f32 %v1907, 1.442695
  %v1934 = vpow.pop %v1933
  %v1935 = vmul.f32 %v1908, 1.442695
  %v1936 = vpow.pop %v1935
  %v1937 = vmul.f32 %v1909, 1.442695
  %v1938 = vpow.pop %v1937
  %v1939 = vmul.f32 %v1910, 1.442695
  %v1940 = vpow.pop %v1939
  %v1941 = vmul.f32 %v1911, 1.442695
  %v1942 = vpow.pop %v1941
  %v1943 = vmul.f32 %v1912, 1.442695
  %v1944 = vpow.pop %v1943
  %1961 = vset.pattern.permute.xlu0 0
  %1962 = vperm.xlu0 %1961, %v1914
  %v1963 = vpop.permute.xlu0 %1962
  %1964 = vset.pattern.permute.xlu0 0
  %1965 = vperm.xlu0 %1964, %v1916
  %v1966 = vpop.permute.xlu0 %1965
  %1967 = vset.pattern.permute.xlu0 0
  %1968 = vperm.xlu0 %1967, %v1918
  %v1969 = vpop.permute.xlu0 %1968
  %1970 = vset.pattern.permute.xlu0 0
  %1971 = vperm.xlu0 %1970, %v1920
  %v1972 = vpop.permute.xlu0 %1971
  %1973 = vset.pattern.permute.xlu0 0
  %1974 = vperm.xlu0 %1973, %v1922
  %v1975 = vpop.permute.xlu0 %1974
  %1976 = vset.pattern.permute.xlu0 0
  %1977 = vperm.xlu0 %1976, %v1924
  %v1978 = vpop.permute.xlu0 %1977
  %1979 = vset.pattern.permute.xlu0 0
  %1980 = vperm.xlu0 %1979, %v1926
  %v1981 = vpop.permute.xlu0 %1980
  %1982 = vset.pattern.permute.xlu0 0
  %1983 = vperm.xlu0 %1982, %v1928
  %v1984 = vpop.permute.xlu0 %1983
  %1985 = vset.pattern.permute.xlu0 0
  %1986 = vperm.xlu0 %1985, %v1930
  %v1987 = vpop.permute.xlu0 %1986
  %1988 = vset.pattern.permute.xlu0 0
  %1989 = vperm.xlu0 %1988, %v1932
  %v1990 = vpop.permute.xlu0 %1989
  %1991 = vset.pattern.permute.xlu0 0
  %1992 = vperm.xlu0 %1991, %v1934
  %v1993 = vpop.permute.xlu0 %1992
  %1994 = vset.pattern.permute.xlu0 0
  %1995 = vperm.xlu0 %1994, %v1936
  %v1996 = vpop.permute.xlu0 %1995
  %1997 = vset.pattern.permute.xlu0 0
  %1998 = vperm.xlu0 %1997, %v1938
  %v1999 = vpop.permute.xlu0 %1998
  %2000 = vset.pattern.permute.xlu0 0
  %2001 = vperm.xlu0 %2000, %v1940
  %v2002 = vpop.permute.xlu0 %2001
  %2003 = vset.pattern.permute.xlu0 0
  %2004 = vperm.xlu0 %2003, %v1942
  %v2005 = vpop.permute.xlu0 %2004
  %2006 = vset.pattern.permute.xlu0 0
  %2007 = vperm.xlu0 %2006, %v1944
  %v2008 = vpop.permute.xlu0 %2007
  %v2009 = vlaneseq
  %v2010 = vshrl.u32 %v2009, 7
  %v2011 = vsub.s32 %v868, %v2010
  %v2012 = vrot.slane %v1963, %v2011
  %v2013 = vlaneseq
  %v2014 = vshrl.u32 %v2013, 7
  %v2015 = vsub.s32 %v873, %v2014
  %v2016 = vrot.slane %v1966, %v2015
  %v2017 = vsel %vm878, %v2016, %v2012
  %v2018 = vlaneseq
  %v2019 = vshrl.u32 %v2018, 7
  %v2020 = vsub.s32 %v880, %v2019
  %v2021 = vrot.slane %v1969, %v2020
  %v2022 = vsel %vm885, %v2021, %v2017
  %v2023 = vlaneseq
  %v2024 = vshrl.u32 %v2023, 7
  %v2025 = vsub.s32 %v887, %v2024
  %v2026 = vrot.slane %v1972, %v2025
  %v2027 = vsel %vm892, %v2026, %v2022
  %v2028 = vlaneseq
  %v2029 = vshrl.u32 %v2028, 7
  %v2030 = vsub.s32 %v894, %v2029
  %v2031 = vrot.slane %v1975, %v2030
  %v2032 = vsel %vm899, %v2031, %v2027
  %v2033 = vlaneseq
  %v2034 = vshrl.u32 %v2033, 7
  %v2035 = vsub.s32 %v901, %v2034
  %v2036 = vrot.slane %v1978, %v2035
  %v2037 = vsel %vm906, %v2036, %v2032
  %v2038 = vlaneseq
  %v2039 = vshrl.u32 %v2038, 7
  %v2040 = vsub.s32 %v908, %v2039
  %v2041 = vrot.slane %v1981, %v2040
  %v2042 = vsel %vm913, %v2041, %v2037
  %v2043 = vlaneseq
  %v2044 = vshrl.u32 %v2043, 7
  %v2045 = vsub.s32 %v915, %v2044
  %v2046 = vrot.slane %v1984, %v2045
  %v2047 = vsel %vm920, %v2046, %v2042
  %v2048 = vlaneseq
  %v2049 = vshrl.u32 %v2048, 7
  %v2050 = vsub.s32 %v868, %v2049
  %v2051 = vrot.slane %v1987, %v2050
  %v2052 = vlaneseq
  %v2053 = vshrl.u32 %v2052, 7
  %v2054 = vsub.s32 %v873, %v2053
  %v2055 = vrot.slane %v1990, %v2054
  %v2056 = vsel %vm878, %v2055, %v2051
  %v2057 = vlaneseq
  %v2058 = vshrl.u32 %v2057, 7
  %v2059 = vsub.s32 %v880, %v2058
  %v2060 = vrot.slane %v1993, %v2059
  %v2061 = vsel %vm885, %v2060, %v2056
  %v2062 = vlaneseq
  %v2063 = vshrl.u32 %v2062, 7
  %v2064 = vsub.s32 %v887, %v2063
  %v2065 = vrot.slane %v1996, %v2064
  %v2066 = vsel %vm892, %v2065, %v2061
  %v2067 = vlaneseq
  %v2068 = vshrl.u32 %v2067, 7
  %v2069 = vsub.s32 %v894, %v2068
  %v2070 = vrot.slane %v1999, %v2069
  %v2071 = vsel %vm899, %v2070, %v2066
  %v2072 = vlaneseq
  %v2073 = vshrl.u32 %v2072, 7
  %v2074 = vsub.s32 %v901, %v2073
  %v2075 = vrot.slane %v2002, %v2074
  %v2076 = vsel %vm906, %v2075, %v2071
  %v2077 = vlaneseq
  %v2078 = vshrl.u32 %v2077, 7
  %v2079 = vsub.s32 %v908, %v2078
  %v2080 = vrot.slane %v2005, %v2079
  %v2081 = vsel %vm913, %v2080, %v2076
  %v2082 = vlaneseq
  %v2083 = vshrl.u32 %v2082, 7
  %v2084 = vsub.s32 %v915, %v2083
  %v2085 = vrot.slane %v2008, %v2084
  %v2086 = vsel %vm920, %v2085, %v2081
  %v2087 = vsel %vm439, %v2086, %v2047
  %v2089 = vsel %vm963, %v2087, 0.0
  %2090 = vadd.xlane.f32.xlu0 %v2089
  %v2091 = vpop.xlane.xlu0 %2090
  %v2092 = vrcp.pop %v2091
  %v2094 = vlaneseq
  %v2095 = vshrl.u32 %v2094, 7
  %v2096 = vsub.s32 0, %v2095
  %v2097 = vrot.slane %v2092, %v2096
  %v2098 = vlaneseq
  %v2099 = vshrl.u32 %v2098, 7
  %v2100 = vsub.s32 1, %v2099
  %v2101 = vrot.slane %v2092, %v2100
  %v2104 = vmul.f32 %v1914, %v2097
  %v2105 = vmul.f32 %v1916, %v2097
  %v2106 = vmul.f32 %v1918, %v2097
  %v2107 = vmul.f32 %v1920, %v2097
  %v2108 = vmul.f32 %v1922, %v2097
  %v2109 = vmul.f32 %v1924, %v2097
  %v2110 = vmul.f32 %v1926, %v2097
  %v2111 = vmul.f32 %v1928, %v2097
  %v2112 = vmul.f32 %v1930, %v2101
  %v2113 = vmul.f32 %v1932, %v2101
  %v2114 = vmul.f32 %v1934, %v2101
  %v2115 = vmul.f32 %v1936, %v2101
  %v2116 = vmul.f32 %v1938, %v2101
  %v2117 = vmul.f32 %v1940, %v2101
  %v2118 = vmul.f32 %v1942, %v2101
  %v2119 = vmul.f32 %v1944, %v2101
  %v2120 = vpack.c.bf16 %v2105, %v2104
  %v2121 = vpack.c.bf16 %v2107, %v2106
  %v2122 = vpack.c.bf16 %v2109, %v2108
  %v2123 = vpack.c.bf16 %v2111, %v2110
  %v2124 = vpack.c.bf16 %v2113, %v2112
  %v2125 = vpack.c.bf16 %v2115, %v2114
  %v2126 = vpack.c.bf16 %v2117, %v2116
  %v2127 = vpack.c.bf16 %v2119, %v2118
  %v2132 = vunpack.c.l.b16 %v2120
  %v2133 = vunpack.c.h.b16 %v2120
  %v2134 = vunpack.c.l.b16 %v2121
  %v2135 = vunpack.c.h.b16 %v2121
  %v2136 = vunpack.c.l.b16 %v2122
  %v2137 = vunpack.c.h.b16 %v2122
  %v2138 = vunpack.c.l.b16 %v2123
  %v2139 = vunpack.c.h.b16 %v2123
  %2140 = vset.pattern.permute.xlu0 0
  %2141 = vperm.xlu0 %2140, %v2132
  %v2142 = vpop.permute.xlu0 %2141
  %2143 = vset.pattern.permute.xlu0 0
  %2144 = vperm.xlu0 %2143, %v2133
  %v2145 = vpop.permute.xlu0 %2144
  %2146 = vset.pattern.permute.xlu0 0
  %2147 = vperm.xlu0 %2146, %v2134
  %v2148 = vpop.permute.xlu0 %2147
  %2149 = vset.pattern.permute.xlu0 0
  %2150 = vperm.xlu0 %2149, %v2135
  %v2151 = vpop.permute.xlu0 %2150
  %2152 = vset.pattern.permute.xlu0 0
  %2153 = vperm.xlu0 %2152, %v2136
  %v2154 = vpop.permute.xlu0 %2153
  %2155 = vset.pattern.permute.xlu0 0
  %2156 = vperm.xlu0 %2155, %v2137
  %v2157 = vpop.permute.xlu0 %2156
  %2158 = vset.pattern.permute.xlu0 0
  %2159 = vperm.xlu0 %2158, %v2138
  %v2160 = vpop.permute.xlu0 %2159
  %2161 = vset.pattern.permute.xlu0 0
  %2162 = vperm.xlu0 %2161, %v2139
  %v2163 = vpop.permute.xlu0 %2162
  %v2164 = vlaneseq
  %v2165 = vshrl.u32 %v2164, 7
  %v2166 = vsub.s32 %v868, %v2165
  %v2167 = vrot.slane %v2142, %v2166
  %v2168 = vlaneseq
  %v2169 = vshrl.u32 %v2168, 7
  %v2170 = vsub.s32 %v873, %v2169
  %v2171 = vrot.slane %v2145, %v2170
  %v2172 = vsel %vm878, %v2171, %v2167
  %v2173 = vlaneseq
  %v2174 = vshrl.u32 %v2173, 7
  %v2175 = vsub.s32 %v880, %v2174
  %v2176 = vrot.slane %v2148, %v2175
  %v2177 = vsel %vm885, %v2176, %v2172
  %v2178 = vlaneseq
  %v2179 = vshrl.u32 %v2178, 7
  %v2180 = vsub.s32 %v887, %v2179
  %v2181 = vrot.slane %v2151, %v2180
  %v2182 = vsel %vm892, %v2181, %v2177
  %v2183 = vlaneseq
  %v2184 = vshrl.u32 %v2183, 7
  %v2185 = vsub.s32 %v894, %v2184
  %v2186 = vrot.slane %v2154, %v2185
  %v2187 = vsel %vm899, %v2186, %v2182
  %v2188 = vlaneseq
  %v2189 = vshrl.u32 %v2188, 7
  %v2190 = vsub.s32 %v901, %v2189
  %v2191 = vrot.slane %v2157, %v2190
  %v2192 = vsel %vm906, %v2191, %v2187
  %v2193 = vlaneseq
  %v2194 = vshrl.u32 %v2193, 7
  %v2195 = vsub.s32 %v908, %v2194
  %v2196 = vrot.slane %v2160, %v2195
  %v2197 = vsel %vm913, %v2196, %v2192
  %v2198 = vlaneseq
  %v2199 = vshrl.u32 %v2198, 7
  %v2200 = vsub.s32 %v915, %v2199
  %v2201 = vrot.slane %v2163, %v2200
  %v2202 = vsel %vm920, %v2201, %v2197
  %v2203 = vpack.c.b16 %v2202, %v2202
  %v2205 = vsel %vm1285, %v2203, 0
  %2207 = vmatprep.subr.bf16.mxu0 0
  %2208 = vmatpush1.bf16.msra.mxu0 %v271
  %2209 = vmatprep.subr.bf16.mxu0 0
  %2210 = vmatpush1.bf16.msra.mxu0 %v272
  %2211 = vmatprep.subr.bf16.mxu0 0
  %2212 = vmatpush1.bf16.msra.mxu0 %v273
  %2213 = vmatprep.subr.bf16.mxu0 0
  %2214 = vmatpush1.bf16.msra.mxu0 %v274
  %2215 = vmatprep.subr.bf16.mxu0 0
  %2216 = vmatpush1.bf16.msra.mxu0 0
  %2217 = vmatprep.subr.bf16.mxu0 0
  %2218 = vmatpush1.bf16.msra.mxu0 0
  %2219 = vmatprep.subr.bf16.mxu0 0
  %2220 = vmatpush1.bf16.msra.mxu0 0
  %2221 = vmatprep.subr.bf16.mxu0 0
  %2222 = vmatpush1.bf16.msra.mxu0 0
  %2223 = vmatprep.subr.bf16.mxu0 0
  %2224 = vmatpush1.bf16.msra.mxu0 0
  %2225 = vmatprep.subr.bf16.mxu0 0
  %2226 = vmatpush1.bf16.msra.mxu0 0
  %2227 = vmatprep.subr.bf16.mxu0 0
  %2228 = vmatpush1.bf16.msra.mxu0 0
  %2229 = vmatprep.subr.bf16.mxu0 0
  %2230 = vmatpush1.bf16.msra.mxu0 0
  %2231 = vmatprep.subr.bf16.mxu0 0
  %2232 = vmatpush1.bf16.msra.mxu0 0
  %2233 = vmatprep.subr.bf16.mxu0 0
  %2234 = vmatpush1.bf16.msra.mxu0 0
  %2235 = vmatprep.subr.bf16.mxu0 0
  %2236 = vmatpush1.bf16.msra.mxu0 0
  %2237 = vmatprep.subr.bf16.mxu0 0
  %2238 = vmatpush1.bf16.msra.mxu0 0
  %2239 = vmatprep.mubr.bf16.mxu0 0
  %2240 = vmatmul.mubr.bf16.gmra.mrb[0].mxu0 %v2205
  %v2241 = vpop.f32.mrb[0].mxu0
  %v2242 = vadd.f32 0.0, %v2241
  %v2243 = vpop.f32.mrb[0].mxu0
  %v2244 = vpop.f32.mrb[0].mxu0
  %v2245 = vpop.f32.mrb[0].mxu0
  %2246 = vdwg.mxu0
  %v2251 = vunpack.c.l.b16 %v2124
  %v2252 = vunpack.c.h.b16 %v2124
  %v2253 = vunpack.c.l.b16 %v2125
  %v2254 = vunpack.c.h.b16 %v2125
  %v2255 = vunpack.c.l.b16 %v2126
  %v2256 = vunpack.c.h.b16 %v2126
  %v2257 = vunpack.c.l.b16 %v2127
  %v2258 = vunpack.c.h.b16 %v2127
  %2259 = vset.pattern.permute.xlu0 0
  %2260 = vperm.xlu0 %2259, %v2251
  %v2261 = vpop.permute.xlu0 %2260
  %2262 = vset.pattern.permute.xlu0 0
  %2263 = vperm.xlu0 %2262, %v2252
  %v2264 = vpop.permute.xlu0 %2263
  %2265 = vset.pattern.permute.xlu0 0
  %2266 = vperm.xlu0 %2265, %v2253
  %v2267 = vpop.permute.xlu0 %2266
  %2268 = vset.pattern.permute.xlu0 0
  %2269 = vperm.xlu0 %2268, %v2254
  %v2270 = vpop.permute.xlu0 %2269
  %2271 = vset.pattern.permute.xlu0 0
  %2272 = vperm.xlu0 %2271, %v2255
  %v2273 = vpop.permute.xlu0 %2272
  %2274 = vset.pattern.permute.xlu0 0
  %2275 = vperm.xlu0 %2274, %v2256
  %v2276 = vpop.permute.xlu0 %2275
  %2277 = vset.pattern.permute.xlu0 0
  %2278 = vperm.xlu0 %2277, %v2257
  %v2279 = vpop.permute.xlu0 %2278
  %2280 = vset.pattern.permute.xlu0 0
  %2281 = vperm.xlu0 %2280, %v2258
  %v2282 = vpop.permute.xlu0 %2281
  %v2283 = vlaneseq
  %v2284 = vshrl.u32 %v2283, 7
  %v2285 = vsub.s32 %v868, %v2284
  %v2286 = vrot.slane %v2261, %v2285
  %v2287 = vlaneseq
  %v2288 = vshrl.u32 %v2287, 7
  %v2289 = vsub.s32 %v873, %v2288
  %v2290 = vrot.slane %v2264, %v2289
  %v2291 = vsel %vm878, %v2290, %v2286
  %v2292 = vlaneseq
  %v2293 = vshrl.u32 %v2292, 7
  %v2294 = vsub.s32 %v880, %v2293
  %v2295 = vrot.slane %v2267, %v2294
  %v2296 = vsel %vm885, %v2295, %v2291
  %v2297 = vlaneseq
  %v2298 = vshrl.u32 %v2297, 7
  %v2299 = vsub.s32 %v887, %v2298
  %v2300 = vrot.slane %v2270, %v2299
  %v2301 = vsel %vm892, %v2300, %v2296
  %v2302 = vlaneseq
  %v2303 = vshrl.u32 %v2302, 7
  %v2304 = vsub.s32 %v894, %v2303
  %v2305 = vrot.slane %v2273, %v2304
  %v2306 = vsel %vm899, %v2305, %v2301
  %v2307 = vlaneseq
  %v2308 = vshrl.u32 %v2307, 7
  %v2309 = vsub.s32 %v901, %v2308
  %v2310 = vrot.slane %v2276, %v2309
  %v2311 = vsel %vm906, %v2310, %v2306
  %v2312 = vlaneseq
  %v2313 = vshrl.u32 %v2312, 7
  %v2314 = vsub.s32 %v908, %v2313
  %v2315 = vrot.slane %v2279, %v2314
  %v2316 = vsel %vm913, %v2315, %v2311
  %v2317 = vlaneseq
  %v2318 = vshrl.u32 %v2317, 7
  %v2319 = vsub.s32 %v915, %v2318
  %v2320 = vrot.slane %v2282, %v2319
  %v2321 = vsel %vm920, %v2320, %v2316
  %v2322 = vpack.c.b16 %v2321, %v2321
  %v2324 = vsel %vm1285, %v2322, 0
  %2326 = vmatprep.subr.bf16.mxu0 0
  %2327 = vmatpush1.bf16.msra.mxu0 %v275
  %2328 = vmatprep.subr.bf16.mxu0 0
  %2329 = vmatpush1.bf16.msra.mxu0 %v276
  %2330 = vmatprep.subr.bf16.mxu0 0
  %2331 = vmatpush1.bf16.msra.mxu0 %v277
  %2332 = vmatprep.subr.bf16.mxu0 0
  %2333 = vmatpush1.bf16.msra.mxu0 %v278
  %2334 = vmatprep.subr.bf16.mxu0 0
  %2335 = vmatpush1.bf16.msra.mxu0 0
  %2336 = vmatprep.subr.bf16.mxu0 0
  %2337 = vmatpush1.bf16.msra.mxu0 0
  %2338 = vmatprep.subr.bf16.mxu0 0
  %2339 = vmatpush1.bf16.msra.mxu0 0
  %2340 = vmatprep.subr.bf16.mxu0 0
  %2341 = vmatpush1.bf16.msra.mxu0 0
  %2342 = vmatprep.subr.bf16.mxu0 0
  %2343 = vmatpush1.bf16.msra.mxu0 0
  %2344 = vmatprep.subr.bf16.mxu0 0
  %2345 = vmatpush1.bf16.msra.mxu0 0
  %2346 = vmatprep.subr.bf16.mxu0 0
  %2347 = vmatpush1.bf16.msra.mxu0 0
  %2348 = vmatprep.subr.bf16.mxu0 0
  %2349 = vmatpush1.bf16.msra.mxu0 0
  %2350 = vmatprep.subr.bf16.mxu0 0
  %2351 = vmatpush1.bf16.msra.mxu0 0
  %2352 = vmatprep.subr.bf16.mxu0 0
  %2353 = vmatpush1.bf16.msra.mxu0 0
  %2354 = vmatprep.subr.bf16.mxu0 0
  %2355 = vmatpush1.bf16.msra.mxu0 0
  %2356 = vmatprep.subr.bf16.mxu0 0
  %2357 = vmatpush1.bf16.msra.mxu0 0
  %2358 = vmatprep.mubr.bf16.mxu0 0
  %2359 = vmatmul.mubr.bf16.gmra.mrb[0].mxu0 %v2324
  %v2360 = vpop.f32.mrb[0].mxu0
  %v2361 = vadd.f32 0.0, %v2360
  %v2362 = vpop.f32.mrb[0].mxu0
  %v2363 = vpop.f32.mrb[0].mxu0
  %v2364 = vpop.f32.mrb[0].mxu0
  %2365 = vdwg.mxu0
  %v2366 = vpack.c.bf16 %v2242, %v2242
  %v2367 = vpack.c.bf16 %v2361, %v2361
  %v2370 = vunpack.c.l.b16 %v2366
  %v2371 = vunpack.c.l.b16 %v2367
  %v2372 = vrot.slane %v2371, 7
  %v2373 = vsel %vm439, %v2372, %v2370
  %v2374 = vpack.c.b16 %v2373, %v2373
  %v2376 = vsel %vm225, %v2374, 0
  %2378 = vmatprep.subr.bf16.mxu0 0
  %2379 = vmatpush1.bf16.msra.mxu0 %v1465
  %2380 = vmatprep.subr.bf16.mxu0 0
  %2381 = vmatpush1.bf16.msra.mxu0 %v1466
  %2382 = vmatprep.subr.bf16.mxu0 0
  %2383 = vmatpush1.bf16.msra.mxu0 0
  %2384 = vmatprep.subr.bf16.mxu0 0
  %2385 = vmatpush1.bf16.msra.mxu0 0
  %2386 = vmatprep.subr.bf16.mxu0 0
  %2387 = vmatpush1.bf16.msra.mxu0 0
  %2388 = vmatprep.subr.bf16.mxu0 0
  %2389 = vmatpush1.bf16.msra.mxu0 0
  %2390 = vmatprep.subr.bf16.mxu0 0
  %2391 = vmatpush1.bf16.msra.mxu0 0
  %2392 = vmatprep.subr.bf16.mxu0 0
  %2393 = vmatpush1.bf16.msra.mxu0 0
  %2394 = vmatprep.subr.bf16.mxu0 0
  %2395 = vmatpush1.bf16.msra.mxu0 0
  %2396 = vmatprep.subr.bf16.mxu0 0
  %2397 = vmatpush1.bf16.msra.mxu0 0
  %2398 = vmatprep.subr.bf16.mxu0 0
  %2399 = vmatpush1.bf16.msra.mxu0 0
  %2400 = vmatprep.subr.bf16.mxu0 0
  %2401 = vmatpush1.bf16.msra.mxu0 0
  %2402 = vmatprep.subr.bf16.mxu0 0
  %2403 = vmatpush1.bf16.msra.mxu0 0
  %2404 = vmatprep.subr.bf16.mxu0 0
  %2405 = vmatpush1.bf16.msra.mxu0 0
  %2406 = vmatprep.subr.bf16.mxu0 0
  %2407 = vmatpush1.bf16.msra.mxu0 0
  %2408 = vmatprep.subr.bf16.mxu0 0
  %2409 = vmatpush1.bf16.msra.mxu0 0
  %2410 = vmatprep.mubr.bf16.mxu0 0
  %2411 = vmatmul.mubr.bf16.gmra.mrb[0].mxu0 %v2376
  %v2412 = vpop.f32.mrb[0].mxu0
  %v2413 = vadd.f32 0.0, %v2412
  %v2414 = vpop.f32.mrb[0].mxu0
  %v2415 = vpop.f32.mrb[0].mxu0
  %v2416 = vpop.f32.mrb[0].mxu0
  %2417 = vdwg.mxu0
  %2419 = vrot.lane.b32.xlu0 %v2413, 96
  %v2420 = vpop.permute.xlu0 %2419
  %v2422 = vadd.f32 %v1636, %v2420
  %v2423 = vtanh.pop %v2422
  %v2424 = vpack.c.bf16 %v2423, %v2423
  %s2425 = scalar_lea.vmem %s1, 2
  %v2426 = vld [vmem:[%s2425] sm:$0x1]
  %2428 = vrot.lane.b32.xlu0 %v2424, 48
  %v2429 = vpop.permute.xlu0 %2428
  %v2432 = vsel %vm87, %v2426, %v2429
  %v2433 = vsel %vm225, %v2432, 0
  %2435 = vmatprep.subr.bf16.mxu0 0
  %2436 = vmatpush1.bf16.msra.mxu0 %v583
  %2437 = vmatprep.subr.bf16.mxu0 0
  %2438 = vmatpush1.bf16.msra.mxu0 %v584
  %2439 = vmatprep.subr.bf16.mxu0 0
  %2440 = vmatpush1.bf16.msra.mxu0 0
  %2441 = vmatprep.subr.bf16.mxu0 0
  %2442 = vmatpush1.bf16.msra.mxu0 0
  %2443 = vmatprep.subr.bf16.mxu0 0
  %2444 = vmatpush1.bf16.msra.mxu0 0
  %2445 = vmatprep.subr.bf16.mxu0 0
  %2446 = vmatpush1.bf16.msra.mxu0 0
  %2447 = vmatprep.subr.bf16.mxu0 0
  %2448 = vmatpush1.bf16.msra.mxu0 0
  %2449 = vmatprep.subr.bf16.mxu0 0
  %2450 = vmatpush1.bf16.msra.mxu0 0
  %2451 = vmatprep.subr.bf16.mxu0 0
  %2452 = vmatpush1.bf16.msra.mxu0 0
  %2453 = vmatprep.subr.bf16.mxu0 0
  %2454 = vmatpush1.bf16.msra.mxu0 0
  %2455 = vmatprep.subr.bf16.mxu0 0
  %2456 = vmatpush1.bf16.msra.mxu0 0
  %2457 = vmatprep.subr.bf16.mxu0 0
  %2458 = vmatpush1.bf16.msra.mxu0 0
  %2459 = vmatprep.subr.bf16.mxu0 0
  %2460 = vmatpush1.bf16.msra.mxu0 0
  %2461 = vmatprep.subr.bf16.mxu0 0
  %2462 = vmatpush1.bf16.msra.mxu0 0
  %2463 = vmatprep.subr.bf16.mxu0 0
  %2464 = vmatpush1.bf16.msra.mxu0 0
  %2465 = vmatprep.subr.bf16.mxu0 0
  %2466 = vmatpush1.bf16.msra.mxu0 0
  %2467 = vmatprep.mubr.bf16.mxu0 0
  %2468 = vmatmul.mubr.bf16.gmra.mrb[0].mxu0 %v2433
  %v2469 = vpop.f32.mrb[0].mxu0
  %v2470 = vadd.f32 %v1636, %v2469
  %v2471 = vpop.f32.mrb[0].mxu0
  %v2472 = vpop.f32.mrb[0].mxu0
  %v2473 = vpop.f32.mrb[0].mxu0
  %2474 = vdwg.mxu0
  %v2475 = vadd.f32 %v2470, %v514
  %v2476 = vxor.u32 %v2475, 2147483648
  %v2477 = vmul.f32 %v2476, 1.442695
  %v2478 = vpow.pop %v2477
  %v2479 = vadd.f32 %v2478, 1.0
  %v2480 = vrcp.pop %v2479
  %v2481 = vmul.f32 1.0, %v2480
  %v2482 = vtanh.pop %v2475
  %v2483 = vmul.f32 %v2481, %v1587
  %2485 = vrot.lane.b32.xlu0 %v2482, 96
  %v2486 = vpop.permute.xlu0 %2485
  %v2488 = vmul.f32 %v2481, %v2486
  %2490 = vrot.lane.b32.xlu0 %v2488, 16
  %v2491 = vpop.permute.xlu0 %2490
  %v2493 = vadd.f32 %v2483, %v2491
  %v2494 = vtanh.pop %v2493
  %2496 = vrot.lane.b32.xlu0 %v2494, 32
  %v2497 = vpop.permute.xlu0 %2496
  %v2499 = vmul.f32 %v2481, %v2497
  %v2500 = vpack.c.bf16 %v2499, %v2499
  %2502 = vrot.lane.b32.xlu0 %v2500, 80
  %v2503 = vpop.permute.xlu0 %2502
  %v2505 = vsel %vm87, %v2503, 0
  %2507 = vmatprep.subr.bf16.mxu0 0
  %2508 = vmatpush1.bf16.msra.mxu0 %v526
  %2509 = vmatprep.subr.bf16.mxu0 0
  %2510 = vmatpush1.bf16.msra.mxu0 0
  %2511 = vmatprep.subr.bf16.mxu0 0
  %2512 = vmatpush1.bf16.msra.mxu0 0
  %2513 = vmatprep.subr.bf16.mxu0 0
  %2514 = vmatpush1.bf16.msra.mxu0 0
  %2515 = vmatprep.subr.bf16.mxu0 0
  %2516 = vmatpush1.bf16.msra.mxu0 0
  %2517 = vmatprep.subr.bf16.mxu0 0
  %2518 = vmatpush1.bf16.msra.mxu0 0
  %2519 = vmatprep.subr.bf16.mxu0 0
  %2520 = vmatpush1.bf16.msra.mxu0 0
  %2521 = vmatprep.subr.bf16.mxu0 0
  %2522 = vmatpush1.bf16.msra.mxu0 0
  %2523 = vmatprep.subr.bf16.mxu0 0
  %2524 = vmatpush1.bf16.msra.mxu0 0
  %2525 = vmatprep.subr.bf16.mxu0 0
  %2526 = vmatpush1.bf16.msra.mxu0 0
  %2527 = vmatprep.subr.bf16.mxu0 0
  %2528 = vmatpush1.bf16.msra.mxu0 0
  %2529 = vmatprep.subr.bf16.mxu0 0
  %2530 = vmatpush1.bf16.msra.mxu0 0
  %2531 = vmatprep.subr.bf16.mxu0 0
  %2532 = vmatpush1.bf16.msra.mxu0 0
  %2533 = vmatprep.subr.bf16.mxu0 0
  %2534 = vmatpush1.bf16.msra.mxu0 0
  %2535 = vmatprep.subr.bf16.mxu0 0
  %2536 = vmatpush1.bf16.msra.mxu0 0
  %2537 = vmatprep.subr.bf16.mxu0 0
  %2538 = vmatpush1.bf16.msra.mxu0 0
  %2539 = vmatprep.mubr.bf16.mxu0 0
  %2540 = vmatmul.mubr.bf16.gmra.mrb[0].mxu0 %v2505
  %v2541 = vpop.f32.mrb[0].mxu0
  %v2542 = vadd.f32 %v519, %v2541
  %v2543 = vpop.f32.mrb[0].mxu0
  %v2544 = vpop.f32.mrb[0].mxu0
  %v2545 = vpop.f32.mrb[0].mxu0
  %2546 = vdwg.mxu0
  %v2547 = vpack.c.bf16 %v2542, %v2542
  %v2550 = vunpack.c.l.s4 1966171168
  %v2551 = vunpack.c.0.s8 %v2550
  %v2552 = vlaneseq
  %v2553 = vshrl.u32 %v2552, 7
  %v2554 = vsub.s32 %v2551, %v2553
  %v2555 = vrot.slane %v2547, %v2554
  %v2557 = vunpack.c.l.s4 1966171168
  %v2558 = vunpack.c.0.s8 %v2557
  %v2559 = vlaneseq
  %v2560 = vshrl.u32 %v2559, 7
  %v2561 = vsub.s32 %v2558, %v2560
  %v2562 = vrot.slane %v2555, %v2561
  %v2563 = vunpack.i.l.s16 %v2562
  %v2564 = vunpack.i.h.s16 %v2562
  %v2565 = vpack.i.b16 %v2563, %v2563
  %v2566 = vpack.i.b16 %v2564, %v2564
  %v2567 = vlaneseq
  %v2568 = vshrl.u32 %v2567, 7
  %v2569 = vsub.s32 0, %v2568
  %v2570 = vrot.slane %v2565, %v2569
  %v2571 = vlaneseq
  %v2572 = vshrl.u32 %v2571, 7
  %v2573 = vsub.s32 0, %v2572
  %v2574 = vrot.slane %v2566, %v2573
  %v2576 = vpack.i.b16 %v2570, %v2570
  %v2578 = vlaneseq
  %v2579 = vshrl.u32 %v2578, 7
  %v2580 = vsub.s32 0, %v2579
  %v2581 = vrot.slane %v2576, %v2580
  %v2583 = vpack.i.b16 %v2574, %v2574
  %v2585 = vlaneseq
  %v2586 = vshrl.u32 %v2585, 7
  %v2587 = vsub.s32 0, %v2586
  %v2588 = vrot.slane %v2583, %v2587
  %2591 = vrot.lane.b32.xlu0 %v2581, 64
  %v2592 = vpop.permute.xlu0 %2591
  %2593 = vrot.lane.b32.xlu0 %v2588, 64
  %v2594 = vpop.permute.xlu0 %2593
  %v2597 = vadd.bf16 %v416, %v2592
  %v2598 = vadd.bf16 %v417, %v2592
  %v2599 = vadd.bf16 %v418, %v2592
  %v2600 = vadd.bf16 %v419, %v2592
  %v2601 = vadd.bf16 %v420, %v2594
  %v2602 = vadd.bf16 %v421, %v2594
  %v2603 = vadd.bf16 %v422, %v2594
  %v2604 = vadd.bf16 %v423, %v2594
  %v2605 = vtanh.bf16.pop %v2597
  %v2606 = vtanh.bf16.pop %v2598
  %v2607 = vtanh.bf16.pop %v2599
  %v2608 = vtanh.bf16.pop %v2600
  %v2609 = vtanh.bf16.pop %v2601
  %v2610 = vtanh.bf16.pop %v2602
  %v2611 = vtanh.bf16.pop %v2603
  %v2612 = vtanh.bf16.pop %v2604
  %v2613 = vunpack.c.l.bf16 %v2605
  %v2614 = vunpack.c.h.bf16 %v2605
  %v2615 = vunpack.c.l.bf16 %v2606
  %v2616 = vunpack.c.h.bf16 %v2606
  %v2617 = vunpack.c.l.bf16 %v2607
  %v2618 = vunpack.c.h.bf16 %v2607
  %v2619 = vunpack.c.l.bf16 %v2608
  %v2620 = vunpack.c.h.bf16 %v2608
  %v2621 = vunpack.c.l.bf16 %v2609
  %v2622 = vunpack.c.h.bf16 %v2609
  %v2623 = vunpack.c.l.bf16 %v2610
  %v2624 = vunpack.c.h.bf16 %v2610
  %v2625 = vunpack.c.l.bf16 %v2611
  %v2626 = vunpack.c.h.bf16 %v2611
  %v2627 = vunpack.c.l.bf16 %v2612
  %v2628 = vunpack.c.h.bf16 %v2612
  %v2629 = vmul.f32 %v2613, %v786
  %v2630 = vmul.f32 %v2614, %v786
  %v2631 = vmul.f32 %v2615, %v786
  %v2632 = vmul.f32 %v2616, %v786
  %v2633 = vmul.f32 %v2617, %v786
  %v2634 = vmul.f32 %v2618, %v786
  %v2635 = vmul.f32 %v2619, %v786
  %v2636 = vmul.f32 %v2620, %v786
  %v2637 = vmul.f32 %v2621, %v786
  %v2638 = vmul.f32 %v2622, %v786
  %v2639 = vmul.f32 %v2623, %v786
  %v2640 = vmul.f32 %v2624, %v786
  %v2641 = vmul.f32 %v2625, %v786
  %v2642 = vmul.f32 %v2626, %v786
  %v2643 = vmul.f32 %v2627, %v786
  %v2644 = vmul.f32 %v2628, %v786
  %v2645 = vsel %vm225, %v2629, 0.0
  %2646 = vadd.xlane.f32.xlu0 %v2645
  %v2647 = vpop.xlane.xlu0 %2646
  %v2648 = vsel %vm225, %v2630, 0.0
  %2649 = vadd.xlane.f32.xlu0 %v2648
  %v2650 = vpop.xlane.xlu0 %2649
  %v2651 = vsel %vm225, %v2631, 0.0
  %2652 = vadd.xlane.f32.xlu0 %v2651
  %v2653 = vpop.xlane.xlu0 %2652
  %v2654 = vsel %vm225, %v2632, 0.0
  %2655 = vadd.xlane.f32.xlu0 %v2654
  %v2656 = vpop.xlane.xlu0 %2655
  %v2657 = vsel %vm225, %v2633, 0.0
  %2658 = vadd.xlane.f32.xlu0 %v2657
  %v2659 = vpop.xlane.xlu0 %2658
  %v2660 = vsel %vm225, %v2634, 0.0
  %2661 = vadd.xlane.f32.xlu0 %v2660
  %v2662 = vpop.xlane.xlu0 %2661
  %v2663 = vsel %vm225, %v2635, 0.0
  %2664 = vadd.xlane.f32.xlu0 %v2663
  %v2665 = vpop.xlane.xlu0 %2664
  %v2666 = vsel %vm225, %v2636, 0.0
  %2667 = vadd.xlane.f32.xlu0 %v2666
  %v2668 = vpop.xlane.xlu0 %2667
  %v2669 = vsel %vm225, %v2637, 0.0
  %2670 = vadd.xlane.f32.xlu0 %v2669
  %v2671 = vpop.xlane.xlu0 %2670
  %v2672 = vsel %vm225, %v2638, 0.0
  %2673 = vadd.xlane.f32.xlu0 %v2672
  %v2674 = vpop.xlane.xlu0 %2673
  %v2675 = vsel %vm225, %v2639, 0.0
  %2676 = vadd.xlane.f32.xlu0 %v2675
  %v2677 = vpop.xlane.xlu0 %2676
  %v2678 = vsel %vm225, %v2640, 0.0
  %2679 = vadd.xlane.f32.xlu0 %v2678
  %v2680 = vpop.xlane.xlu0 %2679
  %v2681 = vsel %vm225, %v2641, 0.0
  %2682 = vadd.xlane.f32.xlu0 %v2681
  %v2683 = vpop.xlane.xlu0 %2682
  %v2684 = vsel %vm225, %v2642, 0.0
  %2685 = vadd.xlane.f32.xlu0 %v2684
  %v2686 = vpop.xlane.xlu0 %2685
  %v2687 = vsel %vm225, %v2643, 0.0
  %2688 = vadd.xlane.f32.xlu0 %v2687
  %v2689 = vpop.xlane.xlu0 %2688
  %v2690 = vsel %vm225, %v2644, 0.0
  %2691 = vadd.xlane.f32.xlu0 %v2690
  %v2692 = vpop.xlane.xlu0 %2691
  %v2709 = vlaneseq
  %v2710 = vshrl.u32 %v2709, 7
  %v2711 = vsub.s32 %v868, %v2710
  %v2712 = vrot.slane %v2647, %v2711
  %v2713 = vlaneseq
  %v2714 = vshrl.u32 %v2713, 7
  %v2715 = vsub.s32 %v873, %v2714
  %v2716 = vrot.slane %v2650, %v2715
  %v2717 = vsel %vm878, %v2716, %v2712
  %v2718 = vlaneseq
  %v2719 = vshrl.u32 %v2718, 7
  %v2720 = vsub.s32 %v880, %v2719
  %v2721 = vrot.slane %v2653, %v2720
  %v2722 = vsel %vm885, %v2721, %v2717
  %v2723 = vlaneseq
  %v2724 = vshrl.u32 %v2723, 7
  %v2725 = vsub.s32 %v887, %v2724
  %v2726 = vrot.slane %v2656, %v2725
  %v2727 = vsel %vm892, %v2726, %v2722
  %v2728 = vlaneseq
  %v2729 = vshrl.u32 %v2728, 7
  %v2730 = vsub.s32 %v894, %v2729
  %v2731 = vrot.slane %v2659, %v2730
  %v2732 = vsel %vm899, %v2731, %v2727
  %v2733 = vlaneseq
  %v2734 = vshrl.u32 %v2733, 7
  %v2735 = vsub.s32 %v901, %v2734
  %v2736 = vrot.slane %v2662, %v2735
  %v2737 = vsel %vm906, %v2736, %v2732
  %v2738 = vlaneseq
  %v2739 = vshrl.u32 %v2738, 7
  %v2740 = vsub.s32 %v908, %v2739
  %v2741 = vrot.slane %v2665, %v2740
  %v2742 = vsel %vm913, %v2741, %v2737
  %v2743 = vlaneseq
  %v2744 = vshrl.u32 %v2743, 7
  %v2745 = vsub.s32 %v915, %v2744
  %v2746 = vrot.slane %v2668, %v2745
  %v2747 = vsel %vm920, %v2746, %v2742
  %v2748 = vlaneseq
  %v2749 = vshrl.u32 %v2748, 7
  %v2750 = vsub.s32 %v868, %v2749
  %v2751 = vrot.slane %v2671, %v2750
  %v2752 = vlaneseq
  %v2753 = vshrl.u32 %v2752, 7
  %v2754 = vsub.s32 %v873, %v2753
  %v2755 = vrot.slane %v2674, %v2754
  %v2756 = vsel %vm878, %v2755, %v2751
  %v2757 = vlaneseq
  %v2758 = vshrl.u32 %v2757, 7
  %v2759 = vsub.s32 %v880, %v2758
  %v2760 = vrot.slane %v2677, %v2759
  %v2761 = vsel %vm885, %v2760, %v2756
  %v2762 = vlaneseq
  %v2763 = vshrl.u32 %v2762, 7
  %v2764 = vsub.s32 %v887, %v2763
  %v2765 = vrot.slane %v2680, %v2764
  %v2766 = vsel %vm892, %v2765, %v2761
  %v2767 = vlaneseq
  %v2768 = vshrl.u32 %v2767, 7
  %v2769 = vsub.s32 %v894, %v2768
  %v2770 = vrot.slane %v2683, %v2769
  %v2771 = vsel %vm899, %v2770, %v2766
  %v2772 = vlaneseq
  %v2773 = vshrl.u32 %v2772, 7
  %v2774 = vsub.s32 %v901, %v2773
  %v2775 = vrot.slane %v2686, %v2774
  %v2776 = vsel %vm906, %v2775, %v2771
  %v2777 = vlaneseq
  %v2778 = vshrl.u32 %v2777, 7
  %v2779 = vsub.s32 %v908, %v2778
  %v2780 = vrot.slane %v2689, %v2779
  %v2781 = vsel %vm913, %v2780, %v2776
  %v2782 = vlaneseq
  %v2783 = vshrl.u32 %v2782, 7
  %v2784 = vsub.s32 %v915, %v2783
  %v2785 = vrot.slane %v2692, %v2784
  %v2786 = vsel %vm920, %v2785, %v2781
  %v2787 = vsel %vm439, %v2786, %v2747
  %v2789 = vsel %vm963, %v2787, -inf
  %2790 = vmax.xlane.f32.xlu0 %v2789
  %v2791 = vpop.xlane.xlu0 %2790
  %v2793 = vlaneseq
  %v2794 = vshrl.u32 %v2793, 7
  %v2795 = vsub.s32 0, %v2794
  %v2796 = vrot.slane %v2791, %v2795
  %v2797 = vlaneseq
  %v2798 = vshrl.u32 %v2797, 7
  %v2799 = vsub.s32 1, %v2798
  %v2800 = vrot.slane %v2791, %v2799
  %v2803 = vsub.f32 %v2647, %v2796
  %v2804 = vsub.f32 %v2650, %v2796
  %v2805 = vsub.f32 %v2653, %v2796
  %v2806 = vsub.f32 %v2656, %v2796
  %v2807 = vsub.f32 %v2659, %v2796
  %v2808 = vsub.f32 %v2662, %v2796
  %v2809 = vsub.f32 %v2665, %v2796
  %v2810 = vsub.f32 %v2668, %v2796
  %v2811 = vsub.f32 %v2671, %v2800
  %v2812 = vsub.f32 %v2674, %v2800
  %v2813 = vsub.f32 %v2677, %v2800
  %v2814 = vsub.f32 %v2680, %v2800
  %v2815 = vsub.f32 %v2683, %v2800
  %v2816 = vsub.f32 %v2686, %v2800
  %v2817 = vsub.f32 %v2689, %v2800
  %v2818 = vsub.f32 %v2692, %v2800
  %v2819 = vmul.f32 %v2803, 1.442695
  %v2820 = vpow.pop %v2819
  %v2821 = vmul.f32 %v2804, 1.442695
  %v2822 = vpow.pop %v2821
  %v2823 = vmul.f32 %v2805, 1.442695
  %v2824 = vpow.pop %v2823
  %v2825 = vmul.f32 %v2806, 1.442695
  %v2826 = vpow.pop %v2825
  %v2827 = vmul.f32 %v2807, 1.442695
  %v2828 = vpow.pop %v2827
  %v2829 = vmul.f32 %v2808, 1.442695
  %v2830 = vpow.pop %v2829
  %v2831 = vmul.f32 %v2809, 1.442695
  %v2832 = vpow.pop %v2831
  %v2833 = vmul.f32 %v2810, 1.442695
  %v2834 = vpow.pop %v2833
  %v2835 = vmul.f32 %v2811, 1.442695
  %v2836 = vpow.pop %v2835
  %v2837 = vmul.f32 %v2812, 1.442695
  %v2838 = vpow.pop %v2837
  %v2839 = vmul.f32 %v2813, 1.442695
  %v2840 = vpow.pop %v2839
  %v2841 = vmul.f32 %v2814, 1.442695
  %v2842 = vpow.pop %v2841
  %v2843 = vmul.f32 %v2815, 1.442695
  %v2844 = vpow.pop %v2843
  %v2845 = vmul.f32 %v2816, 1.442695
  %v2846 = vpow.pop %v2845
  %v2847 = vmul.f32 %v2817, 1.442695
  %v2848 = vpow.pop %v2847
  %v2849 = vmul.f32 %v2818, 1.442695
  %v2850 = vpow.pop %v2849
  %2867 = vset.pattern.permute.xlu0 0
  %2868 = vperm.xlu0 %2867, %v2820
  %v2869 = vpop.permute.xlu0 %2868
  %2870 = vset.pattern.permute.xlu0 0
  %2871 = vperm.xlu0 %2870, %v2822
  %v2872 = vpop.permute.xlu0 %2871
  %2873 = vset.pattern.permute.xlu0 0
  %2874 = vperm.xlu0 %2873, %v2824
  %v2875 = vpop.permute.xlu0 %2874
  %2876 = vset.pattern.permute.xlu0 0
  %2877 = vperm.xlu0 %2876, %v2826
  %v2878 = vpop.permute.xlu0 %2877
  %2879 = vset.pattern.permute.xlu0 0
  %2880 = vperm.xlu0 %2879, %v2828
  %v2881 = vpop.permute.xlu0 %2880
  %2882 = vset.pattern.permute.xlu0 0
  %2883 = vperm.xlu0 %2882, %v2830
  %v2884 = vpop.permute.xlu0 %2883
  %2885 = vset.pattern.permute.xlu0 0
  %2886 = vperm.xlu0 %2885, %v2832
  %v2887 = vpop.permute.xlu0 %2886
  %2888 = vset.pattern.permute.xlu0 0
  %2889 = vperm.xlu0 %2888, %v2834
  %v2890 = vpop.permute.xlu0 %2889
  %2891 = vset.pattern.permute.xlu0 0
  %2892 = vperm.xlu0 %2891, %v2836
  %v2893 = vpop.permute.xlu0 %2892
  %2894 = vset.pattern.permute.xlu0 0
  %2895 = vperm.xlu0 %2894, %v2838
  %v2896 = vpop.permute.xlu0 %2895
  %2897 = vset.pattern.permute.xlu0 0
  %2898 = vperm.xlu0 %2897, %v2840
  %v2899 = vpop.permute.xlu0 %2898
  %2900 = vset.pattern.permute.xlu0 0
  %2901 = vperm.xlu0 %2900, %v2842
  %v2902 = vpop.permute.xlu0 %2901
  %2903 = vset.pattern.permute.xlu0 0
  %2904 = vperm.xlu0 %2903, %v2844
  %v2905 = vpop.permute.xlu0 %2904
  %2906 = vset.pattern.permute.xlu0 0
  %2907 = vperm.xlu0 %2906, %v2846
  %v2908 = vpop.permute.xlu0 %2907
  %2909 = vset.pattern.permute.xlu0 0
  %2910 = vperm.xlu0 %2909, %v2848
  %v2911 = vpop.permute.xlu0 %2910
  %2912 = vset.pattern.permute.xlu0 0
  %2913 = vperm.xlu0 %2912, %v2850
  %v2914 = vpop.permute.xlu0 %2913
  %v2915 = vlaneseq
  %v2916 = vshrl.u32 %v2915, 7
  %v2917 = vsub.s32 %v868, %v2916
  %v2918 = vrot.slane %v2869, %v2917
  %v2919 = vlaneseq
  %v2920 = vshrl.u32 %v2919, 7
  %v2921 = vsub.s32 %v873, %v2920
  %v2922 = vrot.slane %v2872, %v2921
  %v2923 = vsel %vm878, %v2922, %v2918
  %v2924 = vlaneseq
  %v2925 = vshrl.u32 %v2924, 7
  %v2926 = vsub.s32 %v880, %v2925
  %v2927 = vrot.slane %v2875, %v2926
  %v2928 = vsel %vm885, %v2927, %v2923
  %v2929 = vlaneseq
  %v2930 = vshrl.u32 %v2929, 7
  %v2931 = vsub.s32 %v887, %v2930
  %v2932 = vrot.slane %v2878, %v2931
  %v2933 = vsel %vm892, %v2932, %v2928
  %v2934 = vlaneseq
  %v2935 = vshrl.u32 %v2934, 7
  %v2936 = vsub.s32 %v894, %v2935
  %v2937 = vrot.slane %v2881, %v2936
  %v2938 = vsel %vm899, %v2937, %v2933
  %v2939 = vlaneseq
  %v2940 = vshrl.u32 %v2939, 7
  %v2941 = vsub.s32 %v901, %v2940
  %v2942 = vrot.slane %v2884, %v2941
  %v2943 = vsel %vm906, %v2942, %v2938
  %v2944 = vlaneseq
  %v2945 = vshrl.u32 %v2944, 7
  %v2946 = vsub.s32 %v908, %v2945
  %v2947 = vrot.slane %v2887, %v2946
  %v2948 = vsel %vm913, %v2947, %v2943
  %v2949 = vlaneseq
  %v2950 = vshrl.u32 %v2949, 7
  %v2951 = vsub.s32 %v915, %v2950
  %v2952 = vrot.slane %v2890, %v2951
  %v2953 = vsel %vm920, %v2952, %v2948
  %v2954 = vlaneseq
  %v2955 = vshrl.u32 %v2954, 7
  %v2956 = vsub.s32 %v868, %v2955
  %v2957 = vrot.slane %v2893, %v2956
  %v2958 = vlaneseq
  %v2959 = vshrl.u32 %v2958, 7
  %v2960 = vsub.s32 %v873, %v2959
  %v2961 = vrot.slane %v2896, %v2960
  %v2962 = vsel %vm878, %v2961, %v2957
  %v2963 = vlaneseq
  %v2964 = vshrl.u32 %v2963, 7
  %v2965 = vsub.s32 %v880, %v2964
  %v2966 = vrot.slane %v2899, %v2965
  %v2967 = vsel %vm885, %v2966, %v2962
  %v2968 = vlaneseq
  %v2969 = vshrl.u32 %v2968, 7
  %v2970 = vsub.s32 %v887, %v2969
  %v2971 = vrot.slane %v2902, %v2970
  %v2972 = vsel %vm892, %v2971, %v2967
  %v2973 = vlaneseq
  %v2974 = vshrl.u32 %v2973, 7
  %v2975 = vsub.s32 %v894, %v2974
  %v2976 = vrot.slane %v2905, %v2975
  %v2977 = vsel %vm899, %v2976, %v2972
  %v2978 = vlaneseq
  %v2979 = vshrl.u32 %v2978, 7
  %v2980 = vsub.s32 %v901, %v2979
  %v2981 = vrot.slane %v2908, %v2980
  %v2982 = vsel %vm906, %v2981, %v2977
  %v2983 = vlaneseq
  %v2984 = vshrl.u32 %v2983, 7
  %v2985 = vsub.s32 %v908, %v2984
  %v2986 = vrot.slane %v2911, %v2985
  %v2987 = vsel %vm913, %v2986, %v2982
  %v2988 = vlaneseq
  %v2989 = vshrl.u32 %v2988, 7
  %v2990 = vsub.s32 %v915, %v2989
  %v2991 = vrot.slane %v2914, %v2990
  %v2992 = vsel %vm920, %v2991, %v2987
  %v2993 = vsel %vm439, %v2992, %v2953
  %v2995 = vsel %vm963, %v2993, 0.0
  %2996 = vadd.xlane.f32.xlu0 %v2995
  %v2997 = vpop.xlane.xlu0 %2996
  %v2998 = vrcp.pop %v2997
  %v3000 = vlaneseq
  %v3001 = vshrl.u32 %v3000, 7
  %v3002 = vsub.s32 0, %v3001
  %v3003 = vrot.slane %v2998, %v3002
  %v3004 = vlaneseq
  %v3005 = vshrl.u32 %v3004, 7
  %v3006 = vsub.s32 1, %v3005
  %v3007 = vrot.slane %v2998, %v3006
  %v3010 = vmul.f32 %v2820, %v3003
  %v3011 = vmul.f32 %v2822, %v3003
  %v3012 = vmul.f32 %v2824, %v3003
  %v3013 = vmul.f32 %v2826, %v3003
  %v3014 = vmul.f32 %v2828, %v3003
  %v3015 = vmul.f32 %v2830, %v3003
  %v3016 = vmul.f32 %v2832, %v3003
  %v3017 = vmul.f32 %v2834, %v3003
  %v3018 = vmul.f32 %v2836, %v3007
  %v3019 = vmul.f32 %v2838, %v3007
  %v3020 = vmul.f32 %v2840, %v3007
  %v3021 = vmul.f32 %v2842, %v3007
  %v3022 = vmul.f32 %v2844, %v3007
  %v3023 = vmul.f32 %v2846, %v3007
  %v3024 = vmul.f32 %v2848, %v3007
  %v3025 = vmul.f32 %v2850, %v3007
  %v3026 = vpack.c.bf16 %v3011, %v3010
  %v3027 = vpack.c.bf16 %v3013, %v3012
  %v3028 = vpack.c.bf16 %v3015, %v3014
  %v3029 = vpack.c.bf16 %v3017, %v3016
  %v3030 = vpack.c.bf16 %v3019, %v3018
  %v3031 = vpack.c.bf16 %v3021, %v3020
  %v3032 = vpack.c.bf16 %v3023, %v3022
  %v3033 = vpack.c.bf16 %v3025, %v3024
  %v3038 = vunpack.c.l.b16 %v3026
  %v3039 = vunpack.c.h.b16 %v3026
  %v3040 = vunpack.c.l.b16 %v3027
  %v3041 = vunpack.c.h.b16 %v3027
  %v3042 = vunpack.c.l.b16 %v3028
  %v3043 = vunpack.c.h.b16 %v3028
  %v3044 = vunpack.c.l.b16 %v3029
  %v3045 = vunpack.c.h.b16 %v3029
  %3046 = vset.pattern.permute.xlu0 0
  %3047 = vperm.xlu0 %3046, %v3038
  %v3048 = vpop.permute.xlu0 %3047
  %3049 = vset.pattern.permute.xlu0 0
  %3050 = vperm.xlu0 %3049, %v3039
  %v3051 = vpop.permute.xlu0 %3050
  %3052 = vset.pattern.permute.xlu0 0
  %3053 = vperm.xlu0 %3052, %v3040
  %v3054 = vpop.permute.xlu0 %3053
  %3055 = vset.pattern.permute.xlu0 0
  %3056 = vperm.xlu0 %3055, %v3041
  %v3057 = vpop.permute.xlu0 %3056
  %3058 = vset.pattern.permute.xlu0 0
  %3059 = vperm.xlu0 %3058, %v3042
  %v3060 = vpop.permute.xlu0 %3059
  %3061 = vset.pattern.permute.xlu0 0
  %3062 = vperm.xlu0 %3061, %v3043
  %v3063 = vpop.permute.xlu0 %3062
  %3064 = vset.pattern.permute.xlu0 0
  %3065 = vperm.xlu0 %3064, %v3044
  %v3066 = vpop.permute.xlu0 %3065
  %3067 = vset.pattern.permute.xlu0 0
  %3068 = vperm.xlu0 %3067, %v3045
  %v3069 = vpop.permute.xlu0 %3068
  %v3070 = vlaneseq
  %v3071 = vshrl.u32 %v3070, 7
  %v3072 = vsub.s32 %v868, %v3071
  %v3073 = vrot.slane %v3048, %v3072
  %v3074 = vlaneseq
  %v3075 = vshrl.u32 %v3074, 7
  %v3076 = vsub.s32 %v873, %v3075
  %v3077 = vrot.slane %v3051, %v3076
  %v3078 = vsel %vm878, %v3077, %v3073
  %v3079 = vlaneseq
  %v3080 = vshrl.u32 %v3079, 7
  %v3081 = vsub.s32 %v880, %v3080
  %v3082 = vrot.slane %v3054, %v3081
  %v3083 = vsel %vm885, %v3082, %v3078
  %v3084 = vlaneseq
  %v3085 = vshrl.u32 %v3084, 7
  %v3086 = vsub.s32 %v887, %v3085
  %v3087 = vrot.slane %v3057, %v3086
  %v3088 = vsel %vm892, %v3087, %v3083
  %v3089 = vlaneseq
  %v3090 = vshrl.u32 %v3089, 7
  %v3091 = vsub.s32 %v894, %v3090
  %v3092 = vrot.slane %v3060, %v3091
  %v3093 = vsel %vm899, %v3092, %v3088
  %v3094 = vlaneseq
  %v3095 = vshrl.u32 %v3094, 7
  %v3096 = vsub.s32 %v901, %v3095
  %v3097 = vrot.slane %v3063, %v3096
  %v3098 = vsel %vm906, %v3097, %v3093
  %v3099 = vlaneseq
  %v3100 = vshrl.u32 %v3099, 7
  %v3101 = vsub.s32 %v908, %v3100
  %v3102 = vrot.slane %v3066, %v3101
  %v3103 = vsel %vm913, %v3102, %v3098
  %v3104 = vlaneseq
  %v3105 = vshrl.u32 %v3104, 7
  %v3106 = vsub.s32 %v915, %v3105
  %v3107 = vrot.slane %v3069, %v3106
  %v3108 = vsel %vm920, %v3107, %v3103
  %v3109 = vpack.c.b16 %v3108, %v3108
  %v3111 = vsel %vm1285, %v3109, 0
  %3113 = vmatprep.subr.bf16.mxu0 0
  %3114 = vmatpush1.bf16.msra.mxu0 %v271
  %3115 = vmatprep.subr.bf16.mxu0 0
  %3116 = vmatpush1.bf16.msra.mxu0 %v272
  %3117 = vmatprep.subr.bf16.mxu0 0
  %3118 = vmatpush1.bf16.msra.mxu0 %v273
  %3119 = vmatprep.subr.bf16.mxu0 0
  %3120 = vmatpush1.bf16.msra.mxu0 %v274
  %3121 = vmatprep.subr.bf16.mxu0 0
  %3122 = vmatpush1.bf16.msra.mxu0 0
  %3123 = vmatprep.subr.bf16.mxu0 0
  %3124 = vmatpush1.bf16.msra.mxu0 0
  %3125 = vmatprep.subr.bf16.mxu0 0
  %3126 = vmatpush1.bf16.msra.mxu0 0
  %3127 = vmatprep.subr.bf16.mxu0 0
  %3128 = vmatpush1.bf16.msra.mxu0 0
  %3129 = vmatprep.subr.bf16.mxu0 0
  %3130 = vmatpush1.bf16.msra.mxu0 0
  %3131 = vmatprep.subr.bf16.mxu0 0
  %3132 = vmatpush1.bf16.msra.mxu0 0
  %3133 = vmatprep.subr.bf16.mxu0 0
  %3134 = vmatpush1.bf16.msra.mxu0 0
  %3135 = vmatprep.subr.bf16.mxu0 0
  %3136 = vmatpush1.bf16.msra.mxu0 0
  %3137 = vmatprep.subr.bf16.mxu0 0
  %3138 = vmatpush1.bf16.msra.mxu0 0
  %3139 = vmatprep.subr.bf16.mxu0 0
  %3140 = vmatpush1.bf16.msra.mxu0 0
  %3141 = vmatprep.subr.bf16.mxu0 0
  %3142 = vmatpush1.bf16.msra.mxu0 0
  %3143 = vmatprep.subr.bf16.mxu0 0
  %3144 = vmatpush1.bf16.msra.mxu0 0
  %3145 = vmatprep.mubr.bf16.mxu0 0
  %3146 = vmatmul.mubr.bf16.gmra.mrb[0].mxu0 %v3111
  %v3147 = vpop.f32.mrb[0].mxu0
  %v3148 = vadd.f32 0.0, %v3147
  %v3149 = vpop.f32.mrb[0].mxu0
  %v3150 = vpop.f32.mrb[0].mxu0
  %v3151 = vpop.f32.mrb[0].mxu0
  %3152 = vdwg.mxu0
  %v3157 = vunpack.c.l.b16 %v3030
  %v3158 = vunpack.c.h.b16 %v3030
  %v3159 = vunpack.c.l.b16 %v3031
  %v3160 = vunpack.c.h.b16 %v3031
  %v3161 = vunpack.c.l.b16 %v3032
  %v3162 = vunpack.c.h.b16 %v3032
  %v3163 = vunpack.c.l.b16 %v3033
  %v3164 = vunpack.c.h.b16 %v3033
  %3165 = vset.pattern.permute.xlu0 0
  %3166 = vperm.xlu0 %3165, %v3157
  %v3167 = vpop.permute.xlu0 %3166
  %3168 = vset.pattern.permute.xlu0 0
  %3169 = vperm.xlu0 %3168, %v3158
  %v3170 = vpop.permute.xlu0 %3169
  %3171 = vset.pattern.permute.xlu0 0
  %3172 = vperm.xlu0 %3171, %v3159
  %v3173 = vpop.permute.xlu0 %3172
  %3174 = vset.pattern.permute.xlu0 0
  %3175 = vperm.xlu0 %3174, %v3160
  %v3176 = vpop.permute.xlu0 %3175
  %3177 = vset.pattern.permute.xlu0 0
  %3178 = vperm.xlu0 %3177, %v3161
  %v3179 = vpop.permute.xlu0 %3178
  %3180 = vset.pattern.permute.xlu0 0
  %3181 = vperm.xlu0 %3180, %v3162
  %v3182 = vpop.permute.xlu0 %3181
  %3183 = vset.pattern.permute.xlu0 0
  %3184 = vperm.xlu0 %3183, %v3163
  %v3185 = vpop.permute.xlu0 %3184
  %3186 = vset.pattern.permute.xlu0 0
  %3187 = vperm.xlu0 %3186, %v3164
  %v3188 = vpop.permute.xlu0 %3187
  %v3189 = vlaneseq
  %v3190 = vshrl.u32 %v3189, 7
  %v3191 = vsub.s32 %v868, %v3190
  %v3192 = vrot.slane %v3167, %v3191
  %v3193 = vlaneseq
  %v3194 = vshrl.u32 %v3193, 7
  %v3195 = vsub.s32 %v873, %v3194
  %v3196 = vrot.slane %v3170, %v3195
  %v3197 = vsel %vm878, %v3196, %v3192
  %v3198 = vlaneseq
  %v3199 = vshrl.u32 %v3198, 7
  %v3200 = vsub.s32 %v880, %v3199
  %v3201 = vrot.slane %v3173, %v3200
  %v3202 = vsel %vm885, %v3201, %v3197
  %v3203 = vlaneseq
  %v3204 = vshrl.u32 %v3203, 7
  %v3205 = vsub.s32 %v887, %v3204
  %v3206 = vrot.slane %v3176, %v3205
  %v3207 = vsel %vm892, %v3206, %v3202
  %v3208 = vlaneseq
  %v3209 = vshrl.u32 %v3208, 7
  %v3210 = vsub.s32 %v894, %v3209
  %v3211 = vrot.slane %v3179, %v3210
  %v3212 = vsel %vm899, %v3211, %v3207
  %v3213 = vlaneseq
  %v3214 = vshrl.u32 %v3213, 7
  %v3215 = vsub.s32 %v901, %v3214
  %v3216 = vrot.slane %v3182, %v3215
  %v3217 = vsel %vm906, %v3216, %v3212
  %v3218 = vlaneseq
  %v3219 = vshrl.u32 %v3218, 7
  %v3220 = vsub.s32 %v908, %v3219
  %v3221 = vrot.slane %v3185, %v3220
  %v3222 = vsel %vm913, %v3221, %v3217
  %v3223 = vlaneseq
  %v3224 = vshrl.u32 %v3223, 7
  %v3225 = vsub.s32 %v915, %v3224
  %v3226 = vrot.slane %v3188, %v3225
  %v3227 = vsel %vm920, %v3226, %v3222
  %v3228 = vpack.c.b16 %v3227, %v3227
  %v3230 = vsel %vm1285, %v3228, 0
  %3232 = vmatprep.subr.bf16.mxu0 0
  %3233 = vmatpush1.bf16.msra.mxu0 %v275
  %3234 = vmatprep.subr.bf16.mxu0 0
  %3235 = vmatpush1.bf16.msra.mxu0 %v276
  %3236 = vmatprep.subr.bf16.mxu0 0
  %3237 = vmatpush1.bf16.msra.mxu0 %v277
  %3238 = vmatprep.subr.bf16.mxu0 0
  %3239 = vmatpush1.bf16.msra.mxu0 %v278
  %3240 = vmatprep.subr.bf16.mxu0 0
  %3241 = vmatpush1.bf16.msra.mxu0 0
  %3242 = vmatprep.subr.bf16.mxu0 0
  %3243 = vmatpush1.bf16.msra.mxu0 0
  %3244 = vmatprep.subr.bf16.mxu0 0
  %3245 = vmatpush1.bf16.msra.mxu0 0
  %3246 = vmatprep.subr.bf16.mxu0 0
  %3247 = vmatpush1.bf16.msra.mxu0 0
  %3248 = vmatprep.subr.bf16.mxu0 0
  %3249 = vmatpush1.bf16.msra.mxu0 0
  %3250 = vmatprep.subr.bf16.mxu0 0
  %3251 = vmatpush1.bf16.msra.mxu0 0
  %3252 = vmatprep.subr.bf16.mxu0 0
  %3253 = vmatpush1.bf16.msra.mxu0 0
  %3254 = vmatprep.subr.bf16.mxu0 0
  %3255 = vmatpush1.bf16.msra.mxu0 0
  %3256 = vmatprep.subr.bf16.mxu0 0
  %3257 = vmatpush1.bf16.msra.mxu0 0
  %3258 = vmatprep.subr.bf16.mxu0 0
  %3259 = vmatpush1.bf16.msra.mxu0 0
  %3260 = vmatprep.subr.bf16.mxu0 0
  %3261 = vmatpush1.bf16.msra.mxu0 0
  %3262 = vmatprep.subr.bf16.mxu0 0
  %3263 = vmatpush1.bf16.msra.mxu0 0
  %3264 = vmatprep.mubr.bf16.mxu0 0
  %3265 = vmatmul.mubr.bf16.gmra.mrb[0].mxu0 %v3230
  %v3266 = vpop.f32.mrb[0].mxu0
  %v3267 = vadd.f32 0.0, %v3266
  %v3268 = vpop.f32.mrb[0].mxu0
  %v3269 = vpop.f32.mrb[0].mxu0
  %v3270 = vpop.f32.mrb[0].mxu0
  %3271 = vdwg.mxu0
  %v3272 = vpack.c.bf16 %v3148, %v3148
  %v3273 = vpack.c.bf16 %v3267, %v3267
  %v3276 = vunpack.c.l.b16 %v3272
  %v3277 = vunpack.c.l.b16 %v3273
  %v3278 = vrot.slane %v3277, 7
  %v3279 = vsel %vm439, %v3278, %v3276
  %v3280 = vpack.c.b16 %v3279, %v3279
  %v3282 = vsel %vm225, %v3280, 0
  %3284 = vmatprep.subr.bf16.mxu0 0
  %3285 = vmatpush1.bf16.msra.mxu0 %v1465
  %3286 = vmatprep.subr.bf16.mxu0 0
  %3287 = vmatpush1.bf16.msra.mxu0 %v1466
  %3288 = vmatprep.subr.bf16.mxu0 0
  %3289 = vmatpush1.bf16.msra.mxu0 0
  %3290 = vmatprep.subr.bf16.mxu0 0
  %3291 = vmatpush1.bf16.msra.mxu0 0
  %3292 = vmatprep.subr.bf16.mxu0 0
  %3293 = vmatpush1.bf16.msra.mxu0 0
  %3294 = vmatprep.subr.bf16.mxu0 0
  %3295 = vmatpush1.bf16.msra.mxu0 0
  %3296 = vmatprep.subr.bf16.mxu0 0
  %3297 = vmatpush1.bf16.msra.mxu0 0
  %3298 = vmatprep.subr.bf16.mxu0 0
  %3299 = vmatpush1.bf16.msra.mxu0 0
  %3300 = vmatprep.subr.bf16.mxu0 0
  %3301 = vmatpush1.bf16.msra.mxu0 0
  %3302 = vmatprep.subr.bf16.mxu0 0
  %3303 = vmatpush1.bf16.msra.mxu0 0
  %3304 = vmatprep.subr.bf16.mxu0 0
  %3305 = vmatpush1.bf16.msra.mxu0 0
  %3306 = vmatprep.subr.bf16.mxu0 0
  %3307 = vmatpush1.bf16.msra.mxu0 0
  %3308 = vmatprep.subr.bf16.mxu0 0
  %3309 = vmatpush1.bf16.msra.mxu0 0
  %3310 = vmatprep.subr.bf16.mxu0 0
  %3311 = vmatpush1.bf16.msra.mxu0 0
  %3312 = vmatprep.subr.bf16.mxu0 0
  %3313 = vmatpush1.bf16.msra.mxu0 0
  %3314 = vmatprep.subr.bf16.mxu0 0
  %3315 = vmatpush1.bf16.msra.mxu0 0
  %3316 = vmatprep.mubr.bf16.mxu0 0
  %3317 = vmatmul.mubr.bf16.gmra.mrb[0].mxu0 %v3282
  %v3318 = vpop.f32.mrb[0].mxu0
  %v3319 = vadd.f32 0.0, %v3318
  %v3320 = vpop.f32.mrb[0].mxu0
  %v3321 = vpop.f32.mrb[0].mxu0
  %v3322 = vpop.f32.mrb[0].mxu0
  %3323 = vdwg.mxu0
  %3325 = vrot.lane.b32.xlu0 %v3319, 96
  %v3326 = vpop.permute.xlu0 %3325
  %v3328 = vadd.f32 %v2542, %v3326
  %v3329 = vtanh.pop %v3328
  %v3330 = vpack.c.bf16 %v3329, %v3329
  %s3331 = scalar_lea.vmem %s1, 3
  %v3332 = vld [vmem:[%s3331] sm:$0x1]
  %3334 = vrot.lane.b32.xlu0 %v3330, 48
  %v3335 = vpop.permute.xlu0 %3334
  %v3338 = vsel %vm87, %v3332, %v3335
  %v3339 = vsel %vm225, %v3338, 0
  %3341 = vmatprep.subr.bf16.mxu0 0
  %3342 = vmatpush1.bf16.msra.mxu0 %v583
  %3343 = vmatprep.subr.bf16.mxu0 0
  %3344 = vmatpush1.bf16.msra.mxu0 %v584
  %3345 = vmatprep.subr.bf16.mxu0 0
  %3346 = vmatpush1.bf16.msra.mxu0 0
  %3347 = vmatprep.subr.bf16.mxu0 0
  %3348 = vmatpush1.bf16.msra.mxu0 0
  %3349 = vmatprep.subr.bf16.mxu0 0
  %3350 = vmatpush1.bf16.msra.mxu0 0
  %3351 = vmatprep.subr.bf16.mxu0 0
  %3352 = vmatpush1.bf16.msra.mxu0 0
  %3353 = vmatprep.subr.bf16.mxu0 0
  %3354 = vmatpush1.bf16.msra.mxu0 0
  %3355 = vmatprep.subr.bf16.mxu0 0
  %3356 = vmatpush1.bf16.msra.mxu0 0
  %3357 = vmatprep.subr.bf16.mxu0 0
  %3358 = vmatpush1.bf16.msra.mxu0 0
  %3359 = vmatprep.subr.bf16.mxu0 0
  %3360 = vmatpush1.bf16.msra.mxu0 0
  %3361 = vmatprep.subr.bf16.mxu0 0
  %3362 = vmatpush1.bf16.msra.mxu0 0
  %3363 = vmatprep.subr.bf16.mxu0 0
  %3364 = vmatpush1.bf16.msra.mxu0 0
  %3365 = vmatprep.subr.bf16.mxu0 0
  %3366 = vmatpush1.bf16.msra.mxu0 0
  %3367 = vmatprep.subr.bf16.mxu0 0
  %3368 = vmatpush1.bf16.msra.mxu0 0
  %3369 = vmatprep.subr.bf16.mxu0 0
  %3370 = vmatpush1.bf16.msra.mxu0 0
  %3371 = vmatprep.subr.bf16.mxu0 0
  %3372 = vmatpush1.bf16.msra.mxu0 0
  %3373 = vmatprep.mubr.bf16.mxu0 0
  %3374 = vmatmul.mubr.bf16.gmra.mrb[0].mxu0 %v3339
  %v3375 = vpop.f32.mrb[0].mxu0
  %v3376 = vadd.f32 %v2542, %v3375
  %v3377 = vpop.f32.mrb[0].mxu0
  %v3378 = vpop.f32.mrb[0].mxu0
  %v3379 = vpop.f32.mrb[0].mxu0
  %3380 = vdwg.mxu0
  %v3381 = vadd.f32 %v3376, %v514
  %v3382 = vxor.u32 %v3381, 2147483648
  %v3383 = vmul.f32 %v3382, 1.442695
  %v3384 = vpow.pop %v3383
  %v3385 = vadd.f32 %v3384, 1.0
  %v3386 = vrcp.pop %v3385
  %v3387 = vmul.f32 1.0, %v3386
  %v3388 = vtanh.pop %v3381
  %v3389 = vmul.f32 %v3387, %v2493
  %3391 = vrot.lane.b32.xlu0 %v3388, 96
  %v3392 = vpop.permute.xlu0 %3391
  %v3394 = vmul.f32 %v3387, %v3392
  %3396 = vrot.lane.b32.xlu0 %v3394, 16
  %v3397 = vpop.permute.xlu0 %3396
  %v3399 = vadd.f32 %v3389, %v3397
  %v3400 = vtanh.pop %v3399
  %3402 = vrot.lane.b32.xlu0 %v3400, 32
  %v3403 = vpop.permute.xlu0 %3402
  %v3405 = vmul.f32 %v3387, %v3403
  %v3406 = vpack.c.bf16 %v3405, %v3405
  %3408 = vrot.lane.b32.xlu0 %v3406, 80
  %v3409 = vpop.permute.xlu0 %3408
  %v3411 = vsel %vm87, %v3409, 0
  %3413 = vmatprep.subr.bf16.mxu0 0
  %3414 = vmatpush1.bf16.msra.mxu0 %v526
  %3415 = vmatprep.subr.bf16.mxu0 0
  %3416 = vmatpush1.bf16.msra.mxu0 0
  %3417 = vmatprep.subr.bf16.mxu0 0
  %3418 = vmatpush1.bf16.msra.mxu0 0
  %3419 = vmatprep.subr.bf16.mxu0 0
  %3420 = vmatpush1.bf16.msra.mxu0 0
  %3421 = vmatprep.subr.bf16.mxu0 0
  %3422 = vmatpush1.bf16.msra.mxu0 0
  %3423 = vmatprep.subr.bf16.mxu0 0
  %3424 = vmatpush1.bf16.msra.mxu0 0
  %3425 = vmatprep.subr.bf16.mxu0 0
  %3426 = vmatpush1.bf16.msra.mxu0 0
  %3427 = vmatprep.subr.bf16.mxu0 0
  %3428 = vmatpush1.bf16.msra.mxu0 0
  %3429 = vmatprep.subr.bf16.mxu0 0
  %3430 = vmatpush1.bf16.msra.mxu0 0
  %3431 = vmatprep.subr.bf16.mxu0 0
  %3432 = vmatpush1.bf16.msra.mxu0 0
  %3433 = vmatprep.subr.bf16.mxu0 0
  %3434 = vmatpush1.bf16.msra.mxu0 0
  %3435 = vmatprep.subr.bf16.mxu0 0
  %3436 = vmatpush1.bf16.msra.mxu0 0
  %3437 = vmatprep.subr.bf16.mxu0 0
  %3438 = vmatpush1.bf16.msra.mxu0 0
  %3439 = vmatprep.subr.bf16.mxu0 0
  %3440 = vmatpush1.bf16.msra.mxu0 0
  %3441 = vmatprep.subr.bf16.mxu0 0
  %3442 = vmatpush1.bf16.msra.mxu0 0
  %3443 = vmatprep.subr.bf16.mxu0 0
  %3444 = vmatpush1.bf16.msra.mxu0 0
  %3445 = vmatprep.mubr.bf16.mxu0 0
  %3446 = vmatmul.mubr.bf16.gmra.mrb[0].mxu0 %v3411
  %v3447 = vpop.f32.mrb[0].mxu0
  %v3448 = vadd.f32 %v519, %v3447
  %v3449 = vpop.f32.mrb[0].mxu0
  %v3450 = vpop.f32.mrb[0].mxu0
  %v3451 = vpop.f32.mrb[0].mxu0
  %3452 = vdwg.mxu0
  %v3453 = vpack.c.bf16 %v3448, %v3448
  %v3456 = vunpack.c.l.s4 1966171168
  %v3457 = vunpack.c.0.s8 %v3456
  %v3458 = vlaneseq
  %v3459 = vshrl.u32 %v3458, 7
  %v3460 = vsub.s32 %v3457, %v3459
  %v3461 = vrot.slane %v3453, %v3460
  %v3463 = vunpack.c.l.s4 1966171168
  %v3464 = vunpack.c.0.s8 %v3463
  %v3465 = vlaneseq
  %v3466 = vshrl.u32 %v3465, 7
  %v3467 = vsub.s32 %v3464, %v3466
  %v3468 = vrot.slane %v3461, %v3467
  %v3469 = vunpack.i.l.s16 %v3468
  %v3470 = vunpack.i.h.s16 %v3468
  %v3471 = vpack.i.b16 %v3469, %v3469
  %v3472 = vpack.i.b16 %v3470, %v3470
  %v3473 = vlaneseq
  %v3474 = vshrl.u32 %v3473, 7
  %v3475 = vsub.s32 0, %v3474
  %v3476 = vrot.slane %v3471, %v3475
  %v3477 = vlaneseq
  %v3478 = vshrl.u32 %v3477, 7
  %v3479 = vsub.s32 0, %v3478
  %v3480 = vrot.slane %v3472, %v3479
  %v3482 = vpack.i.b16 %v3476, %v3476
  %v3484 = vlaneseq
  %v3485 = vshrl.u32 %v3484, 7
  %v3486 = vsub.s32 0, %v3485
  %v3487 = vrot.slane %v3482, %v3486
  %v3489 = vpack.i.b16 %v3480, %v3480
  %v3491 = vlaneseq
  %v3492 = vshrl.u32 %v3491, 7
  %v3493 = vsub.s32 0, %v3492
  %v3494 = vrot.slane %v3489, %v3493
  %3497 = vrot.lane.b32.xlu0 %v3487, 64
  %v3498 = vpop.permute.xlu0 %3497
  %3499 = vrot.lane.b32.xlu0 %v3494, 64
  %v3500 = vpop.permute.xlu0 %3499
  %v3503 = vadd.bf16 %v416, %v3498
  %v3504 = vadd.bf16 %v417, %v3498
  %v3505 = vadd.bf16 %v418, %v3498
  %v3506 = vadd.bf16 %v419, %v3498
  %v3507 = vadd.bf16 %v420, %v3500
  %v3508 = vadd.bf16 %v421, %v3500
  %v3509 = vadd.bf16 %v422, %v3500
  %v3510 = vadd.bf16 %v423, %v3500
  %v3511 = vtanh.bf16.pop %v3503
  %v3512 = vtanh.bf16.pop %v3504
  %v3513 = vtanh.bf16.pop %v3505
  %v3514 = vtanh.bf16.pop %v3506
  %v3515 = vtanh.bf16.pop %v3507
  %v3516 = vtanh.bf16.pop %v3508
  %v3517 = vtanh.bf16.pop %v3509
  %v3518 = vtanh.bf16.pop %v3510
  %v3519 = vunpack.c.l.bf16 %v3511
  %v3520 = vunpack.c.h.bf16 %v3511
  %v3521 = vunpack.c.l.bf16 %v3512
  %v3522 = vunpack.c.h.bf16 %v3512
  %v3523 = vunpack.c.l.bf16 %v3513
  %v3524 = vunpack.c.h.bf16 %v3513
  %v3525 = vunpack.c.l.bf16 %v3514
  %v3526 = vunpack.c.h.bf16 %v3514
  %v3527 = vunpack.c.l.bf16 %v3515
  %v3528 = vunpack.c.h.bf16 %v3515
  %v3529 = vunpack.c.l.bf16 %v3516
  %v3530 = vunpack.c.h.bf16 %v3516
  %v3531 = vunpack.c.l.bf16 %v3517
  %v3532 = vunpack.c.h.bf16 %v3517
  %v3533 = vunpack.c.l.bf16 %v3518
  %v3534 = vunpack.c.h.bf16 %v3518
  %v3535 = vmul.f32 %v3519, %v786
  %v3536 = vmul.f32 %v3520, %v786
  %v3537 = vmul.f32 %v3521, %v786
  %v3538 = vmul.f32 %v3522, %v786
  %v3539 = vmul.f32 %v3523, %v786
  %v3540 = vmul.f32 %v3524, %v786
  %v3541 = vmul.f32 %v3525, %v786
  %v3542 = vmul.f32 %v3526, %v786
  %v3543 = vmul.f32 %v3527, %v786
  %v3544 = vmul.f32 %v3528, %v786
  %v3545 = vmul.f32 %v3529, %v786
  %v3546 = vmul.f32 %v3530, %v786
  %v3547 = vmul.f32 %v3531, %v786
  %v3548 = vmul.f32 %v3532, %v786
  %v3549 = vmul.f32 %v3533, %v786
  %v3550 = vmul.f32 %v3534, %v786
  %v3551 = vsel %vm225, %v3535, 0.0
  %3552 = vadd.xlane.f32.xlu0 %v3551
  %v3553 = vpop.xlane.xlu0 %3552
  %v3554 = vsel %vm225, %v3536, 0.0
  %3555 = vadd.xlane.f32.xlu0 %v3554
  %v3556 = vpop.xlane.xlu0 %3555
  %v3557 = vsel %vm225, %v3537, 0.0
  %3558 = vadd.xlane.f32.xlu0 %v3557
  %v3559 = vpop.xlane.xlu0 %3558
  %v3560 = vsel %vm225, %v3538, 0.0
  %3561 = vadd.xlane.f32.xlu0 %v3560
  %v3562 = vpop.xlane.xlu0 %3561
  %v3563 = vsel %vm225, %v3539, 0.0
  %3564 = vadd.xlane.f32.xlu0 %v3563
  %v3565 = vpop.xlane.xlu0 %3564
  %v3566 = vsel %vm225, %v3540, 0.0
  %3567 = vadd.xlane.f32.xlu0 %v3566
  %v3568 = vpop.xlane.xlu0 %3567
  %v3569 = vsel %vm225, %v3541, 0.0
  %3570 = vadd.xlane.f32.xlu0 %v3569
  %v3571 = vpop.xlane.xlu0 %3570
  %v3572 = vsel %vm225, %v3542, 0.0
  %3573 = vadd.xlane.f32.xlu0 %v3572
  %v3574 = vpop.xlane.xlu0 %3573
  %v3575 = vsel %vm225, %v3543, 0.0
  %3576 = vadd.xlane.f32.xlu0 %v3575
  %v3577 = vpop.xlane.xlu0 %3576
  %v3578 = vsel %vm225, %v3544, 0.0
  %3579 = vadd.xlane.f32.xlu0 %v3578
  %v3580 = vpop.xlane.xlu0 %3579
  %v3581 = vsel %vm225, %v3545, 0.0
  %3582 = vadd.xlane.f32.xlu0 %v3581
  %v3583 = vpop.xlane.xlu0 %3582
  %v3584 = vsel %vm225, %v3546, 0.0
  %3585 = vadd.xlane.f32.xlu0 %v3584
  %v3586 = vpop.xlane.xlu0 %3585
  %v3587 = vsel %vm225, %v3547, 0.0
  %3588 = vadd.xlane.f32.xlu0 %v3587
  %v3589 = vpop.xlane.xlu0 %3588
  %v3590 = vsel %vm225, %v3548, 0.0
  %3591 = vadd.xlane.f32.xlu0 %v3590
  %v3592 = vpop.xlane.xlu0 %3591
  %v3593 = vsel %vm225, %v3549, 0.0
  %3594 = vadd.xlane.f32.xlu0 %v3593
  %v3595 = vpop.xlane.xlu0 %3594
  %v3596 = vsel %vm225, %v3550, 0.0
  %3597 = vadd.xlane.f32.xlu0 %v3596
  %v3598 = vpop.xlane.xlu0 %3597
  %v3615 = vlaneseq
  %v3616 = vshrl.u32 %v3615, 7
  %v3617 = vsub.s32 %v868, %v3616
  %v3618 = vrot.slane %v3553, %v3617
  %v3619 = vlaneseq
  %v3620 = vshrl.u32 %v3619, 7
  %v3621 = vsub.s32 %v873, %v3620
  %v3622 = vrot.slane %v3556, %v3621
  %v3623 = vsel %vm878, %v3622, %v3618
  %v3624 = vlaneseq
  %v3625 = vshrl.u32 %v3624, 7
  %v3626 = vsub.s32 %v880, %v3625
  %v3627 = vrot.slane %v3559, %v3626
  %v3628 = vsel %vm885, %v3627, %v3623
  %v3629 = vlaneseq
  %v3630 = vshrl.u32 %v3629, 7
  %v3631 = vsub.s32 %v887, %v3630
  %v3632 = vrot.slane %v3562, %v3631
  %v3633 = vsel %vm892, %v3632, %v3628
  %v3634 = vlaneseq
  %v3635 = vshrl.u32 %v3634, 7
  %v3636 = vsub.s32 %v894, %v3635
  %v3637 = vrot.slane %v3565, %v3636
  %v3638 = vsel %vm899, %v3637, %v3633
  %v3639 = vlaneseq
  %v3640 = vshrl.u32 %v3639, 7
  %v3641 = vsub.s32 %v901, %v3640
  %v3642 = vrot.slane %v3568, %v3641
  %v3643 = vsel %vm906, %v3642, %v3638
  %v3644 = vlaneseq
  %v3645 = vshrl.u32 %v3644, 7
  %v3646 = vsub.s32 %v908, %v3645
  %v3647 = vrot.slane %v3571, %v3646
  %v3648 = vsel %vm913, %v3647, %v3643
  %v3649 = vlaneseq
  %v3650 = vshrl.u32 %v3649, 7
  %v3651 = vsub.s32 %v915, %v3650
  %v3652 = vrot.slane %v3574, %v3651
  %v3653 = vsel %vm920, %v3652, %v3648
  %v3654 = vlaneseq
  %v3655 = vshrl.u32 %v3654, 7
  %v3656 = vsub.s32 %v868, %v3655
  %v3657 = vrot.slane %v3577, %v3656
  %v3658 = vlaneseq
  %v3659 = vshrl.u32 %v3658, 7
  %v3660 = vsub.s32 %v873, %v3659
  %v3661 = vrot.slane %v3580, %v3660
  %v3662 = vsel %vm878, %v3661, %v3657
  %v3663 = vlaneseq
  %v3664 = vshrl.u32 %v3663, 7
  %v3665 = vsub.s32 %v880, %v3664
  %v3666 = vrot.slane %v3583, %v3665
  %v3667 = vsel %vm885, %v3666, %v3662
  %v3668 = vlaneseq
  %v3669 = vshrl.u32 %v3668, 7
  %v3670 = vsub.s32 %v887, %v3669
  %v3671 = vrot.slane %v3586, %v3670
  %v3672 = vsel %vm892, %v3671, %v3667
  %v3673 = vlaneseq
  %v3674 = vshrl.u32 %v3673, 7
  %v3675 = vsub.s32 %v894, %v3674
  %v3676 = vrot.slane %v3589, %v3675
  %v3677 = vsel %vm899, %v3676, %v3672
  %v3678 = vlaneseq
  %v3679 = vshrl.u32 %v3678, 7
  %v3680 = vsub.s32 %v901, %v3679
  %v3681 = vrot.slane %v3592, %v3680
  %v3682 = vsel %vm906, %v3681, %v3677
  %v3683 = vlaneseq
  %v3684 = vshrl.u32 %v3683, 7
  %v3685 = vsub.s32 %v908, %v3684
  %v3686 = vrot.slane %v3595, %v3685
  %v3687 = vsel %vm913, %v3686, %v3682
  %v3688 = vlaneseq
  %v3689 = vshrl.u32 %v3688, 7
  %v3690 = vsub.s32 %v915, %v3689
  %v3691 = vrot.slane %v3598, %v3690
  %v3692 = vsel %vm920, %v3691, %v3687
  %v3693 = vsel %vm439, %v3692, %v3653
  %v3695 = vsel %vm963, %v3693, -inf
  %3696 = vmax.xlane.f32.xlu0 %v3695
  %v3697 = vpop.xlane.xlu0 %3696
  %v3699 = vlaneseq
  %v3700 = vshrl.u32 %v3699, 7
  %v3701 = vsub.s32 0, %v3700
  %v3702 = vrot.slane %v3697, %v3701
  %v3703 = vlaneseq
  %v3704 = vshrl.u32 %v3703, 7
  %v3705 = vsub.s32 1, %v3704
  %v3706 = vrot.slane %v3697, %v3705
  %v3709 = vsub.f32 %v3553, %v3702
  %v3710 = vsub.f32 %v3556, %v3702
  %v3711 = vsub.f32 %v3559, %v3702
  %v3712 = vsub.f32 %v3562, %v3702
  %v3713 = vsub.f32 %v3565, %v3702
  %v3714 = vsub.f32 %v3568, %v3702
  %v3715 = vsub.f32 %v3571, %v3702
  %v3716 = vsub.f32 %v3574, %v3702
  %v3717 = vsub.f32 %v3577, %v3706
  %v3718 = vsub.f32 %v3580, %v3706
  %v3719 = vsub.f32 %v3583, %v3706
  %v3720 = vsub.f32 %v3586, %v3706
  %v3721 = vsub.f32 %v3589, %v3706
  %v3722 = vsub.f32 %v3592, %v3706
  %v3723 = vsub.f32 %v3595, %v3706
  %v3724 = vsub.f32 %v3598, %v3706
  %v3725 = vmul.f32 %v3709, 1.442695
  %v3726 = vpow.pop %v3725
  %v3727 = vmul.f32 %v3710, 1.442695
  %v3728 = vpow.pop %v3727
  %v3729 = vmul.f32 %v3711, 1.442695
  %v3730 = vpow.pop %v3729
  %v3731 = vmul.f32 %v3712, 1.442695
  %v3732 = vpow.pop %v3731
  %v3733 = vmul.f32 %v3713, 1.442695
  %v3734 = vpow.pop %v3733
  %v3735 = vmul.f32 %v3714, 1.442695
  %v3736 = vpow.pop %v3735
  %v3737 = vmul.f32 %v3715, 1.442695
  %v3738 = vpow.pop %v3737
  %v3739 = vmul.f32 %v3716, 1.442695
  %v3740 = vpow.pop %v3739
  %v3741 = vmul.f32 %v3717, 1.442695
  %v3742 = vpow.pop %v3741
  %v3743 = vmul.f32 %v3718, 1.442695
  %v3744 = vpow.pop %v3743
  %v3745 = vmul.f32 %v3719, 1.442695
  %v3746 = vpow.pop %v3745
  %v3747 = vmul.f32 %v3720, 1.442695
  %v3748 = vpow.pop %v3747
  %v3749 = vmul.f32 %v3721, 1.442695
  %v3750 = vpow.pop %v3749
  %v3751 = vmul.f32 %v3722, 1.442695
  %v3752 = vpow.pop %v3751
  %v3753 = vmul.f32 %v3723, 1.442695
  %v3754 = vpow.pop %v3753
  %v3755 = vmul.f32 %v3724, 1.442695
  %v3756 = vpow.pop %v3755
  %3773 = vset.pattern.permute.xlu0 0
  %3774 = vperm.xlu0 %3773, %v3726
  %v3775 = vpop.permute.xlu0 %3774
  %3776 = vset.pattern.permute.xlu0 0
  %3777 = vperm.xlu0 %3776, %v3728
  %v3778 = vpop.permute.xlu0 %3777
  %3779 = vset.pattern.permute.xlu0 0
  %3780 = vperm.xlu0 %3779, %v3730
  %v3781 = vpop.permute.xlu0 %3780
  %3782 = vset.pattern.permute.xlu0 0
  %3783 = vperm.xlu0 %3782, %v3732
  %v3784 = vpop.permute.xlu0 %3783
  %3785 = vset.pattern.permute.xlu0 0
  %3786 = vperm.xlu0 %3785, %v3734
  %v3787 = vpop.permute.xlu0 %3786
  %3788 = vset.pattern.permute.xlu0 0
  %3789 = vperm.xlu0 %3788, %v3736
  %v3790 = vpop.permute.xlu0 %3789
  %3791 = vset.pattern.permute.xlu0 0
  %3792 = vperm.xlu0 %3791, %v3738
  %v3793 = vpop.permute.xlu0 %3792
  %3794 = vset.pattern.permute.xlu0 0
  %3795 = vperm.xlu0 %3794, %v3740
  %v3796 = vpop.permute.xlu0 %3795
  %3797 = vset.pattern.permute.xlu0 0
  %3798 = vperm.xlu0 %3797, %v3742
  %v3799 = vpop.permute.xlu0 %3798
  %3800 = vset.pattern.permute.xlu0 0
  %3801 = vperm.xlu0 %3800, %v3744
  %v3802 = vpop.permute.xlu0 %3801
  %3803 = vset.pattern.permute.xlu0 0
  %3804 = vperm.xlu0 %3803, %v3746
  %v3805 = vpop.permute.xlu0 %3804
  %3806 = vset.pattern.permute.xlu0 0
  %3807 = vperm.xlu0 %3806, %v3748
  %v3808 = vpop.permute.xlu0 %3807
  %3809 = vset.pattern.permute.xlu0 0
  %3810 = vperm.xlu0 %3809, %v3750
  %v3811 = vpop.permute.xlu0 %3810
  %3812 = vset.pattern.permute.xlu0 0
  %3813 = vperm.xlu0 %3812, %v3752
  %v3814 = vpop.permute.xlu0 %3813
  %3815 = vset.pattern.permute.xlu0 0
  %3816 = vperm.xlu0 %3815, %v3754
  %v3817 = vpop.permute.xlu0 %3816
  %3818 = vset.pattern.permute.xlu0 0
  %3819 = vperm.xlu0 %3818, %v3756
  %v3820 = vpop.permute.xlu0 %3819
  %v3821 = vlaneseq
  %v3822 = vshrl.u32 %v3821, 7
  %v3823 = vsub.s32 %v868, %v3822
  %v3824 = vrot.slane %v3775, %v3823
  %v3825 = vlaneseq
  %v3826 = vshrl.u32 %v3825, 7
  %v3827 = vsub.s32 %v873, %v3826
  %v3828 = vrot.slane %v3778, %v3827
  %v3829 = vsel %vm878, %v3828, %v3824
  %v3830 = vlaneseq
  %v3831 = vshrl.u32 %v3830, 7
  %v3832 = vsub.s32 %v880, %v3831
  %v3833 = vrot.slane %v3781, %v3832
  %v3834 = vsel %vm885, %v3833, %v3829
  %v3835 = vlaneseq
  %v3836 = vshrl.u32 %v3835, 7
  %v3837 = vsub.s32 %v887, %v3836
  %v3838 = vrot.slane %v3784, %v3837
  %v3839 = vsel %vm892, %v3838, %v3834
  %v3840 = vlaneseq
  %v3841 = vshrl.u32 %v3840, 7
  %v3842 = vsub.s32 %v894, %v3841
  %v3843 = vrot.slane %v3787, %v3842
  %v3844 = vsel %vm899, %v3843, %v3839
  %v3845 = vlaneseq
  %v3846 = vshrl.u32 %v3845, 7
  %v3847 = vsub.s32 %v901, %v3846
  %v3848 = vrot.slane %v3790, %v3847
  %v3849 = vsel %vm906, %v3848, %v3844
  %v3850 = vlaneseq
  %v3851 = vshrl.u32 %v3850, 7
  %v3852 = vsub.s32 %v908, %v3851
  %v3853 = vrot.slane %v3793, %v3852
  %v3854 = vsel %vm913, %v3853, %v3849
  %v3855 = vlaneseq
  %v3856 = vshrl.u32 %v3855, 7
  %v3857 = vsub.s32 %v915, %v3856
  %v3858 = vrot.slane %v3796, %v3857
  %v3859 = vsel %vm920, %v3858, %v3854
  %v3860 = vlaneseq
  %v3861 = vshrl.u32 %v3860, 7
  %v3862 = vsub.s32 %v868, %v3861
  %v3863 = vrot.slane %v3799, %v3862
  %v3864 = vlaneseq
  %v3865 = vshrl.u32 %v3864, 7
  %v3866 = vsub.s32 %v873, %v3865
  %v3867 = vrot.slane %v3802, %v3866
  %v3868 = vsel %vm878, %v3867, %v3863
  %v3869 = vlaneseq
  %v3870 = vshrl.u32 %v3869, 7
  %v3871 = vsub.s32 %v880, %v3870
  %v3872 = vrot.slane %v3805, %v3871
  %v3873 = vsel %vm885, %v3872, %v3868
  %v3874 = vlaneseq
  %v3875 = vshrl.u32 %v3874, 7
  %v3876 = vsub.s32 %v887, %v3875
  %v3877 = vrot.slane %v3808, %v3876
  %v3878 = vsel %vm892, %v3877, %v3873
  %v3879 = vlaneseq
  %v3880 = vshrl.u32 %v3879, 7
  %v3881 = vsub.s32 %v894, %v3880
  %v3882 = vrot.slane %v3811, %v3881
  %v3883 = vsel %vm899, %v3882, %v3878
  %v3884 = vlaneseq
  %v3885 = vshrl.u32 %v3884, 7
  %v3886 = vsub.s32 %v901, %v3885
  %v3887 = vrot.slane %v3814, %v3886
  %v3888 = vsel %vm906, %v3887, %v3883
  %v3889 = vlaneseq
  %v3890 = vshrl.u32 %v3889, 7
  %v3891 = vsub.s32 %v908, %v3890
  %v3892 = vrot.slane %v3817, %v3891
  %v3893 = vsel %vm913, %v3892, %v3888
  %v3894 = vlaneseq
  %v3895 = vshrl.u32 %v3894, 7
  %v3896 = vsub.s32 %v915, %v3895
  %v3897 = vrot.slane %v3820, %v3896
  %v3898 = vsel %vm920, %v3897, %v3893
  %v3899 = vsel %vm439, %v3898, %v3859
  %v3901 = vsel %vm963, %v3899, 0.0
  %3902 = vadd.xlane.f32.xlu0 %v3901
  %v3903 = vpop.xlane.xlu0 %3902
  %v3904 = vrcp.pop %v3903
  %v3906 = vlaneseq
  %v3907 = vshrl.u32 %v3906, 7
  %v3908 = vsub.s32 0, %v3907
  %v3909 = vrot.slane %v3904, %v3908
  %v3910 = vlaneseq
  %v3911 = vshrl.u32 %v3910, 7
  %v3912 = vsub.s32 1, %v3911
  %v3913 = vrot.slane %v3904, %v3912
  %v3916 = vmul.f32 %v3726, %v3909
  %v3917 = vmul.f32 %v3728, %v3909
  %v3918 = vmul.f32 %v3730, %v3909
  %v3919 = vmul.f32 %v3732, %v3909
  %v3920 = vmul.f32 %v3734, %v3909
  %v3921 = vmul.f32 %v3736, %v3909
  %v3922 = vmul.f32 %v3738, %v3909
  %v3923 = vmul.f32 %v3740, %v3909
  %v3924 = vmul.f32 %v3742, %v3913
  %v3925 = vmul.f32 %v3744, %v3913
  %v3926 = vmul.f32 %v3746, %v3913
  %v3927 = vmul.f32 %v3748, %v3913
  %v3928 = vmul.f32 %v3750, %v3913
  %v3929 = vmul.f32 %v3752, %v3913
  %v3930 = vmul.f32 %v3754, %v3913
  %v3931 = vmul.f32 %v3756, %v3913
  %v3932 = vpack.c.bf16 %v3917, %v3916
  %v3933 = vpack.c.bf16 %v3919, %v3918
  %v3934 = vpack.c.bf16 %v3921, %v3920
  %v3935 = vpack.c.bf16 %v3923, %v3922
  %v3936 = vpack.c.bf16 %v3925, %v3924
  %v3937 = vpack.c.bf16 %v3927, %v3926
  %v3938 = vpack.c.bf16 %v3929, %v3928
  %v3939 = vpack.c.bf16 %v3931, %v3930
  %v3944 = vunpack.c.l.b16 %v3932
  %v3945 = vunpack.c.h.b16 %v3932
  %v3946 = vunpack.c.l.b16 %v3933
  %v3947 = vunpack.c.h.b16 %v3933
  %v3948 = vunpack.c.l.b16 %v3934
  %v3949 = vunpack.c.h.b16 %v3934
  %v3950 = vunpack.c.l.b16 %v3935
  %v3951 = vunpack.c.h.b16 %v3935
  %3952 = vset.pattern.permute.xlu0 0
  %3953 = vperm.xlu0 %3952, %v3944
  %v3954 = vpop.permute.xlu0 %3953
  %3955 = vset.pattern.permute.xlu0 0
  %3956 = vperm.xlu0 %3955, %v3945
  %v3957 = vpop.permute.xlu0 %3956
  %3958 = vset.pattern.permute.xlu0 0
  %3959 = vperm.xlu0 %3958, %v3946
  %v3960 = vpop.permute.xlu0 %3959
  %3961 = vset.pattern.permute.xlu0 0
  %3962 = vperm.xlu0 %3961, %v3947
  %v3963 = vpop.permute.xlu0 %3962
  %3964 = vset.pattern.permute.xlu0 0
  %3965 = vperm.xlu0 %3964, %v3948
  %v3966 = vpop.permute.xlu0 %3965
  %3967 = vset.pattern.permute.xlu0 0
  %3968 = vperm.xlu0 %3967, %v3949
  %v3969 = vpop.permute.xlu0 %3968
  %3970 = vset.pattern.permute.xlu0 0
  %3971 = vperm.xlu0 %3970, %v3950
  %v3972 = vpop.permute.xlu0 %3971
  %3973 = vset.pattern.permute.xlu0 0
  %3974 = vperm.xlu0 %3973, %v3951
  %v3975 = vpop.permute.xlu0 %3974
  %v3976 = vlaneseq
  %v3977 = vshrl.u32 %v3976, 7
  %v3978 = vsub.s32 %v868, %v3977
  %v3979 = vrot.slane %v3954, %v3978
  %v3980 = vlaneseq
  %v3981 = vshrl.u32 %v3980, 7
  %v3982 = vsub.s32 %v873, %v3981
  %v3983 = vrot.slane %v3957, %v3982
  %v3984 = vsel %vm878, %v3983, %v3979
  %v3985 = vlaneseq
  %v3986 = vshrl.u32 %v3985, 7
  %v3987 = vsub.s32 %v880, %v3986
  %v3988 = vrot.slane %v3960, %v3987
  %v3989 = vsel %vm885, %v3988, %v3984
  %v3990 = vlaneseq
  %v3991 = vshrl.u32 %v3990, 7
  %v3992 = vsub.s32 %v887, %v3991
  %v3993 = vrot.slane %v3963, %v3992
  %v3994 = vsel %vm892, %v3993, %v3989
  %v3995 = vlaneseq
  %v3996 = vshrl.u32 %v3995, 7
  %v3997 = vsub.s32 %v894, %v3996
  %v3998 = vrot.slane %v3966, %v3997
  %v3999 = vsel %vm899, %v3998, %v3994
  %v4000 = vlaneseq
  %v4001 = vshrl.u32 %v4000, 7
  %v4002 = vsub.s32 %v901, %v4001
  %v4003 = vrot.slane %v3969, %v4002
  %v4004 = vsel %vm906, %v4003, %v3999
  %v4005 = vlaneseq
  %v4006 = vshrl.u32 %v4005, 7
  %v4007 = vsub.s32 %v908, %v4006
  %v4008 = vrot.slane %v3972, %v4007
  %v4009 = vsel %vm913, %v4008, %v4004
  %v4010 = vlaneseq
  %v4011 = vshrl.u32 %v4010, 7
  %v4012 = vsub.s32 %v915, %v4011
  %v4013 = vrot.slane %v3975, %v4012
  %v4014 = vsel %vm920, %v4013, %v4009
  %v4015 = vpack.c.b16 %v4014, %v4014
  %v4017 = vsel %vm1285, %v4015, 0
  %4019 = vmatprep.subr.bf16.mxu0 0
  %4020 = vmatpush1.bf16.msra.mxu0 %v271
  %4021 = vmatprep.subr.bf16.mxu0 0
  %4022 = vmatpush1.bf16.msra.mxu0 %v272
  %4023 = vmatprep.subr.bf16.mxu0 0
  %4024 = vmatpush1.bf16.msra.mxu0 %v273
  %4025 = vmatprep.subr.bf16.mxu0 0
  %4026 = vmatpush1.bf16.msra.mxu0 %v274
  %4027 = vmatprep.subr.bf16.mxu0 0
  %4028 = vmatpush1.bf16.msra.mxu0 0
  %4029 = vmatprep.subr.bf16.mxu0 0
  %4030 = vmatpush1.bf16.msra.mxu0 0
  %4031 = vmatprep.subr.bf16.mxu0 0
  %4032 = vmatpush1.bf16.msra.mxu0 0
  %4033 = vmatprep.subr.bf16.mxu0 0
  %4034 = vmatpush1.bf16.msra.mxu0 0
  %4035 = vmatprep.subr.bf16.mxu0 0
  %4036 = vmatpush1.bf16.msra.mxu0 0
  %4037 = vmatprep.subr.bf16.mxu0 0
  %4038 = vmatpush1.bf16.msra.mxu0 0
  %4039 = vmatprep.subr.bf16.mxu0 0
  %4040 = vmatpush1.bf16.msra.mxu0 0
  %4041 = vmatprep.subr.bf16.mxu0 0
  %4042 = vmatpush1.bf16.msra.mxu0 0
  %4043 = vmatprep.subr.bf16.mxu0 0
  %4044 = vmatpush1.bf16.msra.mxu0 0
  %4045 = vmatprep.subr.bf16.mxu0 0
  %4046 = vmatpush1.bf16.msra.mxu0 0
  %4047 = vmatprep.subr.bf16.mxu0 0
  %4048 = vmatpush1.bf16.msra.mxu0 0
  %4049 = vmatprep.subr.bf16.mxu0 0
  %4050 = vmatpush1.bf16.msra.mxu0 0
  %4051 = vmatprep.mubr.bf16.mxu0 0
  %4052 = vmatmul.mubr.bf16.gmra.mrb[0].mxu0 %v4017
  %v4053 = vpop.f32.mrb[0].mxu0
  %v4054 = vadd.f32 0.0, %v4053
  %v4055 = vpop.f32.mrb[0].mxu0
  %v4056 = vpop.f32.mrb[0].mxu0
  %v4057 = vpop.f32.mrb[0].mxu0
  %4058 = vdwg.mxu0
  %v4063 = vunpack.c.l.b16 %v3936
  %v4064 = vunpack.c.h.b16 %v3936
  %v4065 = vunpack.c.l.b16 %v3937
  %v4066 = vunpack.c.h.b16 %v3937
  %v4067 = vunpack.c.l.b16 %v3938
  %v4068 = vunpack.c.h.b16 %v3938
  %v4069 = vunpack.c.l.b16 %v3939
  %v4070 = vunpack.c.h.b16 %v3939
  %4071 = vset.pattern.permute.xlu0 0
  %4072 = vperm.xlu0 %4071, %v4063
  %v4073 = vpop.permute.xlu0 %4072
  %4074 = vset.pattern.permute.xlu0 0
  %4075 = vperm.xlu0 %4074, %v4064
  %v4076 = vpop.permute.xlu0 %4075
  %4077 = vset.pattern.permute.xlu0 0
  %4078 = vperm.xlu0 %4077, %v4065
  %v4079 = vpop.permute.xlu0 %4078
  %4080 = vset.pattern.permute.xlu0 0
  %4081 = vperm.xlu0 %4080, %v4066
  %v4082 = vpop.permute.xlu0 %4081
  %4083 = vset.pattern.permute.xlu0 0
  %4084 = vperm.xlu0 %4083, %v4067
  %v4085 = vpop.permute.xlu0 %4084
  %4086 = vset.pattern.permute.xlu0 0
  %4087 = vperm.xlu0 %4086, %v4068
  %v4088 = vpop.permute.xlu0 %4087
  %4089 = vset.pattern.permute.xlu0 0
  %4090 = vperm.xlu0 %4089, %v4069
  %v4091 = vpop.permute.xlu0 %4090
  %4092 = vset.pattern.permute.xlu0 0
  %4093 = vperm.xlu0 %4092, %v4070
  %v4094 = vpop.permute.xlu0 %4093
  %v4095 = vlaneseq
  %v4096 = vshrl.u32 %v4095, 7
  %v4097 = vsub.s32 %v868, %v4096
  %v4098 = vrot.slane %v4073, %v4097
  %v4099 = vlaneseq
  %v4100 = vshrl.u32 %v4099, 7
  %v4101 = vsub.s32 %v873, %v4100
  %v4102 = vrot.slane %v4076, %v4101
  %v4103 = vsel %vm878, %v4102, %v4098
  %v4104 = vlaneseq
  %v4105 = vshrl.u32 %v4104, 7
  %v4106 = vsub.s32 %v880, %v4105
  %v4107 = vrot.slane %v4079, %v4106
  %v4108 = vsel %vm885, %v4107, %v4103
  %v4109 = vlaneseq
  %v4110 = vshrl.u32 %v4109, 7
  %v4111 = vsub.s32 %v887, %v4110
  %v4112 = vrot.slane %v4082, %v4111
  %v4113 = vsel %vm892, %v4112, %v4108
  %v4114 = vlaneseq
  %v4115 = vshrl.u32 %v4114, 7
  %v4116 = vsub.s32 %v894, %v4115
  %v4117 = vrot.slane %v4085, %v4116
  %v4118 = vsel %vm899, %v4117, %v4113
  %v4119 = vlaneseq
  %v4120 = vshrl.u32 %v4119, 7
  %v4121 = vsub.s32 %v901, %v4120
  %v4122 = vrot.slane %v4088, %v4121
  %v4123 = vsel %vm906, %v4122, %v4118
  %v4124 = vlaneseq
  %v4125 = vshrl.u32 %v4124, 7
  %v4126 = vsub.s32 %v908, %v4125
  %v4127 = vrot.slane %v4091, %v4126
  %v4128 = vsel %vm913, %v4127, %v4123
  %v4129 = vlaneseq
  %v4130 = vshrl.u32 %v4129, 7
  %v4131 = vsub.s32 %v915, %v4130
  %v4132 = vrot.slane %v4094, %v4131
  %v4133 = vsel %vm920, %v4132, %v4128
  %v4134 = vpack.c.b16 %v4133, %v4133
  %v4136 = vsel %vm1285, %v4134, 0
  %4138 = vmatprep.subr.bf16.mxu0 0
  %4139 = vmatpush1.bf16.msra.mxu0 %v275
  %4140 = vmatprep.subr.bf16.mxu0 0
  %4141 = vmatpush1.bf16.msra.mxu0 %v276
  %4142 = vmatprep.subr.bf16.mxu0 0
  %4143 = vmatpush1.bf16.msra.mxu0 %v277
  %4144 = vmatprep.subr.bf16.mxu0 0
  %4145 = vmatpush1.bf16.msra.mxu0 %v278
  %4146 = vmatprep.subr.bf16.mxu0 0
  %4147 = vmatpush1.bf16.msra.mxu0 0
  %4148 = vmatprep.subr.bf16.mxu0 0
  %4149 = vmatpush1.bf16.msra.mxu0 0
  %4150 = vmatprep.subr.bf16.mxu0 0
  %4151 = vmatpush1.bf16.msra.mxu0 0
  %4152 = vmatprep.subr.bf16.mxu0 0
  %4153 = vmatpush1.bf16.msra.mxu0 0
  %4154 = vmatprep.subr.bf16.mxu0 0
  %4155 = vmatpush1.bf16.msra.mxu0 0
  %4156 = vmatprep.subr.bf16.mxu0 0
  %4157 = vmatpush1.bf16.msra.mxu0 0
  %4158 = vmatprep.subr.bf16.mxu0 0
  %4159 = vmatpush1.bf16.msra.mxu0 0
  %4160 = vmatprep.subr.bf16.mxu0 0
  %4161 = vmatpush1.bf16.msra.mxu0 0
  %4162 = vmatprep.subr.bf16.mxu0 0
  %4163 = vmatpush1.bf16.msra.mxu0 0
  %4164 = vmatprep.subr.bf16.mxu0 0
  %4165 = vmatpush1.bf16.msra.mxu0 0
  %4166 = vmatprep.subr.bf16.mxu0 0
  %4167 = vmatpush1.bf16.msra.mxu0 0
  %4168 = vmatprep.subr.bf16.mxu0 0
  %4169 = vmatpush1.bf16.msra.mxu0 0
  %4170 = vmatprep.mubr.bf16.mxu0 0
  %4171 = vmatmul.mubr.bf16.gmra.mrb[0].mxu0 %v4136
  %v4172 = vpop.f32.mrb[0].mxu0
  %v4173 = vadd.f32 0.0, %v4172
  %v4174 = vpop.f32.mrb[0].mxu0
  %v4175 = vpop.f32.mrb[0].mxu0
  %v4176 = vpop.f32.mrb[0].mxu0
  %4177 = vdwg.mxu0
  %v4178 = vpack.c.bf16 %v4054, %v4054
  %v4179 = vpack.c.bf16 %v4173, %v4173
  %v4182 = vunpack.c.l.b16 %v4178
  %v4183 = vunpack.c.l.b16 %v4179
  %v4184 = vrot.slane %v4183, 7
  %v4185 = vsel %vm439, %v4184, %v4182
  %v4186 = vpack.c.b16 %v4185, %v4185
  %v4188 = vsel %vm225, %v4186, 0
  %4190 = vmatprep.subr.bf16.mxu0 0
  %4191 = vmatpush1.bf16.msra.mxu0 %v1465
  %4192 = vmatprep.subr.bf16.mxu0 0
  %4193 = vmatpush1.bf16.msra.mxu0 %v1466
  %4194 = vmatprep.subr.bf16.mxu0 0
  %4195 = vmatpush1.bf16.msra.mxu0 0
  %4196 = vmatprep.subr.bf16.mxu0 0
  %4197 = vmatpush1.bf16.msra.mxu0 0
  %4198 = vmatprep.subr.bf16.mxu0 0
  %4199 = vmatpush1.bf16.msra.mxu0 0
  %4200 = vmatprep.subr.bf16.mxu0 0
  %4201 = vmatpush1.bf16.msra.mxu0 0
  %4202 = vmatprep.subr.bf16.mxu0 0
  %4203 = vmatpush1.bf16.msra.mxu0 0
  %4204 = vmatprep.subr.bf16.mxu0 0
  %4205 = vmatpush1.bf16.msra.mxu0 0
  %4206 = vmatprep.subr.bf16.mxu0 0
  %4207 = vmatpush1.bf16.msra.mxu0 0
  %4208 = vmatprep.subr.bf16.mxu0 0
  %4209 = vmatpush1.bf16.msra.mxu0 0
  %4210 = vmatprep.subr.bf16.mxu0 0
  %4211 = vmatpush1.bf16.msra.mxu0 0
  %4212 = vmatprep.subr.bf16.mxu0 0
  %4213 = vmatpush1.bf16.msra.mxu0 0
  %4214 = vmatprep.subr.bf16.mxu0 0
  %4215 = vmatpush1.bf16.msra.mxu0 0
  %4216 = vmatprep.subr.bf16.mxu0 0
  %4217 = vmatpush1.bf16.msra.mxu0 0
  %4218 = vmatprep.subr.bf16.mxu0 0
  %4219 = vmatpush1.bf16.msra.mxu0 0
  %4220 = vmatprep.subr.bf16.mxu0 0
  %4221 = vmatpush1.bf16.msra.mxu0 0
  %4222 = vmatprep.mubr.bf16.mxu0 0
  %4223 = vmatmul.mubr.bf16.gmra.mrb[0].mxu0 %v4188
  %v4224 = vpop.f32.mrb[0].mxu0
  %v4225 = vadd.f32 0.0, %v4224
  %v4226 = vpop.f32.mrb[0].mxu0
  %v4227 = vpop.f32.mrb[0].mxu0
  %v4228 = vpop.f32.mrb[0].mxu0
  %4229 = vdwg.mxu0
  %4231 = vrot.lane.b32.xlu0 %v4225, 96
  %v4232 = vpop.permute.xlu0 %4231
  %v4234 = vadd.f32 %v3448, %v4232
  %v4235 = vtanh.pop %v4234
  %v4236 = vpack.c.bf16 %v4235, %v4235
  %v4237 = vrot.slane %v2424, 7
  %v4238 = vrot.slane %v3330, 6
  %v4240 = vrot.slane %v4236, 5
  %vm4241 = vcmask 1040384
  %v4244 = vsel %vm4241, %v1518, %v4237
  %vm4245 = vcmask 1041408
  %v4247 = vsel %vm4245, %v4244, %v4238
  %vm4248 = vcmask 1042432
  %v4250 = vsel %vm4248, %v4247, %v4240
  %4252 = vrot.lane.b32.xlu0 %v4250, 32
  %v4253 = vpop.permute.xlu0 %4252
  %v4256 = vunpack.c.l.b16 %v508
  %v4257 = vunpack.c.l.b16 %v509
  %v4258 = vpack.c.b16 %v4257, %v4256
  %v4261 = vsel %vm87, %v4253, 0
  %4263 = vmatprep.subr.bf16.mxu0 0
  %4264 = vmatpush1.bf16.msra.mxu0 %v4258
  %4265 = vmatprep.subr.bf16.mxu0 0
  %4266 = vmatpush1.bf16.msra.mxu0 0
  %4267 = vmatprep.subr.bf16.mxu0 0
  %4268 = vmatpush1.bf16.msra.mxu0 0
  %4269 = vmatprep.subr.bf16.mxu0 0
  %4270 = vmatpush1.bf16.msra.mxu0 0
  %4271 = vmatprep.subr.bf16.mxu0 0
  %4272 = vmatpush1.bf16.msra.mxu0 0
  %4273 = vmatprep.subr.bf16.mxu0 0
  %4274 = vmatpush1.bf16.msra.mxu0 0
  %4275 = vmatprep.subr.bf16.mxu0 0
  %4276 = vmatpush1.bf16.msra.mxu0 0
  %4277 = vmatprep.subr.bf16.mxu0 0
  %4278 = vmatpush1.bf16.msra.mxu0 0
  %4279 = vmatprep.subr.bf16.mxu0 0
  %4280 = vmatpush1.bf16.msra.mxu0 0
  %4281 = vmatprep.subr.bf16.mxu0 0
  %4282 = vmatpush1.bf16.msra.mxu0 0
  %4283 = vmatprep.subr.bf16.mxu0 0
  %4284 = vmatpush1.bf16.msra.mxu0 0
  %4285 = vmatprep.subr.bf16.mxu0 0
  %4286 = vmatpush1.bf16.msra.mxu0 0
  %4287 = vmatprep.subr.bf16.mxu0 0
  %4288 = vmatpush1.bf16.msra.mxu0 0
  %4289 = vmatprep.subr.bf16.mxu0 0
  %4290 = vmatpush1.bf16.msra.mxu0 0
  %4291 = vmatprep.subr.bf16.mxu0 0
  %4292 = vmatpush1.bf16.msra.mxu0 0
  %4293 = vmatprep.subr.bf16.mxu0 0
  %4294 = vmatpush1.bf16.msra.mxu0 0
  %4295 = vmatprep.mubr.bf16.mxu0 0
  %4296 = vmatmul.mubr.bf16.gmra.mrb[0].mxu0 %v4261
  %v4297 = vpop.f32.mrb[0].mxu0
  %v4298 = vadd.f32 0.0, %v4297
  %v4299 = vpop.f32.mrb[0].mxu0
  %v4300 = vpop.f32.mrb[0].mxu0
  %v4301 = vpop.f32.mrb[0].mxu0
  %4302 = vdwg.mxu0
  %vm4303 = vcmask 162816
  %4304 = vst.msk [vmem:[%s4] sm:$0xff] %vm4303, %v4298
  // Predicated region
  $region18: #{encoder_decoder_forward.1} parent=0 // pred_check
    _
  $region19: #{encoder_decoder_forward.1} parent=0 // pred_check_branch
    %4306 = sbr.rel (0) target = $region21
  $region20: #{encoder_decoder_forward.1} parent=0 // pred_region
    _
  $region21: #{encoder_decoder_forward.1} parent=0 // pred_fallthru
    _
  // Predicated region
  $region22: #{encoder_decoder_forward.1} parent=0 // pred_check
    _
  $region23: #{encoder_decoder_forward.1} parent=0 // pred_check_branch
    %4308 = sbr.rel (0) target = $region25
  $region24: #{encoder_decoder_forward.1} parent=0 // pred_region
    _
  $region25: #{encoder_decoder_forward.1} parent=0 // pred_fallthru
    _

</llo_original>
